<compile_context>
chip_gen: v5e
topology: v5e:2x2
jax: 0.10.0
libtpu: 0.0.40
codegen_flags: <defaults>
</compile_context>

<pallas_src>
import jax
import jax.numpy as jnp
from jax.experimental import pallas as pl
from jax.experimental.pallas import tpu as pltpu

LAMBDA_D = 250.0
POS_MARGIN = 1.0
NEG_MARGIN = 0.2
BLOCK_SIZE = 8
DIST_THRESH = 7.5
EPS = 1e-12  # F.normalize default eps


def _desc_loss_kernel(desc_ref, wdesc_ref, warp_y_ref, warp_x_ref,
                      grid_y_ref, grid_x_ref, out_ref):
    # desc_ref  : (1, M, D)  base-image descriptors (M rows, channels last)
    # wdesc_ref : (1, D, M)  warped-image descriptors (channels in sublanes)
    # warp_y_ref, warp_x_ref : (1, M, 1) homography-warped cell centers (y, x)
    # grid_y_ref, grid_x_ref : (1, 1, M) cell-center grid coordinates (y, x)
    # out_ref : (1, 1, M)  column-wise partial sums of the loss for this batch
    desc = desc_ref[0]          # (M, D)
    wdesc = wdesc_ref[0]        # (D, M)

    # L2-normalize descriptors (F.normalize semantics: x / max(||x||, eps)),
    # as an O(M) sqrt + approx reciprocal followed by a broadcast multiply.
    inv_d = pl.reciprocal(
        jnp.maximum(jnp.sqrt(jnp.sum(desc * desc, axis=-1, keepdims=True)), EPS),
        approx=True)                                   # (M, 1)
    inv_w = pl.reciprocal(
        jnp.maximum(jnp.sqrt(jnp.sum(wdesc * wdesc, axis=0, keepdims=True)), EPS),
        approx=True)                                   # (1, M)
    dn = (desc * inv_d).astype(jnp.bfloat16)           # (M, D) bf16 MXU LHS
    wn = (wdesc * inv_w).astype(jnp.bfloat16)          # (D, M) bf16 MXU RHS

    # dot[i, j] = <desc_i, warp_desc_j> : natural (M,K)x(K,N) MXU matmul, f32 acc.
    dp = jax.lax.dot_general(dn, wn, (((1,), (0,)), ((), ())),
                             preferred_element_type=jnp.float32)   # (M, M)
    dp = jnp.maximum(dp, 0.0)                                      # relu

    # F.normalize over (h', w') -> rows, then over (h, w) -> columns, both as
    # reciprocal-multiplies (no per-element divide through the EUP).
    inv_r = pl.reciprocal(
        jnp.maximum(jnp.sqrt(jnp.sum(dp * dp, axis=1, keepdims=True)), EPS),
        approx=True)                                   # (M, 1)
    dp = dp * inv_r
    inv_c = pl.reciprocal(
        jnp.maximum(jnp.sqrt(jnp.sum(dp * dp, axis=0, keepdims=True)), EPS),
        approx=True)                                   # (1, M)
    dp = dp * inv_c

    # correspondence mask from squared warped-vs-grid cell-center distance
    dy = warp_y_ref[0] - grid_y_ref[0]                 # (M,1)-(1,M) -> (M,M)
    dx = warp_x_ref[0] - grid_x_ref[0]
    dist2 = dy * dy + dx * dx

    pos = jnp.maximum(0.0, POS_MARGIN - dp)
    neg = jnp.maximum(0.0, dp - NEG_MARGIN)
    # loss = lambda*S*pos + (1-S)*neg with binary S  ==  where(S, lambda*pos, neg)
    loss = jnp.where(dist2 <= DIST_THRESH * DIST_THRESH, LAMBDA_D * pos, neg)

    # partial reduction over rows -> lane-dense (1, M) vector; finished in JAX
    out_ref[0] = jnp.sum(loss, axis=0, keepdims=True)


def descriptor_loss(desc_, wrap_desc_, H):
    """desc_, wrap_desc_: (N, D, Hc, Wc) NCHW; H: (N, 3, 3). Returns scalar loss."""
    b, d, h_c, w_c = desc_.shape
    m = h_c * w_c
    m_pad = ((m + 127) // 128) * 128          # lane-dense (multiple of 128) M

    # base descriptors -> (N, M, D); warped descriptors -> (N, D, M) (pure reshape)
    desc = jnp.transpose(desc_, (0, 2, 3, 1)).reshape(b, m, d).astype(jnp.float32)
    wdesc = wrap_desc_.reshape(b, d, m).astype(jnp.float32)

    # cell-center coordinates (y, x), flattened row-major over (h, w)
    ys = jnp.arange(h_c, dtype=jnp.float32) * BLOCK_SIZE + BLOCK_SIZE // 2
    xs = jnp.arange(w_c, dtype=jnp.float32) * BLOCK_SIZE + BLOCK_SIZE // 2
    gy, gx = jnp.meshgrid(ys, xs, indexing="ij")       # (Hc, Wc)
    gy = gy.reshape(-1)                                # (M,)
    gx = gx.reshape(-1)

    # warp the cell centers with the homography (homogeneous (x, y, 1))
    xy1 = jnp.stack([gx, gy, jnp.ones_like(gx)], axis=0)            # (3, M)
    warped = jnp.einsum("nij,jm->nim", H.astype(jnp.float32), xy1)  # (b, 3, M)
    wx = warped[:, 0, :] / warped[:, 2, :]
    wy = warped[:, 1, :] / warped[:, 2, :]

    warp_y = wy.reshape(b, m, 1)
    warp_x = wx.reshape(b, m, 1)
    grid_y = gy.reshape(1, 1, m)
    grid_x = gx.reshape(1, 1, m)

    if m_pad != m:
        pad = m_pad - m
        # zero-padded descriptors normalize to 0 -> dp = 0 -> neg hinge = 0; the
        # coordinate sentinels (+1e8 for padded warps, -1e8 for padded grid cells)
        # guarantee dist2 > thresh^2 so the padded pos hinge never fires.
        desc = jnp.pad(desc, ((0, 0), (0, pad), (0, 0)))
        wdesc = jnp.pad(wdesc, ((0, 0), (0, 0), (0, pad)))
        warp_y = jnp.pad(warp_y, ((0, 0), (0, pad), (0, 0)), constant_values=1e8)
        warp_x = jnp.pad(warp_x, ((0, 0), (0, pad), (0, 0)), constant_values=1e8)
        grid_y = jnp.pad(grid_y, ((0, 0), (0, 0), (0, pad)), constant_values=-1e8)
        grid_x = jnp.pad(grid_x, ((0, 0), (0, 0), (0, pad)), constant_values=-1e8)

    cost = pl.CostEstimate(
        flops=int(b * (2 * m_pad * m_pad * d + 20 * m_pad * m_pad)),
        transcendentals=int(b * 6 * m_pad),
        bytes_accessed=int(b * (2 * m_pad * d * 4 + 3 * m_pad * 4) + 2 * m_pad * 4),
    )

    partial = pl.pallas_call(
        _desc_loss_kernel,
        out_shape=jax.ShapeDtypeStruct((b, 1, m_pad), jnp.float32),
        grid_spec=pltpu.PrefetchScalarGridSpec(
            num_scalar_prefetch=0,
            grid=(b,),
            in_specs=[
                pl.BlockSpec((1, m_pad, d), lambda i: (i, 0, 0)),   # desc  (N,M,D)
                pl.BlockSpec((1, d, m_pad), lambda i: (i, 0, 0)),   # wdesc (N,D,M)
                pl.BlockSpec((1, m_pad, 1), lambda i: (i, 0, 0)),   # warp_y
                pl.BlockSpec((1, m_pad, 1), lambda i: (i, 0, 0)),   # warp_x
                pl.BlockSpec((1, 1, m_pad), lambda i: (0, 0, 0)),   # grid_y
                pl.BlockSpec((1, 1, m_pad), lambda i: (0, 0, 0)),   # grid_x
            ],
            out_specs=pl.BlockSpec((1, 1, m_pad), lambda i: (i, 0, 0)),
        ),
        compiler_params=pltpu.CompilerParams(
            dimension_semantics=("parallel",)),
        cost_estimate=cost,
    )(desc, wdesc, warp_y, warp_x, grid_y, grid_x)

    # per-batch normalization is the same constant -> sum everything / M^2 (real M)
    return jnp.sum(partial) / float(m * m)


def descriptor_loss_ref(desc_, wrap_desc_, H):
    """Pure-JAX f32 reference mirroring the PyTorch forward, for validation."""
    b, d, h_c, w_c = desc_.shape
    m = h_c * w_c
    desc = jnp.transpose(desc_, (0, 2, 3, 1))
    wdesc = jnp.transpose(wrap_desc_, (0, 2, 3, 1))

    ii, jj = jnp.meshgrid(jnp.arange(h_c), jnp.arange(w_c), indexing="ij")
    coords = (jnp.stack([ii, jj], -1) * BLOCK_SIZE + BLOCK_SIZE // 2).astype(jnp.float32)
    xy = jnp.concatenate([coords[..., 1:2], coords[..., 0:1]], -1).reshape(m, 2)
    xy1 = jnp.concatenate([xy, jnp.ones((m, 1), jnp.float32)], -1).T      # (3, M)
    w = jnp.einsum("nij,jm->nim", H.astype(jnp.float32), xy1)
    w = w[:, :2, :] / w[:, 2:3, :]
    w = jnp.transpose(w, (0, 2, 1)).reshape(b, h_c, w_c, 2)               # (x, y)
    warp_coords = jnp.stack([w[..., 1], w[..., 0]], -1)                   # (y, x)
    dist = jnp.linalg.norm(coords.reshape(1, 1, 1, h_c, w_c, 2)
                           - warp_coords.reshape(b, h_c, w_c, 1, 1, 2), axis=-1)
    S = (dist <= DIST_THRESH).astype(jnp.float32)

    def l2n(x, axis):
        return x / jnp.maximum(jnp.linalg.norm(x, axis=axis, keepdims=True), EPS)

    dn = l2n(desc, -1).reshape(b, h_c, w_c, 1, 1, d)
    wn = l2n(wdesc, -1).reshape(b, 1, 1, h_c, w_c, d)
    dp = jnp.maximum(jnp.sum(dn * wn, -1), 0.0)
    dp = l2n(dp.reshape(b, h_c, w_c, m), 3).reshape(b, h_c, w_c, h_c, w_c)
    dp = l2n(dp.reshape(b, m, h_c, w_c), 1).reshape(b, h_c, w_c, h_c, w_c)
    pos = jnp.maximum(0.0, POS_MARGIN - dp)
    neg = jnp.maximum(0.0, dp - NEG_MARGIN)
    loss = LAMBDA_D * S * pos + (1.0 - S) * neg
    return jnp.sum(loss) / float(m * m)


if __name__ == "__main__":
    key = jax.random.PRNGKey(0)
    b, d, h_c, w_c = 2, 32, 16, 16
    k1, k2, k3 = jax.random.split(key, 3)

    desc_ = jax.random.normal(k1, (b, d, h_c, w_c), jnp.float32)
    wrap_desc_ = jax.random.normal(k2, (b, d, h_c, w_c), jnp.float32)

    # near-identity homographies (small affine / few-pixel translation /
    # tiny projective part) so that some cells genuinely correspond
    eye = jnp.eye(3, dtype=jnp.float32)
    pert = jax.random.normal(k3, (b, 3, 3), jnp.float32)
    scale = jnp.array([[0.02, 0.02, 2.0],
                       [0.02, 0.02, 2.0],
                       [1e-4, 1e-4, 0.0]], jnp.float32)
    H = eye[None] + pert * scale[None]

    loss = descriptor_loss(desc_, wrap_desc_, H)
    loss = jax.block_until_ready(loss)

    ref = descriptor_loss_ref(desc_, wrap_desc_, H)
    assert jnp.isfinite(loss), loss
    # tolerance accounts for bf16 MXU inputs + approx reciprocals (f32 accumulation)
    assert jnp.allclose(loss, ref, rtol=1e-2, atol=2e-3), (float(loss), float(ref))

    print("KERNEL_OK")
</pallas_src>

<mosaic_0001>
module attributes {stable_mosaic.version = 11 : i64} {
  func.func @_desc_loss_kernel(%arg0: i32, %arg1: memref<1x256x32xf32, #tpu.memory_space<vmem>>, %arg2: memref<1x32x256xf32, #tpu.memory_space<vmem>>, %arg3: memref<1x256x1xf32, #tpu.memory_space<vmem>>, %arg4: memref<1x256x1xf32, #tpu.memory_space<vmem>>, %arg5: memref<1x1x256xf32, #tpu.memory_space<vmem>>, %arg6: memref<1x1x256xf32, #tpu.memory_space<vmem>>, %arg7: memref<1x1x256xf32, #tpu.memory_space<vmem>>) attributes {dimension_semantics = [#tpu.dimension_semantics<parallel>], iteration_bounds = array<i64: 2>, scalar_prefetch = 0 : i64, scratch_operands = 0 : i64, tpu.core_type = #tpu.core_type<tc>, window_params = [{transform_indices = @transform_0, window_bounds = array<i64: 1, 256, 32>}, {transform_indices = @transform_1, window_bounds = array<i64: 1, 32, 256>}, {transform_indices = @transform_2, window_bounds = array<i64: 1, 256, 1>}, {transform_indices = @transform_3, window_bounds = array<i64: 1, 256, 1>}, {pipeline_mode = #tpu.pipeline_mode<synchronous>, transform_indices = @transform_4, window_bounds = array<i64: 1, 1, 256>}, {pipeline_mode = #tpu.pipeline_mode<synchronous>, transform_indices = @transform_5, window_bounds = array<i64: 1, 1, 256>}, {transform_indices = @transform_6, window_bounds = array<i64: 1, 1, 256>}]} {
    %c0 = arith.constant 0 : index
    %c0_0 = arith.constant 0 : index
    %c0_1 = arith.constant 0 : index
    %0 = vector.load %arg1[%c0, %c0_0, %c0_1] : memref<1x256x32xf32, #tpu.memory_space<vmem>>, vector<1x256x32xf32>
    %1 = vector.shape_cast %0 : vector<1x256x32xf32> to vector<256x32xf32>
    %c0_2 = arith.constant 0 : index
    %c0_3 = arith.constant 0 : index
    %c0_4 = arith.constant 0 : index
    %2 = vector.load %arg2[%c0_2, %c0_3, %c0_4] : memref<1x32x256xf32, #tpu.memory_space<vmem>>, vector<1x32x256xf32>
    %3 = vector.shape_cast %2 : vector<1x32x256xf32> to vector<32x256xf32>
    %4 = arith.mulf %1, %1 : vector<256x32xf32>
    %cst = arith.constant dense<0.000000e+00> : vector<256xf32>
    %5 = vector.multi_reduction <add>, %4, %cst [1] : vector<256x32xf32> to vector<256xf32>
    %6 = vector.shape_cast %5 : vector<256xf32> to vector<256x1xf32>
    %7 = math.sqrt %6 : vector<256x1xf32>
    %cst_5 = arith.constant 9.99999996E-13 : f32
    %8 = vector.broadcast %cst_5 : f32 to vector<256x1xf32>
    %9 = arith.maximumf %7, %8 : vector<256x1xf32>
    %10 = tpu.reciprocal %9 {approx = true} : vector<256x1xf32> -> vector<256x1xf32>
    %11 = arith.mulf %3, %3 : vector<32x256xf32>
    %cst_6 = arith.constant dense<0.000000e+00> : vector<256xf32>
    %12 = vector.multi_reduction <add>, %11, %cst_6 [0] : vector<32x256xf32> to vector<256xf32>
    %13 = vector.shape_cast %12 : vector<256xf32> to vector<1x256xf32>
    %14 = math.sqrt %13 : vector<1x256xf32>
    %cst_7 = arith.constant 9.99999996E-13 : f32
    %15 = vector.broadcast %cst_7 : f32 to vector<1x256xf32>
    %16 = arith.maximumf %14, %15 : vector<1x256xf32>
    %17 = tpu.reciprocal %16 {approx = true} : vector<1x256xf32> -> vector<1x256xf32>
    %18 = vector.broadcast %10 : vector<256x1xf32> to vector<256x32xf32>
    %19 = arith.mulf %1, %18 : vector<256x32xf32>
    %20 = arith.truncf %19 : vector<256x32xf32> to vector<256x32xbf16>
    %21 = vector.broadcast %17 : vector<1x256xf32> to vector<32x256xf32>
    %22 = arith.mulf %3, %21 : vector<32x256xf32>
    %23 = arith.truncf %22 : vector<32x256xf32> to vector<32x256xbf16>
    %cst_8 = arith.constant dense<0.000000e+00> : vector<256x256xf32>
    %24 = tpu.matmul %20, %23, %cst_8 {dimension_numbers = #tpu.dot_dimension_numbers<[1], [0], [0], [1], [0, 0, 1, 1], [], []>} : vector<256x32xbf16>, vector<32x256xbf16>, vector<256x256xf32> -> vector<256x256xf32>
    %cst_9 = arith.constant 0.000000e+00 : f32
    %25 = vector.broadcast %cst_9 : f32 to vector<256x256xf32>
    %26 = arith.maximumf %24, %25 : vector<256x256xf32>
    %27 = arith.mulf %26, %26 : vector<256x256xf32>
    %cst_10 = arith.constant dense<0.000000e+00> : vector<256xf32>
    %28 = vector.multi_reduction <add>, %27, %cst_10 [1] : vector<256x256xf32> to vector<256xf32>
    %29 = vector.shape_cast %28 : vector<256xf32> to vector<256x1xf32>
    %30 = math.sqrt %29 : vector<256x1xf32>
    %cst_11 = arith.constant 9.99999996E-13 : f32
    %31 = vector.broadcast %cst_11 : f32 to vector<256x1xf32>
    %32 = arith.maximumf %30, %31 : vector<256x1xf32>
    %33 = tpu.reciprocal %32 {approx = true} : vector<256x1xf32> -> vector<256x1xf32>
    %34 = vector.broadcast %33 : vector<256x1xf32> to vector<256x256xf32>
    %35 = arith.mulf %26, %34 : vector<256x256xf32>
    %36 = arith.mulf %35, %35 : vector<256x256xf32>
    %cst_12 = arith.constant dense<0.000000e+00> : vector<256xf32>
    %37 = vector.multi_reduction <add>, %36, %cst_12 [0] : vector<256x256xf32> to vector<256xf32>
    %38 = vector.shape_cast %37 : vector<256xf32> to vector<1x256xf32>
    %39 = math.sqrt %38 : vector<1x256xf32>
    %cst_13 = arith.constant 9.99999996E-13 : f32
    %40 = vector.broadcast %cst_13 : f32 to vector<1x256xf32>
    %41 = arith.maximumf %39, %40 : vector<1x256xf32>
    %42 = tpu.reciprocal %41 {approx = true} : vector<1x256xf32> -> vector<1x256xf32>
    %43 = vector.broadcast %42 : vector<1x256xf32> to vector<256x256xf32>
    %44 = arith.mulf %35, %43 : vector<256x256xf32>
    %c0_14 = arith.constant 0 : index
    %c0_15 = arith.constant 0 : index
    %c0_16 = arith.constant 0 : index
    %45 = vector.load %arg3[%c0_14, %c0_15, %c0_16] : memref<1x256x1xf32, #tpu.memory_space<vmem>>, vector<1x256x1xf32>
    %46 = vector.shape_cast %45 : vector<1x256x1xf32> to vector<256x1xf32>
    %c0_17 = arith.constant 0 : index
    %c0_18 = arith.constant 0 : index
    %c0_19 = arith.constant 0 : index
    %47 = vector.load %arg5[%c0_17, %c0_18, %c0_19] : memref<1x1x256xf32, #tpu.memory_space<vmem>>, vector<1x1x256xf32>
    %48 = vector.shape_cast %47 : vector<1x1x256xf32> to vector<1x256xf32>
    %49 = vector.broadcast %46 : vector<256x1xf32> to vector<256x256xf32>
    %50 = vector.broadcast %48 : vector<1x256xf32> to vector<256x256xf32>
    %51 = arith.subf %49, %50 : vector<256x256xf32>
    %c0_20 = arith.constant 0 : index
    %c0_21 = arith.constant 0 : index
    %c0_22 = arith.constant 0 : index
    %52 = vector.load %arg4[%c0_20, %c0_21, %c0_22] : memref<1x256x1xf32, #tpu.memory_space<vmem>>, vector<1x256x1xf32>
    %53 = vector.shape_cast %52 : vector<1x256x1xf32> to vector<256x1xf32>
    %c0_23 = arith.constant 0 : index
    %c0_24 = arith.constant 0 : index
    %c0_25 = arith.constant 0 : index
    %54 = vector.load %arg6[%c0_23, %c0_24, %c0_25] : memref<1x1x256xf32, #tpu.memory_space<vmem>>, vector<1x1x256xf32>
    %55 = vector.shape_cast %54 : vector<1x1x256xf32> to vector<1x256xf32>
    %56 = vector.broadcast %53 : vector<256x1xf32> to vector<256x256xf32>
    %57 = vector.broadcast %55 : vector<1x256xf32> to vector<256x256xf32>
    %58 = arith.subf %56, %57 : vector<256x256xf32>
    %59 = arith.mulf %51, %51 : vector<256x256xf32>
    %60 = arith.mulf %58, %58 : vector<256x256xf32>
    %61 = arith.addf %59, %60 : vector<256x256xf32>
    %cst_26 = arith.constant 1.000000e+00 : f32
    %62 = vector.broadcast %cst_26 : f32 to vector<256x256xf32>
    %63 = arith.subf %62, %44 : vector<256x256xf32>
    %cst_27 = arith.constant 0.000000e+00 : f32
    %64 = vector.broadcast %cst_27 : f32 to vector<256x256xf32>
    %65 = arith.maximumf %64, %63 : vector<256x256xf32>
    %cst_28 = arith.constant 2.000000e-01 : f32
    %66 = vector.broadcast %cst_28 : f32 to vector<256x256xf32>
    %67 = arith.subf %44, %66 : vector<256x256xf32>
    %cst_29 = arith.constant 0.000000e+00 : f32
    %68 = vector.broadcast %cst_29 : f32 to vector<256x256xf32>
    %69 = arith.maximumf %68, %67 : vector<256x256xf32>
    %cst_30 = arith.constant 5.625000e+01 : f32
    %70 = vector.broadcast %cst_30 : f32 to vector<256x256xf32>
    %71 = arith.cmpf ole, %61, %70 : vector<256x256xf32>
    %cst_31 = arith.constant 2.500000e+02 : f32
    %72 = vector.broadcast %cst_31 : f32 to vector<256x256xf32>
    %73 = arith.mulf %72, %65 : vector<256x256xf32>
    %74 = arith.select %71, %73, %69 : vector<256x256xi1>, vector<256x256xf32>
    %cst_32 = arith.constant dense<0.000000e+00> : vector<256xf32>
    %75 = vector.multi_reduction <add>, %74, %cst_32 [0] : vector<256x256xf32> to vector<256xf32>
    %76 = vector.shape_cast %75 : vector<256xf32> to vector<1x256xf32>
    %c0_33 = arith.constant 0 : index
    %c0_34 = arith.constant 0 : index
    %c0_35 = arith.constant 0 : index
    %77 = vector.load %arg7[%c0_33, %c0_34, %c0_35] : memref<1x1x256xf32, #tpu.memory_space<vmem>>, vector<1x1x256xf32>
    %78 = vector.shape_cast %77 : vector<1x1x256xf32> to vector<1x256xf32>
    %79 = vector.shape_cast %76 : vector<1x256xf32> to vector<1x1x256xf32>
    tpu.vector_store %arg7[%c0_33, %c0_34, %c0_35], %79 {strides = array<i32>} : memref<1x1x256xf32, #tpu.memory_space<vmem>>, vector<1x1x256xf32>,
    return
  }
  func.func @transform_0(%arg0: i32) -> (i32, i32, i32) {
    %c0_i32 = arith.constant 0 : i32
    %c0_i32_0 = arith.constant 0 : i32
    %c0_i32_1 = arith.constant 0 : i32
    return %arg0, %c0_i32, %c0_i32_0 : i32, i32, i32
  }
  func.func @transform_1(%arg0: i32) -> (i32, i32, i32) {
    %c0_i32 = arith.constant 0 : i32
    %c0_i32_0 = arith.constant 0 : i32
    %c0_i32_1 = arith.constant 0 : i32
    return %arg0, %c0_i32, %c0_i32_0 : i32, i32, i32
  }
  func.func @transform_2(%arg0: i32) -> (i32, i32, i32) {
    %c0_i32 = arith.constant 0 : i32
    %c0_i32_0 = arith.constant 0 : i32
    %c0_i32_1 = arith.constant 0 : i32
    return %arg0, %c0_i32, %c0_i32_0 : i32, i32, i32
  }
  func.func @transform_3(%arg0: i32) -> (i32, i32, i32) {
    %c0_i32 = arith.constant 0 : i32
    %c0_i32_0 = arith.constant 0 : i32
    %c0_i32_1 = arith.constant 0 : i32
    return %arg0, %c0_i32, %c0_i32_0 : i32, i32, i32
  }
  func.func @transform_4(%arg0: i32) -> (i32, i32, i32) {
    %c0_i32 = arith.constant 0 : i32
    %c0_i32_0 = arith.constant 0 : i32
    %c0_i32_1 = arith.constant 0 : i32
    %c0_i32_2 = arith.constant 0 : i32
    return %c0_i32, %c0_i32_0, %c0_i32_1 : i32, i32, i32
  }
  func.func @transform_5(%arg0: i32) -> (i32, i32, i32) {
    %c0_i32 = arith.constant 0 : i32
    %c0_i32_0 = arith.constant 0 : i32
    %c0_i32_1 = arith.constant 0 : i32
    %c0_i32_2 = arith.constant 0 : i32
    return %c0_i32, %c0_i32_0, %c0_i32_1 : i32, i32, i32
  }
  func.func @transform_6(%arg0: i32) -> (i32, i32, i32) {
    %c0_i32 = arith.constant 0 : i32
    %c0_i32_0 = arith.constant 0 : i32
    %c0_i32_1 = arith.constant 0 : i32
    return %arg0, %c0_i32, %c0_i32_0 : i32, i32, i32
  }
}

</mosaic_0001>

<llo_original>
// kernel: tpu_custom_call.1
$region0: #{tpu_custom_call.1}
  #allocation0 [shape = 'u32[]', space=smem, size = 0x4, offset = 0x4, fixed_abs, tag = 'smem constant byte address 0x4 - core index']
  #allocation1 [shape = 'u32[72,128]{1,0:T(1,128)}', space=vmem, size = 0x9000, scoped, tag = 'internal scratch']
  %s0 = inlined_call_operand.vmem [shape: f32[2,256,32], index: 0, kind: input, shape index: {}]
  %s1 = inlined_call_operand.vmem [shape: f32[2,32,256], index: 1, kind: input, shape index: {}]
  %s2 = inlined_call_operand.vmem [shape: f32[2,256,1], index: 2, kind: input, shape index: {}]
  %s3 = inlined_call_operand.vmem [shape: f32[2,256,1], index: 3, kind: input, shape index: {}]
  %s4 = inlined_call_operand.vmem [shape: f32[1,1,256], index: 4, kind: input, shape index: {}]
  %s5 = inlined_call_operand.vmem [shape: f32[1,1,256], index: 5, kind: input, shape index: {}]
  %s6 = inlined_call_operand.hbm [shape: f32[2,1,256], index: 6, kind: output, shape index: {}]
  %s7 = sld [smem:[#allocation0]]
  $region57: #{tpu_custom_call.1} parent=0
    _
  %s9 = ssub.s32 1, %s7
  %s10 = scalar_select 0, %s9, %s7
  $region1: #{tpu_custom_call.1} parent=0
    #allocation2 [shape = 'u8[2048]{0}', space=vmem, size = 0x800, scoped, tag = 'output window, operand 0']
    #allocation3 [shape = 's32[2]{0}', space=sflag, size = 0x8, scoped, tag = 'scoped memory for tpu_custom_call.1']
    %11 = vsyncpa [#allocation3], 0
    %s12 = scalar_lea.sflag [#allocation3], 1
    %13 = vsyncpa %s12, 0
    loop: start=0, step=1, limit=4
    $region2: #{tpu_custom_call.1} parent=1 // loop_pre_header
      _
    $region3: #{tpu_custom_call.1} parent=1 // loop_header
      %s15 = sphi 0, %s19
      %p16 = scmp.ge.s32.totalorder %s15, 4
      %s25 = sphi 0, %s27
      %s28 = sphi 0, %s25
      %s29 = sphi 0, %s28
      %s45 = sphi 0, %s29
      %s51 = sphi 0, %s53
      %s54 = sphi 0, %s51
      %s55 = sphi 0, %s54
      %s71 = sphi 0, %s55
      %s77 = sphi 0, %s79
      %s80 = sphi 0, %s77
      %s81 = sphi 0, %s80
      %s97 = sphi 0, %s81
      %s103 = sphi 0, %s105
      %s106 = sphi 0, %s103
      %s107 = sphi 0, %s106
      %s123 = sphi 0, %s107
      %s127 = sphi 0, %s127
      %s129 = sphi 0, %s127
      %s130 = sphi 0, %s129
      %s144 = sphi 0, %s130
      %s148 = sphi 0, %s148
      %s150 = sphi 0, %s148
      %s151 = sphi 0, %s150
      %s165 = sphi 0, %s151
      %s171 = sphi 0, %s173
      %s174 = sphi 0, %s171
      %s175 = sphi 0, %s174
      %s191 = sphi 0, %s175
    $region4: #{tpu_custom_call.1} parent=1 // loop_header_branch
      %18 = sbr.rel (%p16) target = $region8
    $region5: #{tpu_custom_call.1} parent=1 // loop_body
      %s20 = ssub.s32 %s15, 1
      %s21 = ssub.s32 %s15, 2
      %s22 = sadd.s32 %s15, 1
      %s23 = ssub.s32 %s15, %s22
      %p24 = scmp.eq.s32.totalorder %s23, 0
      %s26 = sadd.s32 %s25, 1
      %s27 = scalar_select %p24, %s25, %s26
      %p30 = pneg %p24
      %p31 = scmp.eq.s32.totalorder %s15, 1
      %p32 = por %p30, %p31
      %p33 = scmp.ne.s32.totalorder %s25, %s28
      %p34 = scmp.eq.s32.totalorder %s15, 0
      %p35 = por %p33, %p34
      %p36 = scmp.ne.s32.totalorder %s25, %s28
      %p37 = scmp.eq.s32.totalorder %s20, 1
      %p38 = por %p36, %p37
      %p39 = scmp.ne.s32.totalorder %s28, %s29
      %p40 = scmp.eq.s32.totalorder %s20, 0
      %p41 = por %p39, %p40
      %p42 = scmp.ne.s32.totalorder %s28, %s29
      %p43 = scmp.eq.s32.totalorder %s21, 1
      %p44 = por %p42, %p43
      %p46 = scmp.ne.s32.totalorder %s29, %s45
      %p47 = scmp.eq.s32.totalorder %s21, 0
      %p48 = por %p46, %p47
      %s49 = ssub.s32 %s15, %s22
      %p50 = scmp.eq.s32.totalorder %s49, 0
      %s52 = sadd.s32 %s51, 1
      %s53 = scalar_select %p50, %s51, %s52
      %p56 = pneg %p50
      %p57 = scmp.eq.s32.totalorder %s15, 1
      %p58 = por %p56, %p57
      %p59 = scmp.ne.s32.totalorder %s51, %s54
      %p60 = scmp.eq.s32.totalorder %s15, 0
      %p61 = por %p59, %p60
      %p62 = scmp.ne.s32.totalorder %s51, %s54
      %p63 = scmp.eq.s32.totalorder %s20, 1
      %p64 = por %p62, %p63
      %p65 = scmp.ne.s32.totalorder %s54, %s55
      %p66 = scmp.eq.s32.totalorder %s20, 0
      %p67 = por %p65, %p66
      %p68 = scmp.ne.s32.totalorder %s54, %s55
      %p69 = scmp.eq.s32.totalorder %s21, 1
      %p70 = por %p68, %p69
      %p72 = scmp.ne.s32.totalorder %s55, %s71
      %p73 = scmp.eq.s32.totalorder %s21, 0
      %p74 = por %p72, %p73
      %s75 = ssub.s32 %s15, %s22
      %p76 = scmp.eq.s32.totalorder %s75, 0
      %s78 = sadd.s32 %s77, 1
      %s79 = scalar_select %p76, %s77, %s78
      %p82 = pneg %p76
      %p83 = scmp.eq.s32.totalorder %s15, 1
      %p84 = por %p82, %p83
      %p85 = scmp.ne.s32.totalorder %s77, %s80
      %p86 = scmp.eq.s32.totalorder %s15, 0
      %p87 = por %p85, %p86
      %p88 = scmp.ne.s32.totalorder %s77, %s80
      %p89 = scmp.eq.s32.totalorder %s20, 1
      %p90 = por %p88, %p89
      %p91 = scmp.ne.s32.totalorder %s80, %s81
      %p92 = scmp.eq.s32.totalorder %s20, 0
      %p93 = por %p91, %p92
      %p94 = scmp.ne.s32.totalorder %s80, %s81
      %p95 = scmp.eq.s32.totalorder %s21, 1
      %p96 = por %p94, %p95
      %p98 = scmp.ne.s32.totalorder %s81, %s97
      %p99 = scmp.eq.s32.totalorder %s21, 0
      %p100 = por %p98, %p99
      %s101 = ssub.s32 %s15, %s22
      %p102 = scmp.eq.s32.totalorder %s101, 0
      %s104 = sadd.s32 %s103, 1
      %s105 = scalar_select %p102, %s103, %s104
      %p108 = pneg %p102
      %p109 = scmp.eq.s32.totalorder %s15, 1
      %p110 = por %p108, %p109
      %p111 = scmp.ne.s32.totalorder %s103, %s106
      %p112 = scmp.eq.s32.totalorder %s15, 0
      %p113 = por %p111, %p112
      %p114 = scmp.ne.s32.totalorder %s103, %s106
      %p115 = scmp.eq.s32.totalorder %s20, 1
      %p116 = por %p114, %p115
      %p117 = scmp.ne.s32.totalorder %s106, %s107
      %p118 = scmp.eq.s32.totalorder %s20, 0
      %p119 = por %p117, %p118
      %p120 = scmp.ne.s32.totalorder %s106, %s107
      %p121 = scmp.eq.s32.totalorder %s21, 1
      %p122 = por %p120, %p121
      %p124 = scmp.ne.s32.totalorder %s107, %s123
      %p125 = scmp.eq.s32.totalorder %s21, 0
      %p126 = por %p124, %p125
      %s128 = sadd.s32 %s127, 1
      %p131 = scmp.eq.s32.totalorder %s15, 1
      %p132 = scmp.ne.s32.totalorder %s127, %s129
      %p133 = scmp.eq.s32.totalorder %s15, 0
      %p134 = por %p132, %p133
      %p135 = scmp.ne.s32.totalorder %s127, %s129
      %p136 = scmp.eq.s32.totalorder %s20, 1
      %p137 = por %p135, %p136
      %p138 = scmp.ne.s32.totalorder %s129, %s130
      %p139 = scmp.eq.s32.totalorder %s20, 0
      %p140 = por %p138, %p139
      %p141 = scmp.ne.s32.totalorder %s129, %s130
      %p142 = scmp.eq.s32.totalorder %s21, 1
      %p143 = por %p141, %p142
      %p145 = scmp.ne.s32.totalorder %s130, %s144
      %p146 = scmp.eq.s32.totalorder %s21, 0
      %p147 = por %p145, %p146
      %s149 = sadd.s32 %s148, 1
      %p152 = scmp.eq.s32.totalorder %s15, 1
      %p153 = scmp.ne.s32.totalorder %s148, %s150
      %p154 = scmp.eq.s32.totalorder %s15, 0
      %p155 = por %p153, %p154
      %p156 = scmp.ne.s32.totalorder %s148, %s150
      %p157 = scmp.eq.s32.totalorder %s20, 1
      %p158 = por %p156, %p157
      %p159 = scmp.ne.s32.totalorder %s150, %s151
      %p160 = scmp.eq.s32.totalorder %s20, 0
      %p161 = por %p159, %p160
      %p162 = scmp.ne.s32.totalorder %s150, %s151
      %p163 = scmp.eq.s32.totalorder %s21, 1
      %p164 = por %p162, %p163
      %p166 = scmp.ne.s32.totalorder %s151, %s165
      %p167 = scmp.eq.s32.totalorder %s21, 0
      %p168 = por %p166, %p167
      %s169 = ssub.s32 %s15, %s22
      %p170 = scmp.eq.s32.totalorder %s169, 0
      %s172 = sadd.s32 %s171, 1
      %s173 = scalar_select %p170, %s171, %s172
      %p176 = pneg %p170
      %p177 = scmp.eq.s32.totalorder %s15, 1
      %p178 = por %p176, %p177
      %p179 = scmp.ne.s32.totalorder %s171, %s174
      %p180 = scmp.eq.s32.totalorder %s15, 0
      %p181 = por %p179, %p180
      %p182 = scmp.ne.s32.totalorder %s171, %s174
      %p183 = scmp.eq.s32.totalorder %s20, 1
      %p184 = por %p182, %p183
      %p185 = scmp.ne.s32.totalorder %s174, %s175
      %p186 = scmp.eq.s32.totalorder %s20, 0
      %p187 = por %p185, %p186
      %p188 = scmp.ne.s32.totalorder %s174, %s175
      %p189 = scmp.eq.s32.totalorder %s21, 1
      %p190 = por %p188, %p189
      %p192 = scmp.ne.s32.totalorder %s175, %s191
      %p193 = scmp.eq.s32.totalorder %s21, 0
      %p194 = por %p192, %p193
      %p195 = scmp.le.s32.totalorder 1, %s15
      %p196 = scmp.lt.s32.totalorder %s15, 3
      %p197 = pnand %p195, %p196
      %p198 = pneg %p197
      // Predicated region
      $region9: #{tpu_custom_call.1} parent=5 // pred_check
        _
      $region10: #{tpu_custom_call.1} parent=5 // pred_check_branch
        %200 = sbr.rel (%p197) target = $region12
      $region11: #{tpu_custom_call.1} parent=5 // pred_region
        %s201 = ssub.s32 %s15, 1
        // Predicated region
        $region13: #{tpu_custom_call.1} parent=11 // pred_check
          %p202 = pneg %p140
        $region14: #{tpu_custom_call.1} parent=11 // pred_check_branch
          %204 = sbr.rel (%p202) target = $region16
        $region15: #{tpu_custom_call.1} parent=11 // pred_region
          _
        $region16: #{tpu_custom_call.1} parent=11 // pred_fallthru
          _
        // Predicated region
        $region17: #{tpu_custom_call.1} parent=11 // pred_check
          %p205 = pneg %p161
        $region18: #{tpu_custom_call.1} parent=11 // pred_check_branch
          %207 = sbr.rel (%p205) target = $region20
        $region19: #{tpu_custom_call.1} parent=11 // pred_region
          _
        $region20: #{tpu_custom_call.1} parent=11 // pred_fallthru
          _
      $region12: #{tpu_custom_call.1} parent=5 // pred_fallthru
        _
      %p208 = scmp.lt.s32.totalorder %s15, 2
      // Predicated region
      $region21: #{tpu_custom_call.1} parent=5 // pred_check
        %p209 = pneg %p208
      $region22: #{tpu_custom_call.1} parent=5 // pred_check_branch
        %211 = sbr.rel (%p209) target = $region24
      $region23: #{tpu_custom_call.1} parent=5 // pred_region
        // Predicated region
        $region25: #{tpu_custom_call.1} parent=23 // pred_check
          %p212 = pneg %p35
        $region26: #{tpu_custom_call.1} parent=23 // pred_check_branch
          %214 = sbr.rel (%p212) target = $region28
        $region27: #{tpu_custom_call.1} parent=23 // pred_region
          %p215 = scmp.lt.s32.totalorder %s15, 1
          %s216 = scalar_select %p215, %s15, 1
          %s217 = smul.addr %s216, 32
          %s218 = smul.addr %s217, 8
          %s219 = scalar_lea.vmem %s0, %s218
        $region28: #{tpu_custom_call.1} parent=23 // pred_fallthru
          _
        // Predicated region
        $region29: #{tpu_custom_call.1} parent=23 // pred_check
          %p220 = pneg %p61
        $region30: #{tpu_custom_call.1} parent=23 // pred_check_branch
          %222 = sbr.rel (%p220) target = $region32
        $region31: #{tpu_custom_call.1} parent=23 // pred_region
          %p223 = scmp.lt.s32.totalorder %s15, 1
          %s224 = scalar_select %p223, %s15, 1
          %s225 = smul.addr %s224, 8
          %s226 = smul.addr %s225, 8
          %s227 = scalar_lea.vmem %s1, %s226
        $region32: #{tpu_custom_call.1} parent=23 // pred_fallthru
          _
        // Predicated region
        $region33: #{tpu_custom_call.1} parent=23 // pred_check
          %p228 = pneg %p87
        $region34: #{tpu_custom_call.1} parent=23 // pred_check_branch
          %230 = sbr.rel (%p228) target = $region36
        $region35: #{tpu_custom_call.1} parent=23 // pred_region
          %p231 = scmp.lt.s32.totalorder %s15, 1
          %s232 = scalar_select %p231, %s15, 1
          %s233 = smul.addr %s232, 32
          %s234 = smul.addr %s233, 8
          %s235 = scalar_lea.vmem %s2, %s234
        $region36: #{tpu_custom_call.1} parent=23 // pred_fallthru
          _
        // Predicated region
        $region37: #{tpu_custom_call.1} parent=23 // pred_check
          %p236 = pneg %p113
        $region38: #{tpu_custom_call.1} parent=23 // pred_check_branch
          %238 = sbr.rel (%p236) target = $region40
        $region39: #{tpu_custom_call.1} parent=23 // pred_region
          %p239 = scmp.lt.s32.totalorder %s15, 1
          %s240 = scalar_select %p239, %s15, 1
          %s241 = smul.addr %s240, 32
          %s242 = smul.addr %s241, 8
          %s243 = scalar_lea.vmem %s3, %s242
        $region40: #{tpu_custom_call.1} parent=23 // pred_fallthru
          _
      $region24: #{tpu_custom_call.1} parent=5 // pred_fallthru
        _
      %p244 = scmp.le.s32.totalorder 1, %s15
      %p245 = scmp.lt.s32.totalorder %s15, 3
      %p246 = pnand %p244, %p245
      %p247 = pneg %p246
      // Predicated region
      $region41: #{tpu_custom_call.1} parent=5 // pred_check
        _
      $region42: #{tpu_custom_call.1} parent=5 // pred_check_branch
        %249 = sbr.rel (%p246) target = $region44
      $region43: #{tpu_custom_call.1} parent=5 // pred_region
        %s250 = ssub.s32 %s15, 1
        %p251 = scmp.lt.s32.totalorder %s20, 1
        %s252 = scalar_select %p251, %s20, 1
        %s253 = smul.addr %s252, 32
        %s254 = smul.addr %s253, 8
        %s255 = scalar_lea.vmem %s0, %s254
        %p256 = pneg %p41
        %p257 = pneg %p38
        %p258 = scmp.lt.s32.totalorder %s20, 1
        %s259 = scalar_select %p258, %s20, 1
        %s260 = smul.addr %s259, 8
        %s261 = smul.addr %s260, 8
        %s262 = scalar_lea.vmem %s1, %s261
        %p263 = pneg %p67
        %p264 = pneg %p64
        %p265 = scmp.lt.s32.totalorder %s20, 1
        %s266 = scalar_select %p265, %s20, 1
        %s267 = smul.addr %s266, 32
        %s268 = smul.addr %s267, 8
        %s269 = scalar_lea.vmem %s2, %s268
        %p270 = pneg %p93
        %p271 = pneg %p90
        %p272 = scmp.lt.s32.totalorder %s20, 1
        %s273 = scalar_select %p272, %s20, 1
        %s274 = smul.addr %s273, 32
        %s275 = smul.addr %s274, 8
        %s276 = scalar_lea.vmem %s3, %s275
        %p277 = pneg %p119
        %p278 = pneg %p116
        %p279 = pneg %p140
        %p280 = pneg %p137
        %p281 = pneg %p161
        %p282 = pneg %p158
        %p283 = pneg %p187
        %p284 = pneg %p184
        %s285 = sand.u32 %s174, 1
        %s286 = scalar_lea.sflag [#allocation3], %s285
        %s287 = sand.u32 %s174, 1
        %s288 = smul.addr %s287, 2
        %s289 = scalar_lea.vmem [#allocation2], %s288
        %p290 = scmp.lt.s32.totalorder %s20, 1
        %s291 = scalar_select %p290, %s20, 1
        %s292 = smul.addr %s291, 32
        %s293 = smul.addr %s292, 8
        %s294 = scalar_lea.vmem %s0, %s293
        %p295 = scmp.lt.s32.totalorder %s20, 1
        %s296 = scalar_select %p295, %s20, 1
        %s297 = smul.addr %s296, 8
        %s298 = smul.addr %s297, 8
        %s299 = scalar_lea.vmem %s1, %s298
        %p300 = scmp.lt.s32.totalorder %s20, 1
        %s301 = scalar_select %p300, %s20, 1
        %s302 = smul.addr %s301, 32
        %s303 = smul.addr %s302, 8
        %s304 = scalar_lea.vmem %s2, %s303
        %p305 = scmp.lt.s32.totalorder %s20, 1
        %s306 = scalar_select %p305, %s20, 1
        %s307 = smul.addr %s306, 32
        %s308 = smul.addr %s307, 8
        %s309 = scalar_lea.vmem %s3, %s308
        %v311 = vld [vmem:[%s294] sm:$0xff]
        %v312 = vld [vmem:[%s294 + $0x8] sm:$0xff]
        %v313 = vld [vmem:[%s294 + $0x10] sm:$0xff]
        %v314 = vld [vmem:[%s294 + $0x18] sm:$0xff]
        %v315 = vld [vmem:[%s294 + $0x20] sm:$0xff]
        %v316 = vld [vmem:[%s294 + $0x28] sm:$0xff]
        %v317 = vld [vmem:[%s294 + $0x30] sm:$0xff]
        %v318 = vld [vmem:[%s294 + $0x38] sm:$0xff]
        %v319 = vld [vmem:[%s294 + $0x40] sm:$0xff]
        %v320 = vld [vmem:[%s294 + $0x48] sm:$0xff]
        %v321 = vld [vmem:[%s294 + $0x50] sm:$0xff]
        %v322 = vld [vmem:[%s294 + $0x58] sm:$0xff]
        %v323 = vld [vmem:[%s294 + $0x60] sm:$0xff]
        %v324 = vld [vmem:[%s294 + $0x68] sm:$0xff]
        %v325 = vld [vmem:[%s294 + $0x70] sm:$0xff]
        %v326 = vld [vmem:[%s294 + $0x78] sm:$0xff]
        %v327 = vld [vmem:[%s294 + $0x80] sm:$0xff]
        %v328 = vld [vmem:[%s294 + $0x88] sm:$0xff]
        %v329 = vld [vmem:[%s294 + $0x90] sm:$0xff]
        %v330 = vld [vmem:[%s294 + $0x98] sm:$0xff]
        %v331 = vld [vmem:[%s294 + $0xa0] sm:$0xff]
        %v332 = vld [vmem:[%s294 + $0xa8] sm:$0xff]
        %v333 = vld [vmem:[%s294 + $0xb0] sm:$0xff]
        %v334 = vld [vmem:[%s294 + $0xb8] sm:$0xff]
        %v335 = vld [vmem:[%s294 + $0xc0] sm:$0xff]
        %v336 = vld [vmem:[%s294 + $0xc8] sm:$0xff]
        %v337 = vld [vmem:[%s294 + $0xd0] sm:$0xff]
        %v338 = vld [vmem:[%s294 + $0xd8] sm:$0xff]
        %v339 = vld [vmem:[%s294 + $0xe0] sm:$0xff]
        %v340 = vld [vmem:[%s294 + $0xe8] sm:$0xff]
        %v341 = vld [vmem:[%s294 + $0xf0] sm:$0xff]
        %v342 = vld [vmem:[%s294 + $0xf8] sm:$0xff]
        %v343 = vld [vmem:[%s299] sm:$0xff]
        %v344 = vld [vmem:[%s299 + $0x8] sm:$0xff]
        %v345 = vld [vmem:[%s299 + $0x10] sm:$0xff]
        %v346 = vld [vmem:[%s299 + $0x18] sm:$0xff]
        %v347 = vld [vmem:[%s299 + $0x20] sm:$0xff]
        %v348 = vld [vmem:[%s299 + $0x28] sm:$0xff]
        %v349 = vld [vmem:[%s299 + $0x30] sm:$0xff]
        %v350 = vld [vmem:[%s299 + $0x38] sm:$0xff]
        %v351 = vmul.f32 %v311, %v311
        %v352 = vmul.f32 %v312, %v312
        %v353 = vmul.f32 %v313, %v313
        %v354 = vmul.f32 %v314, %v314
        %v355 = vmul.f32 %v315, %v315
        %v356 = vmul.f32 %v316, %v316
        %v357 = vmul.f32 %v317, %v317
        %v358 = vmul.f32 %v318, %v318
        %v359 = vmul.f32 %v319, %v319
        %v360 = vmul.f32 %v320, %v320
        %v361 = vmul.f32 %v321, %v321
        %v362 = vmul.f32 %v322, %v322
        %v363 = vmul.f32 %v323, %v323
        %v364 = vmul.f32 %v324, %v324
        %v365 = vmul.f32 %v325, %v325
        %v366 = vmul.f32 %v326, %v326
        %v367 = vmul.f32 %v327, %v327
        %v368 = vmul.f32 %v328, %v328
        %v369 = vmul.f32 %v329, %v329
        %v370 = vmul.f32 %v330, %v330
        %v371 = vmul.f32 %v331, %v331
        %v372 = vmul.f32 %v332, %v332
        %v373 = vmul.f32 %v333, %v333
        %v374 = vmul.f32 %v334, %v334
        %v375 = vmul.f32 %v335, %v335
        %v376 = vmul.f32 %v336, %v336
        %v377 = vmul.f32 %v337, %v337
        %v378 = vmul.f32 %v338, %v338
        %v379 = vmul.f32 %v339, %v339
        %v380 = vmul.f32 %v340, %v340
        %v381 = vmul.f32 %v341, %v341
        %v382 = vmul.f32 %v342, %v342
        %vm383 = vcmask 261120
        %v384 = vsel %vm383, %v351, 0.0
        %385 = vadd.xlane.f32.xlu0 %v384
        %v386 = vpop.xlane.xlu0 %385
        %v387 = vsel %vm383, %v352, 0.0
        %388 = vadd.xlane.f32.xlu0 %v387
        %v389 = vpop.xlane.xlu0 %388
        %v390 = vsel %vm383, %v353, 0.0
        %391 = vadd.xlane.f32.xlu0 %v390
        %v392 = vpop.xlane.xlu0 %391
        %v393 = vsel %vm383, %v354, 0.0
        %394 = vadd.xlane.f32.xlu0 %v393
        %v395 = vpop.xlane.xlu0 %394
        %v396 = vsel %vm383, %v355, 0.0
        %397 = vadd.xlane.f32.xlu0 %v396
        %v398 = vpop.xlane.xlu0 %397
        %v399 = vsel %vm383, %v356, 0.0
        %400 = vadd.xlane.f32.xlu0 %v399
        %v401 = vpop.xlane.xlu0 %400
        %v402 = vsel %vm383, %v357, 0.0
        %403 = vadd.xlane.f32.xlu0 %v402
        %v404 = vpop.xlane.xlu0 %403
        %v405 = vsel %vm383, %v358, 0.0
        %406 = vadd.xlane.f32.xlu0 %v405
        %v407 = vpop.xlane.xlu0 %406
        %v408 = vsel %vm383, %v359, 0.0
        %409 = vadd.xlane.f32.xlu0 %v408
        %v410 = vpop.xlane.xlu0 %409
        %v411 = vsel %vm383, %v360, 0.0
        %412 = vadd.xlane.f32.xlu0 %v411
        %v413 = vpop.xlane.xlu0 %412
        %v414 = vsel %vm383, %v361, 0.0
        %415 = vadd.xlane.f32.xlu0 %v414
        %v416 = vpop.xlane.xlu0 %415
        %v417 = vsel %vm383, %v362, 0.0
        %418 = vadd.xlane.f32.xlu0 %v417
        %v419 = vpop.xlane.xlu0 %418
        %v420 = vsel %vm383, %v363, 0.0
        %421 = vadd.xlane.f32.xlu0 %v420
        %v422 = vpop.xlane.xlu0 %421
        %v423 = vsel %vm383, %v364, 0.0
        %424 = vadd.xlane.f32.xlu0 %v423
        %v425 = vpop.xlane.xlu0 %424
        %v426 = vsel %vm383, %v365, 0.0
        %427 = vadd.xlane.f32.xlu0 %v426
        %v428 = vpop.xlane.xlu0 %427
        %v429 = vsel %vm383, %v366, 0.0
        %430 = vadd.xlane.f32.xlu0 %v429
        %v431 = vpop.xlane.xlu0 %430
        %v432 = vsel %vm383, %v367, 0.0
        %433 = vadd.xlane.f32.xlu0 %v432
        %v434 = vpop.xlane.xlu0 %433
        %v435 = vsel %vm383, %v368, 0.0
        %436 = vadd.xlane.f32.xlu0 %v435
        %v437 = vpop.xlane.xlu0 %436
        %v438 = vsel %vm383, %v369, 0.0
        %439 = vadd.xlane.f32.xlu0 %v438
        %v440 = vpop.xlane.xlu0 %439
        %v441 = vsel %vm383, %v370, 0.0
        %442 = vadd.xlane.f32.xlu0 %v441
        %v443 = vpop.xlane.xlu0 %442
        %v444 = vsel %vm383, %v371, 0.0
        %445 = vadd.xlane.f32.xlu0 %v444
        %v446 = vpop.xlane.xlu0 %445
        %v447 = vsel %vm383, %v372, 0.0
        %448 = vadd.xlane.f32.xlu0 %v447
        %v449 = vpop.xlane.xlu0 %448
        %v450 = vsel %vm383, %v373, 0.0
        %451 = vadd.xlane.f32.xlu0 %v450
        %v452 = vpop.xlane.xlu0 %451
        %v453 = vsel %vm383, %v374, 0.0
        %454 = vadd.xlane.f32.xlu0 %v453
        %v455 = vpop.xlane.xlu0 %454
        %v456 = vsel %vm383, %v375, 0.0
        %457 = vadd.xlane.f32.xlu0 %v456
        %v458 = vpop.xlane.xlu0 %457
        %v459 = vsel %vm383, %v376, 0.0
        %460 = vadd.xlane.f32.xlu0 %v459
        %v461 = vpop.xlane.xlu0 %460
        %v462 = vsel %vm383, %v377, 0.0
        %463 = vadd.xlane.f32.xlu0 %v462
        %v464 = vpop.xlane.xlu0 %463
        %v465 = vsel %vm383, %v378, 0.0
        %466 = vadd.xlane.f32.xlu0 %v465
        %v467 = vpop.xlane.xlu0 %466
        %v468 = vsel %vm383, %v379, 0.0
        %469 = vadd.xlane.f32.xlu0 %v468
        %v470 = vpop.xlane.xlu0 %469
        %v471 = vsel %vm383, %v380, 0.0
        %472 = vadd.xlane.f32.xlu0 %v471
        %v473 = vpop.xlane.xlu0 %472
        %v474 = vsel %vm383, %v381, 0.0
        %475 = vadd.xlane.f32.xlu0 %v474
        %v476 = vpop.xlane.xlu0 %475
        %v477 = vsel %vm383, %v382, 0.0
        %478 = vadd.xlane.f32.xlu0 %v477
        %v479 = vpop.xlane.xlu0 %478
        %v480 = vrsqrt.pop %v386
        %v481 = vmul.f32 %v480, %v386
        %v482 = vmul.f32 %v481, %v480
        %v483 = vmul.f32 0.5, %v482
        %v484 = vsub.f32 1.5, %v483
        %v485 = vmul.f32 %v480, %v484
        %v486 = vmul.f32 %v386, %v485
        %vm487 = vcmp.eq.f32.partialorder %v386, inf
        %v488 = vsel %vm487, %v386, %v486
        %vm489 = vcmp.eq.f32.partialorder %v386, 0.0
        %v490 = vand.u32 %v386, 2147483648
        %v491 = vsel %vm489, %v490, %v488
        %v492 = vrsqrt.pop %v389
        %v493 = vmul.f32 %v492, %v389
        %v494 = vmul.f32 %v493, %v492
        %v495 = vmul.f32 0.5, %v494
        %v496 = vsub.f32 1.5, %v495
        %v497 = vmul.f32 %v492, %v496
        %v498 = vmul.f32 %v389, %v497
        %vm499 = vcmp.eq.f32.partialorder %v389, inf
        %v500 = vsel %vm499, %v389, %v498
        %vm501 = vcmp.eq.f32.partialorder %v389, 0.0
        %v502 = vand.u32 %v389, 2147483648
        %v503 = vsel %vm501, %v502, %v500
        %v504 = vrsqrt.pop %v392
        %v505 = vmul.f32 %v504, %v392
        %v506 = vmul.f32 %v505, %v504
        %v507 = vmul.f32 0.5, %v506
        %v508 = vsub.f32 1.5, %v507
        %v509 = vmul.f32 %v504, %v508
        %v510 = vmul.f32 %v392, %v509
        %vm511 = vcmp.eq.f32.partialorder %v392, inf
        %v512 = vsel %vm511, %v392, %v510
        %vm513 = vcmp.eq.f32.partialorder %v392, 0.0
        %v514 = vand.u32 %v392, 2147483648
        %v515 = vsel %vm513, %v514, %v512
        %v516 = vrsqrt.pop %v395
        %v517 = vmul.f32 %v516, %v395
        %v518 = vmul.f32 %v517, %v516
        %v519 = vmul.f32 0.5, %v518
        %v520 = vsub.f32 1.5, %v519
        %v521 = vmul.f32 %v516, %v520
        %v522 = vmul.f32 %v395, %v521
        %vm523 = vcmp.eq.f32.partialorder %v395, inf
        %v524 = vsel %vm523, %v395, %v522
        %vm525 = vcmp.eq.f32.partialorder %v395, 0.0
        %v526 = vand.u32 %v395, 2147483648
        %v527 = vsel %vm525, %v526, %v524
        %v528 = vrsqrt.pop %v398
        %v529 = vmul.f32 %v528, %v398
        %v530 = vmul.f32 %v529, %v528
        %v531 = vmul.f32 0.5, %v530
        %v532 = vsub.f32 1.5, %v531
        %v533 = vmul.f32 %v528, %v532
        %v534 = vmul.f32 %v398, %v533
        %vm535 = vcmp.eq.f32.partialorder %v398, inf
        %v536 = vsel %vm535, %v398, %v534
        %vm537 = vcmp.eq.f32.partialorder %v398, 0.0
        %v538 = vand.u32 %v398, 2147483648
        %v539 = vsel %vm537, %v538, %v536
        %v540 = vrsqrt.pop %v401
        %v541 = vmul.f32 %v540, %v401
        %v542 = vmul.f32 %v541, %v540
        %v543 = vmul.f32 0.5, %v542
        %v544 = vsub.f32 1.5, %v543
        %v545 = vmul.f32 %v540, %v544
        %v546 = vmul.f32 %v401, %v545
        %vm547 = vcmp.eq.f32.partialorder %v401, inf
        %v548 = vsel %vm547, %v401, %v546
        %vm549 = vcmp.eq.f32.partialorder %v401, 0.0
        %v550 = vand.u32 %v401, 2147483648
        %v551 = vsel %vm549, %v550, %v548
        %v552 = vrsqrt.pop %v404
        %v553 = vmul.f32 %v552, %v404
        %v554 = vmul.f32 %v553, %v552
        %v555 = vmul.f32 0.5, %v554
        %v556 = vsub.f32 1.5, %v555
        %v557 = vmul.f32 %v552, %v556
        %v558 = vmul.f32 %v404, %v557
        %vm559 = vcmp.eq.f32.partialorder %v404, inf
        %v560 = vsel %vm559, %v404, %v558
        %vm561 = vcmp.eq.f32.partialorder %v404, 0.0
        %v562 = vand.u32 %v404, 2147483648
        %v563 = vsel %vm561, %v562, %v560
        %v564 = vrsqrt.pop %v407
        %v565 = vmul.f32 %v564, %v407
        %v566 = vmul.f32 %v565, %v564
        %v567 = vmul.f32 0.5, %v566
        %v568 = vsub.f32 1.5, %v567
        %v569 = vmul.f32 %v564, %v568
        %v570 = vmul.f32 %v407, %v569
        %vm571 = vcmp.eq.f32.partialorder %v407, inf
        %v572 = vsel %vm571, %v407, %v570
        %vm573 = vcmp.eq.f32.partialorder %v407, 0.0
        %v574 = vand.u32 %v407, 2147483648
        %v575 = vsel %vm573, %v574, %v572
        %v576 = vrsqrt.pop %v410
        %v577 = vmul.f32 %v576, %v410
        %v578 = vmul.f32 %v577, %v576
        %v579 = vmul.f32 0.5, %v578
        %v580 = vsub.f32 1.5, %v579
        %v581 = vmul.f32 %v576, %v580
        %v582 = vmul.f32 %v410, %v581
        %vm583 = vcmp.eq.f32.partialorder %v410, inf
        %v584 = vsel %vm583, %v410, %v582
        %vm585 = vcmp.eq.f32.partialorder %v410, 0.0
        %v586 = vand.u32 %v410, 2147483648
        %v587 = vsel %vm585, %v586, %v584
        %v588 = vrsqrt.pop %v413
        %v589 = vmul.f32 %v588, %v413
        %v590 = vmul.f32 %v589, %v588
        %v591 = vmul.f32 0.5, %v590
        %v592 = vsub.f32 1.5, %v591
        %v593 = vmul.f32 %v588, %v592
        %v594 = vmul.f32 %v413, %v593
        %vm595 = vcmp.eq.f32.partialorder %v413, inf
        %v596 = vsel %vm595, %v413, %v594
        %vm597 = vcmp.eq.f32.partialorder %v413, 0.0
        %v598 = vand.u32 %v413, 2147483648
        %v599 = vsel %vm597, %v598, %v596
        %v600 = vrsqrt.pop %v416
        %v601 = vmul.f32 %v600, %v416
        %v602 = vmul.f32 %v601, %v600
        %v603 = vmul.f32 0.5, %v602
        %v604 = vsub.f32 1.5, %v603
        %v605 = vmul.f32 %v600, %v604
        %v606 = vmul.f32 %v416, %v605
        %vm607 = vcmp.eq.f32.partialorder %v416, inf
        %v608 = vsel %vm607, %v416, %v606
        %vm609 = vcmp.eq.f32.partialorder %v416, 0.0
        %v610 = vand.u32 %v416, 2147483648
        %v611 = vsel %vm609, %v610, %v608
        %v612 = vrsqrt.pop %v419
        %v613 = vmul.f32 %v612, %v419
        %v614 = vmul.f32 %v613, %v612
        %v615 = vmul.f32 0.5, %v614
        %v616 = vsub.f32 1.5, %v615
        %v617 = vmul.f32 %v612, %v616
        %v618 = vmul.f32 %v419, %v617
        %vm619 = vcmp.eq.f32.partialorder %v419, inf
        %v620 = vsel %vm619, %v419, %v618
        %vm621 = vcmp.eq.f32.partialorder %v419, 0.0
        %v622 = vand.u32 %v419, 2147483648
        %v623 = vsel %vm621, %v622, %v620
        %v624 = vrsqrt.pop %v422
        %v625 = vmul.f32 %v624, %v422
        %v626 = vmul.f32 %v625, %v624
        %v627 = vmul.f32 0.5, %v626
        %v628 = vsub.f32 1.5, %v627
        %v629 = vmul.f32 %v624, %v628
        %v630 = vmul.f32 %v422, %v629
        %vm631 = vcmp.eq.f32.partialorder %v422, inf
        %v632 = vsel %vm631, %v422, %v630
        %vm633 = vcmp.eq.f32.partialorder %v422, 0.0
        %v634 = vand.u32 %v422, 2147483648
        %v635 = vsel %vm633, %v634, %v632
        %v636 = vrsqrt.pop %v425
        %v637 = vmul.f32 %v636, %v425
        %v638 = vmul.f32 %v637, %v636
        %v639 = vmul.f32 0.5, %v638
        %v640 = vsub.f32 1.5, %v639
        %v641 = vmul.f32 %v636, %v640
        %v642 = vmul.f32 %v425, %v641
        %vm643 = vcmp.eq.f32.partialorder %v425, inf
        %v644 = vsel %vm643, %v425, %v642
        %vm645 = vcmp.eq.f32.partialorder %v425, 0.0
        %v646 = vand.u32 %v425, 2147483648
        %v647 = vsel %vm645, %v646, %v644
        %v648 = vrsqrt.pop %v428
        %v649 = vmul.f32 %v648, %v428
        %v650 = vmul.f32 %v649, %v648
        %v651 = vmul.f32 0.5, %v650
        %v652 = vsub.f32 1.5, %v651
        %v653 = vmul.f32 %v648, %v652
        %v654 = vmul.f32 %v428, %v653
        %vm655 = vcmp.eq.f32.partialorder %v428, inf
        %v656 = vsel %vm655, %v428, %v654
        %vm657 = vcmp.eq.f32.partialorder %v428, 0.0
        %v658 = vand.u32 %v428, 2147483648
        %v659 = vsel %vm657, %v658, %v656
        %v660 = vrsqrt.pop %v431
        %v661 = vmul.f32 %v660, %v431
        %v662 = vmul.f32 %v661, %v660
        %v663 = vmul.f32 0.5, %v662
        %v664 = vsub.f32 1.5, %v663
        %v665 = vmul.f32 %v660, %v664
        %v666 = vmul.f32 %v431, %v665
        %vm667 = vcmp.eq.f32.partialorder %v431, inf
        %v668 = vsel %vm667, %v431, %v666
        %vm669 = vcmp.eq.f32.partialorder %v431, 0.0
        %v670 = vand.u32 %v431, 2147483648
        %v671 = vsel %vm669, %v670, %v668
        %v672 = vrsqrt.pop %v434
        %v673 = vmul.f32 %v672, %v434
        %v674 = vmul.f32 %v673, %v672
        %v675 = vmul.f32 0.5, %v674
        %v676 = vsub.f32 1.5, %v675
        %v677 = vmul.f32 %v672, %v676
        %v678 = vmul.f32 %v434, %v677
        %vm679 = vcmp.eq.f32.partialorder %v434, inf
        %v680 = vsel %vm679, %v434, %v678
        %vm681 = vcmp.eq.f32.partialorder %v434, 0.0
        %v682 = vand.u32 %v434, 2147483648
        %v683 = vsel %vm681, %v682, %v680
        %v684 = vrsqrt.pop %v437
        %v685 = vmul.f32 %v684, %v437
        %v686 = vmul.f32 %v685, %v684
        %v687 = vmul.f32 0.5, %v686
        %v688 = vsub.f32 1.5, %v687
        %v689 = vmul.f32 %v684, %v688
        %v690 = vmul.f32 %v437, %v689
        %vm691 = vcmp.eq.f32.partialorder %v437, inf
        %v692 = vsel %vm691, %v437, %v690
        %vm693 = vcmp.eq.f32.partialorder %v437, 0.0
        %v694 = vand.u32 %v437, 2147483648
        %v695 = vsel %vm693, %v694, %v692
        %v696 = vrsqrt.pop %v440
        %v697 = vmul.f32 %v696, %v440
        %v698 = vmul.f32 %v697, %v696
        %v699 = vmul.f32 0.5, %v698
        %v700 = vsub.f32 1.5, %v699
        %v701 = vmul.f32 %v696, %v700
        %v702 = vmul.f32 %v440, %v701
        %vm703 = vcmp.eq.f32.partialorder %v440, inf
        %v704 = vsel %vm703, %v440, %v702
        %vm705 = vcmp.eq.f32.partialorder %v440, 0.0
        %v706 = vand.u32 %v440, 2147483648
        %v707 = vsel %vm705, %v706, %v704
        %v708 = vrsqrt.pop %v443
        %v709 = vmul.f32 %v708, %v443
        %v710 = vmul.f32 %v709, %v708
        %v711 = vmul.f32 0.5, %v710
        %v712 = vsub.f32 1.5, %v711
        %v713 = vmul.f32 %v708, %v712
        %v714 = vmul.f32 %v443, %v713
        %vm715 = vcmp.eq.f32.partialorder %v443, inf
        %v716 = vsel %vm715, %v443, %v714
        %vm717 = vcmp.eq.f32.partialorder %v443, 0.0
        %v718 = vand.u32 %v443, 2147483648
        %v719 = vsel %vm717, %v718, %v716
        %v720 = vrsqrt.pop %v446
        %v721 = vmul.f32 %v720, %v446
        %v722 = vmul.f32 %v721, %v720
        %v723 = vmul.f32 0.5, %v722
        %v724 = vsub.f32 1.5, %v723
        %v725 = vmul.f32 %v720, %v724
        %v726 = vmul.f32 %v446, %v725
        %vm727 = vcmp.eq.f32.partialorder %v446, inf
        %v728 = vsel %vm727, %v446, %v726
        %vm729 = vcmp.eq.f32.partialorder %v446, 0.0
        %v730 = vand.u32 %v446, 2147483648
        %v731 = vsel %vm729, %v730, %v728
        %v732 = vrsqrt.pop %v449
        %v733 = vmul.f32 %v732, %v449
        %v734 = vmul.f32 %v733, %v732
        %v735 = vmul.f32 0.5, %v734
        %v736 = vsub.f32 1.5, %v735
        %v737 = vmul.f32 %v732, %v736
        %v738 = vmul.f32 %v449, %v737
        %vm739 = vcmp.eq.f32.partialorder %v449, inf
        %v740 = vsel %vm739, %v449, %v738
        %vm741 = vcmp.eq.f32.partialorder %v449, 0.0
        %v742 = vand.u32 %v449, 2147483648
        %v743 = vsel %vm741, %v742, %v740
        %v744 = vrsqrt.pop %v452
        %v745 = vmul.f32 %v744, %v452
        %v746 = vmul.f32 %v745, %v744
        %v747 = vmul.f32 0.5, %v746
        %v748 = vsub.f32 1.5, %v747
        %v749 = vmul.f32 %v744, %v748
        %v750 = vmul.f32 %v452, %v749
        %vm751 = vcmp.eq.f32.partialorder %v452, inf
        %v752 = vsel %vm751, %v452, %v750
        %vm753 = vcmp.eq.f32.partialorder %v452, 0.0
        %v754 = vand.u32 %v452, 2147483648
        %v755 = vsel %vm753, %v754, %v752
        %v756 = vrsqrt.pop %v455
        %v757 = vmul.f32 %v756, %v455
        %v758 = vmul.f32 %v757, %v756
        %v759 = vmul.f32 0.5, %v758
        %v760 = vsub.f32 1.5, %v759
        %v761 = vmul.f32 %v756, %v760
        %v762 = vmul.f32 %v455, %v761
        %vm763 = vcmp.eq.f32.partialorder %v455, inf
        %v764 = vsel %vm763, %v455, %v762
        %vm765 = vcmp.eq.f32.partialorder %v455, 0.0
        %v766 = vand.u32 %v455, 2147483648
        %v767 = vsel %vm765, %v766, %v764
        %v768 = vrsqrt.pop %v458
        %v769 = vmul.f32 %v768, %v458
        %v770 = vmul.f32 %v769, %v768
        %v771 = vmul.f32 0.5, %v770
        %v772 = vsub.f32 1.5, %v771
        %v773 = vmul.f32 %v768, %v772
        %v774 = vmul.f32 %v458, %v773
        %vm775 = vcmp.eq.f32.partialorder %v458, inf
        %v776 = vsel %vm775, %v458, %v774
        %vm777 = vcmp.eq.f32.partialorder %v458, 0.0
        %v778 = vand.u32 %v458, 2147483648
        %v779 = vsel %vm777, %v778, %v776
        %v780 = vrsqrt.pop %v461
        %v781 = vmul.f32 %v780, %v461
        %v782 = vmul.f32 %v781, %v780
        %v783 = vmul.f32 0.5, %v782
        %v784 = vsub.f32 1.5, %v783
        %v785 = vmul.f32 %v780, %v784
        %v786 = vmul.f32 %v461, %v785
        %vm787 = vcmp.eq.f32.partialorder %v461, inf
        %v788 = vsel %vm787, %v461, %v786
        %vm789 = vcmp.eq.f32.partialorder %v461, 0.0
        %v790 = vand.u32 %v461, 2147483648
        %v791 = vsel %vm789, %v790, %v788
        %v792 = vrsqrt.pop %v464
        %v793 = vmul.f32 %v792, %v464
        %v794 = vmul.f32 %v793, %v792
        %v795 = vmul.f32 0.5, %v794
        %v796 = vsub.f32 1.5, %v795
        %v797 = vmul.f32 %v792, %v796
        %v798 = vmul.f32 %v464, %v797
        %vm799 = vcmp.eq.f32.partialorder %v464, inf
        %v800 = vsel %vm799, %v464, %v798
        %vm801 = vcmp.eq.f32.partialorder %v464, 0.0
        %v802 = vand.u32 %v464, 2147483648
        %v803 = vsel %vm801, %v802, %v800
        %v804 = vrsqrt.pop %v467
        %v805 = vmul.f32 %v804, %v467
        %v806 = vmul.f32 %v805, %v804
        %v807 = vmul.f32 0.5, %v806
        %v808 = vsub.f32 1.5, %v807
        %v809 = vmul.f32 %v804, %v808
        %v810 = vmul.f32 %v467, %v809
        %vm811 = vcmp.eq.f32.partialorder %v467, inf
        %v812 = vsel %vm811, %v467, %v810
        %vm813 = vcmp.eq.f32.partialorder %v467, 0.0
        %v814 = vand.u32 %v467, 2147483648
        %v815 = vsel %vm813, %v814, %v812
        %v816 = vrsqrt.pop %v470
        %v817 = vmul.f32 %v816, %v470
        %v818 = vmul.f32 %v817, %v816
        %v819 = vmul.f32 0.5, %v818
        %v820 = vsub.f32 1.5, %v819
        %v821 = vmul.f32 %v816, %v820
        %v822 = vmul.f32 %v470, %v821
        %vm823 = vcmp.eq.f32.partialorder %v470, inf
        %v824 = vsel %vm823, %v470, %v822
        %vm825 = vcmp.eq.f32.partialorder %v470, 0.0
        %v826 = vand.u32 %v470, 2147483648
        %v827 = vsel %vm825, %v826, %v824
        %v828 = vrsqrt.pop %v473
        %v829 = vmul.f32 %v828, %v473
        %v830 = vmul.f32 %v829, %v828
        %v831 = vmul.f32 0.5, %v830
        %v832 = vsub.f32 1.5, %v831
        %v833 = vmul.f32 %v828, %v832
        %v834 = vmul.f32 %v473, %v833
        %vm835 = vcmp.eq.f32.partialorder %v473, inf
        %v836 = vsel %vm835, %v473, %v834
        %vm837 = vcmp.eq.f32.partialorder %v473, 0.0
        %v838 = vand.u32 %v473, 2147483648
        %v839 = vsel %vm837, %v838, %v836
        %v840 = vrsqrt.pop %v476
        %v841 = vmul.f32 %v840, %v476
        %v842 = vmul.f32 %v841, %v840
        %v843 = vmul.f32 0.5, %v842
        %v844 = vsub.f32 1.5, %v843
        %v845 = vmul.f32 %v840, %v844
        %v846 = vmul.f32 %v476, %v845
        %vm847 = vcmp.eq.f32.partialorder %v476, inf
        %v848 = vsel %vm847, %v476, %v846
        %vm849 = vcmp.eq.f32.partialorder %v476, 0.0
        %v850 = vand.u32 %v476, 2147483648
        %v851 = vsel %vm849, %v850, %v848
        %v852 = vrsqrt.pop %v479
        %v853 = vmul.f32 %v852, %v479
        %v854 = vmul.f32 %v853, %v852
        %v855 = vmul.f32 0.5, %v854
        %v856 = vsub.f32 1.5, %v855
        %v857 = vmul.f32 %v852, %v856
        %v858 = vmul.f32 %v479, %v857
        %vm859 = vcmp.eq.f32.partialorder %v479, inf
        %v860 = vsel %vm859, %v479, %v858
        %vm861 = vcmp.eq.f32.partialorder %v479, 0.0
        %v862 = vand.u32 %v479, 2147483648
        %v863 = vsel %vm861, %v862, %v860
        %v864 = vmax.f32 %v491, 1e-12
        %v865 = vmax.f32 %v503, 1e-12
        %v866 = vmax.f32 %v515, 1e-12
        %v867 = vmax.f32 %v527, 1e-12
        %v868 = vmax.f32 %v539, 1e-12
        %v869 = vmax.f32 %v551, 1e-12
        %v870 = vmax.f32 %v563, 1e-12
        %v871 = vmax.f32 %v575, 1e-12
        %v872 = vmax.f32 %v587, 1e-12
        %v873 = vmax.f32 %v599, 1e-12
        %v874 = vmax.f32 %v611, 1e-12
        %v875 = vmax.f32 %v623, 1e-12
        %v876 = vmax.f32 %v635, 1e-12
        %v877 = vmax.f32 %v647, 1e-12
        %v878 = vmax.f32 %v659, 1e-12
        %v879 = vmax.f32 %v671, 1e-12
        %v880 = vmax.f32 %v683, 1e-12
        %v881 = vmax.f32 %v695, 1e-12
        %v882 = vmax.f32 %v707, 1e-12
        %v883 = vmax.f32 %v719, 1e-12
        %v884 = vmax.f32 %v731, 1e-12
        %v885 = vmax.f32 %v743, 1e-12
        %v886 = vmax.f32 %v755, 1e-12
        %v887 = vmax.f32 %v767, 1e-12
        %v888 = vmax.f32 %v779, 1e-12
        %v889 = vmax.f32 %v791, 1e-12
        %v890 = vmax.f32 %v803, 1e-12
        %v891 = vmax.f32 %v815, 1e-12
        %v892 = vmax.f32 %v827, 1e-12
        %v893 = vmax.f32 %v839, 1e-12
        %v894 = vmax.f32 %v851, 1e-12
        %v895 = vmax.f32 %v863, 1e-12
        %v896 = vrcp.pop %v864
        %v897 = vrcp.pop %v865
        %v898 = vrcp.pop %v866
        %v899 = vrcp.pop %v867
        %v900 = vrcp.pop %v868
        %v901 = vrcp.pop %v869
        %v902 = vrcp.pop %v870
        %v903 = vrcp.pop %v871
        %v904 = vrcp.pop %v872
        %v905 = vrcp.pop %v873
        %v906 = vrcp.pop %v874
        %v907 = vrcp.pop %v875
        %v908 = vrcp.pop %v876
        %v909 = vrcp.pop %v877
        %v910 = vrcp.pop %v878
        %v911 = vrcp.pop %v879
        %v912 = vrcp.pop %v880
        %v913 = vrcp.pop %v881
        %v914 = vrcp.pop %v882
        %v915 = vrcp.pop %v883
        %v916 = vrcp.pop %v884
        %v917 = vrcp.pop %v885
        %v918 = vrcp.pop %v886
        %v919 = vrcp.pop %v887
        %v920 = vrcp.pop %v888
        %v921 = vrcp.pop %v889
        %v922 = vrcp.pop %v890
        %v923 = vrcp.pop %v891
        %v924 = vrcp.pop %v892
        %v925 = vrcp.pop %v893
        %v926 = vrcp.pop %v894
        %v927 = vrcp.pop %v895
        %v928 = vmul.f32 %v343, %v343
        %v929 = vmul.f32 %v344, %v344
        %v930 = vmul.f32 %v345, %v345
        %v931 = vmul.f32 %v346, %v346
        %v932 = vmul.f32 %v347, %v347
        %v933 = vmul.f32 %v348, %v348
        %v934 = vmul.f32 %v349, %v349
        %v935 = vmul.f32 %v350, %v350
        %v936 = vadd.f32 %v928, %v930
        %v937 = vadd.f32 %v936, %v932
        %v938 = vadd.f32 %v937, %v934
        %v939 = vrot.slane %v938, 4
        %v940 = vadd.f32 %v938, %v939
        %v941 = vrot.slane %v940, 2
        %v942 = vadd.f32 %v940, %v941
        %v943 = vrot.slane %v942, 1
        %v944 = vadd.f32 %v942, %v943
        %v945 = vadd.f32 %v929, %v931
        %v946 = vadd.f32 %v945, %v933
        %v947 = vadd.f32 %v946, %v935
        %v948 = vrot.slane %v947, 4
        %v949 = vadd.f32 %v947, %v948
        %v950 = vrot.slane %v949, 2
        %v951 = vadd.f32 %v949, %v950
        %v952 = vrot.slane %v951, 1
        %v953 = vadd.f32 %v951, %v952
        %v954 = vrsqrt.pop %v944
        %v955 = vmul.f32 %v954, %v944
        %v956 = vmul.f32 %v955, %v954
        %v957 = vmul.f32 0.5, %v956
        %v958 = vsub.f32 1.5, %v957
        %v959 = vmul.f32 %v954, %v958
        %v960 = vmul.f32 %v944, %v959
        %vm961 = vcmp.eq.f32.partialorder %v944, inf
        %v962 = vsel %vm961, %v944, %v960
        %vm963 = vcmp.eq.f32.partialorder %v944, 0.0
        %v964 = vand.u32 %v944, 2147483648
        %v965 = vsel %vm963, %v964, %v962
        %v966 = vrsqrt.pop %v953
        %v967 = vmul.f32 %v966, %v953
        %v968 = vmul.f32 %v967, %v966
        %v969 = vmul.f32 0.5, %v968
        %v970 = vsub.f32 1.5, %v969
        %v971 = vmul.f32 %v966, %v970
        %v972 = vmul.f32 %v953, %v971
        %vm973 = vcmp.eq.f32.partialorder %v953, inf
        %v974 = vsel %vm973, %v953, %v972
        %vm975 = vcmp.eq.f32.partialorder %v953, 0.0
        %v976 = vand.u32 %v953, 2147483648
        %v977 = vsel %vm975, %v976, %v974
        %v978 = vmax.f32 %v965, 1e-12
        %v979 = vmax.f32 %v977, 1e-12
        %v980 = vrcp.pop %v978
        %v981 = vrcp.pop %v979
        %v982 = vmul.f32 %v311, %v896
        %v983 = vmul.f32 %v312, %v897
        %v984 = vmul.f32 %v313, %v898
        %v985 = vmul.f32 %v314, %v899
        %v986 = vmul.f32 %v315, %v900
        %v987 = vmul.f32 %v316, %v901
        %v988 = vmul.f32 %v317, %v902
        %v989 = vmul.f32 %v318, %v903
        %v990 = vmul.f32 %v319, %v904
        %v991 = vmul.f32 %v320, %v905
        %v992 = vmul.f32 %v321, %v906
        %v993 = vmul.f32 %v322, %v907
        %v994 = vmul.f32 %v323, %v908
        %v995 = vmul.f32 %v324, %v909
        %v996 = vmul.f32 %v325, %v910
        %v997 = vmul.f32 %v326, %v911
        %v998 = vmul.f32 %v327, %v912
        %v999 = vmul.f32 %v328, %v913
        %v1000 = vmul.f32 %v329, %v914
        %v1001 = vmul.f32 %v330, %v915
        %v1002 = vmul.f32 %v331, %v916
        %v1003 = vmul.f32 %v332, %v917
        %v1004 = vmul.f32 %v333, %v918
        %v1005 = vmul.f32 %v334, %v919
        %v1006 = vmul.f32 %v335, %v920
        %v1007 = vmul.f32 %v336, %v921
        %v1008 = vmul.f32 %v337, %v922
        %v1009 = vmul.f32 %v338, %v923
        %v1010 = vmul.f32 %v339, %v924
        %v1011 = vmul.f32 %v340, %v925
        %v1012 = vmul.f32 %v341, %v926
        %v1013 = vmul.f32 %v342, %v927
        %v1014 = vpack.c.bf16 %v983, %v982
        %v1015 = vpack.c.bf16 %v985, %v984
        %v1016 = vpack.c.bf16 %v987, %v986
        %v1017 = vpack.c.bf16 %v989, %v988
        %v1018 = vpack.c.bf16 %v991, %v990
        %v1019 = vpack.c.bf16 %v993, %v992
        %v1020 = vpack.c.bf16 %v995, %v994
        %v1021 = vpack.c.bf16 %v997, %v996
        %v1022 = vpack.c.bf16 %v999, %v998
        %v1023 = vpack.c.bf16 %v1001, %v1000
        %v1024 = vpack.c.bf16 %v1003, %v1002
        %v1025 = vpack.c.bf16 %v1005, %v1004
        %v1026 = vpack.c.bf16 %v1007, %v1006
        %v1027 = vpack.c.bf16 %v1009, %v1008
        %v1028 = vpack.c.bf16 %v1011, %v1010
        %v1029 = vpack.c.bf16 %v1013, %v1012
        %v1030 = vmul.f32 %v343, %v980
        %v1031 = vmul.f32 %v344, %v981
        %v1032 = vmul.f32 %v345, %v980
        %v1033 = vmul.f32 %v346, %v981
        %v1034 = vmul.f32 %v347, %v980
        %v1035 = vmul.f32 %v348, %v981
        %v1036 = vmul.f32 %v349, %v980
        %v1037 = vmul.f32 %v350, %v981
        %v1038 = vpack.c.bf16 %v1032, %v1030
        %v1039 = vpack.c.bf16 %v1033, %v1031
        %v1040 = vpack.c.bf16 %v1036, %v1034
        %v1041 = vpack.c.bf16 %v1037, %v1035
        %v1043 = vsel %vm383, %v1014, 0
        %v1046 = vsel %vm383, %v1015, 0
        %v1049 = vsel %vm383, %v1016, 0
        %v1052 = vsel %vm383, %v1017, 0
        %v1055 = vsel %vm383, %v1018, 0
        %v1058 = vsel %vm383, %v1019, 0
        %v1061 = vsel %vm383, %v1020, 0
        %v1064 = vsel %vm383, %v1021, 0
        %v1067 = vsel %vm383, %v1022, 0
        %v1070 = vsel %vm383, %v1023, 0
        %v1073 = vsel %vm383, %v1024, 0
        %v1076 = vsel %vm383, %v1025, 0
        %v1079 = vsel %vm383, %v1026, 0
        %v1082 = vsel %vm383, %v1027, 0
        %v1085 = vsel %vm383, %v1028, 0
        %v1088 = vsel %vm383, %v1029, 0
        %1090 = vmatpush.bf16.msra.mxu0 0
        %1091 = vmatpush.bf16.msra.mxu0 0
        %1092 = vmatpush.bf16.msra.mxu0 0
        %1093 = vmatpush.bf16.msra.mxu0 0
        %1094 = vmatpush.bf16.msra.mxu0 0
        %1095 = vmatpush.bf16.msra.mxu0 0
        %1096 = vmatpush.bf16.msra.mxu0 %v1040
        %1097 = vmatpush.bf16.msra.mxu0 %v1038
        %1098 = vmatmul.bf16.gmra.mxu0 %v1043
        %v1099 = vpop.f32.mrf.mxu0
        %v1100 = vadd.f32 0.0, %v1099
        %v1101 = vpop.f32.mrf.mxu0
        %v1102 = vadd.f32 0.0, %v1101
        %1103 = vmatmul.bf16.gmra.mxu0 %v1046
        %v1104 = vpop.f32.mrf.mxu0
        %v1105 = vadd.f32 0.0, %v1104
        %v1106 = vpop.f32.mrf.mxu0
        %v1107 = vadd.f32 0.0, %v1106
        %1108 = vmatmul.bf16.gmra.mxu0 %v1049
        %v1109 = vpop.f32.mrf.mxu0
        %v1110 = vadd.f32 0.0, %v1109
        %v1111 = vpop.f32.mrf.mxu0
        %v1112 = vadd.f32 0.0, %v1111
        %1113 = vmatmul.bf16.gmra.mxu0 %v1052
        %v1114 = vpop.f32.mrf.mxu0
        %v1115 = vadd.f32 0.0, %v1114
        %v1116 = vpop.f32.mrf.mxu0
        %v1117 = vadd.f32 0.0, %v1116
        %1118 = vmatmul.bf16.gmra.mxu0 %v1055
        %v1119 = vpop.f32.mrf.mxu0
        %v1120 = vadd.f32 0.0, %v1119
        %v1121 = vpop.f32.mrf.mxu0
        %v1122 = vadd.f32 0.0, %v1121
        %1123 = vmatmul.bf16.gmra.mxu0 %v1058
        %v1124 = vpop.f32.mrf.mxu0
        %v1125 = vadd.f32 0.0, %v1124
        %v1126 = vpop.f32.mrf.mxu0
        %v1127 = vadd.f32 0.0, %v1126
        %1128 = vmatmul.bf16.gmra.mxu0 %v1061
        %v1129 = vpop.f32.mrf.mxu0
        %v1130 = vadd.f32 0.0, %v1129
        %v1131 = vpop.f32.mrf.mxu0
        %v1132 = vadd.f32 0.0, %v1131
        %1133 = vmatmul.bf16.gmra.mxu0 %v1064
        %v1134 = vpop.f32.mrf.mxu0
        %v1135 = vadd.f32 0.0, %v1134
        %v1136 = vpop.f32.mrf.mxu0
        %v1137 = vadd.f32 0.0, %v1136
        %1138 = vmatmul.bf16.gmra.mxu0 %v1067
        %v1139 = vpop.f32.mrf.mxu0
        %v1140 = vadd.f32 0.0, %v1139
        %v1141 = vpop.f32.mrf.mxu0
        %v1142 = vadd.f32 0.0, %v1141
        %1143 = vmatmul.bf16.gmra.mxu0 %v1070
        %v1144 = vpop.f32.mrf.mxu0
        %v1145 = vadd.f32 0.0, %v1144
        %v1146 = vpop.f32.mrf.mxu0
        %v1147 = vadd.f32 0.0, %v1146
        %1148 = vmatmul.bf16.gmra.mxu0 %v1073
        %v1149 = vpop.f32.mrf.mxu0
        %v1150 = vadd.f32 0.0, %v1149
        %v1151 = vpop.f32.mrf.mxu0
        %v1152 = vadd.f32 0.0, %v1151
        %1153 = vmatmul.bf16.gmra.mxu0 %v1076
        %v1154 = vpop.f32.mrf.mxu0
        %v1155 = vadd.f32 0.0, %v1154
        %v1156 = vpop.f32.mrf.mxu0
        %v1157 = vadd.f32 0.0, %v1156
        %1158 = vmatmul.bf16.gmra.mxu0 %v1079
        %v1159 = vpop.f32.mrf.mxu0
        %v1160 = vadd.f32 0.0, %v1159
        %v1161 = vpop.f32.mrf.mxu0
        %v1162 = vadd.f32 0.0, %v1161
        %1163 = vmatmul.bf16.gmra.mxu0 %v1082
        %v1164 = vpop.f32.mrf.mxu0
        %v1165 = vadd.f32 0.0, %v1164
        %v1166 = vpop.f32.mrf.mxu0
        %v1167 = vadd.f32 0.0, %v1166
        %1168 = vmatmul.bf16.gmra.mxu0 %v1085
        %v1169 = vpop.f32.mrf.mxu0
        %v1170 = vadd.f32 0.0, %v1169
        %v1171 = vpop.f32.mrf.mxu0
        %v1172 = vadd.f32 0.0, %v1171
        %1173 = vmatmul.bf16.gmra.mxu0 %v1088
        %v1174 = vpop.f32.mrf.mxu0
        %v1175 = vadd.f32 0.0, %v1174
        %v1176 = vpop.f32.mrf.mxu0
        %v1177 = vadd.f32 0.0, %v1176
        %1178 = vdwg.mxu0
        %1179 = vmatpush.bf16.msra.mxu0 0
        %1180 = vmatpush.bf16.msra.mxu0 0
        %1181 = vmatpush.bf16.msra.mxu0 0
        %1182 = vmatpush.bf16.msra.mxu0 0
        %1183 = vmatpush.bf16.msra.mxu0 0
        %1184 = vmatpush.bf16.msra.mxu0 0
        %1185 = vmatpush.bf16.msra.mxu0 %v1041
        %1186 = vmatpush.bf16.msra.mxu0 %v1039
        %1187 = vmatmul.bf16.gmra.mxu0 %v1043
        %v1188 = vpop.f32.mrf.mxu0
        %v1189 = vadd.f32 0.0, %v1188
        %v1190 = vpop.f32.mrf.mxu0
        %v1191 = vadd.f32 0.0, %v1190
        %1192 = vmatmul.bf16.gmra.mxu0 %v1046
        %v1193 = vpop.f32.mrf.mxu0
        %v1194 = vadd.f32 0.0, %v1193
        %v1195 = vpop.f32.mrf.mxu0
        %v1196 = vadd.f32 0.0, %v1195
        %1197 = vmatmul.bf16.gmra.mxu0 %v1049
        %v1198 = vpop.f32.mrf.mxu0
        %v1199 = vadd.f32 0.0, %v1198
        %v1200 = vpop.f32.mrf.mxu0
        %v1201 = vadd.f32 0.0, %v1200
        %1202 = vmatmul.bf16.gmra.mxu0 %v1052
        %v1203 = vpop.f32.mrf.mxu0
        %v1204 = vadd.f32 0.0, %v1203
        %v1205 = vpop.f32.mrf.mxu0
        %v1206 = vadd.f32 0.0, %v1205
        %1207 = vmatmul.bf16.gmra.mxu0 %v1055
        %v1208 = vpop.f32.mrf.mxu0
        %v1209 = vadd.f32 0.0, %v1208
        %v1210 = vpop.f32.mrf.mxu0
        %v1211 = vadd.f32 0.0, %v1210
        %1212 = vmatmul.bf16.gmra.mxu0 %v1058
        %v1213 = vpop.f32.mrf.mxu0
        %v1214 = vadd.f32 0.0, %v1213
        %v1215 = vpop.f32.mrf.mxu0
        %v1216 = vadd.f32 0.0, %v1215
        %1217 = vmatmul.bf16.gmra.mxu0 %v1061
        %v1218 = vpop.f32.mrf.mxu0
        %v1219 = vadd.f32 0.0, %v1218
        %v1220 = vpop.f32.mrf.mxu0
        %v1221 = vadd.f32 0.0, %v1220
        %1222 = vmatmul.bf16.gmra.mxu0 %v1064
        %v1223 = vpop.f32.mrf.mxu0
        %v1224 = vadd.f32 0.0, %v1223
        %v1225 = vpop.f32.mrf.mxu0
        %v1226 = vadd.f32 0.0, %v1225
        %1227 = vmatmul.bf16.gmra.mxu0 %v1067
        %v1228 = vpop.f32.mrf.mxu0
        %v1229 = vadd.f32 0.0, %v1228
        %v1230 = vpop.f32.mrf.mxu0
        %v1231 = vadd.f32 0.0, %v1230
        %1232 = vmatmul.bf16.gmra.mxu0 %v1070
        %v1233 = vpop.f32.mrf.mxu0
        %v1234 = vadd.f32 0.0, %v1233
        %v1235 = vpop.f32.mrf.mxu0
        %v1236 = vadd.f32 0.0, %v1235
        %1237 = vmatmul.bf16.gmra.mxu0 %v1073
        %v1238 = vpop.f32.mrf.mxu0
        %v1239 = vadd.f32 0.0, %v1238
        %v1240 = vpop.f32.mrf.mxu0
        %v1241 = vadd.f32 0.0, %v1240
        %1242 = vmatmul.bf16.gmra.mxu0 %v1076
        %v1243 = vpop.f32.mrf.mxu0
        %v1244 = vadd.f32 0.0, %v1243
        %v1245 = vpop.f32.mrf.mxu0
        %v1246 = vadd.f32 0.0, %v1245
        %1247 = vmatmul.bf16.gmra.mxu0 %v1079
        %v1248 = vpop.f32.mrf.mxu0
        %v1249 = vadd.f32 0.0, %v1248
        %v1250 = vpop.f32.mrf.mxu0
        %v1251 = vadd.f32 0.0, %v1250
        %1252 = vmatmul.bf16.gmra.mxu0 %v1082
        %v1253 = vpop.f32.mrf.mxu0
        %v1254 = vadd.f32 0.0, %v1253
        %v1255 = vpop.f32.mrf.mxu0
        %v1256 = vadd.f32 0.0, %v1255
        %1257 = vmatmul.bf16.gmra.mxu0 %v1085
        %v1258 = vpop.f32.mrf.mxu0
        %v1259 = vadd.f32 0.0, %v1258
        %v1260 = vpop.f32.mrf.mxu0
        %v1261 = vadd.f32 0.0, %v1260
        %1262 = vmatmul.bf16.gmra.mxu0 %v1088
        %v1263 = vpop.f32.mrf.mxu0
        %v1264 = vadd.f32 0.0, %v1263
        %v1265 = vpop.f32.mrf.mxu0
        %v1266 = vadd.f32 0.0, %v1265
        %1267 = vdwg.mxu0
        %v1268 = vmax.f32 %v1100, 0.0
        %v1269 = vmax.f32 %v1189, 0.0
        %v1270 = vmax.f32 %v1102, 0.0
        %v1271 = vmax.f32 %v1191, 0.0
        %v1272 = vmax.f32 %v1105, 0.0
        %v1273 = vmax.f32 %v1194, 0.0
        %v1274 = vmax.f32 %v1107, 0.0
        %v1275 = vmax.f32 %v1196, 0.0
        %v1276 = vmax.f32 %v1110, 0.0
        %v1277 = vmax.f32 %v1199, 0.0
        %v1278 = vmax.f32 %v1112, 0.0
        %v1279 = vmax.f32 %v1201, 0.0
        %v1280 = vmax.f32 %v1115, 0.0
        %v1281 = vmax.f32 %v1204, 0.0
        %v1282 = vmax.f32 %v1117, 0.0
        %v1283 = vmax.f32 %v1206, 0.0
        %v1284 = vmax.f32 %v1120, 0.0
        %v1285 = vmax.f32 %v1209, 0.0
        %v1286 = vmax.f32 %v1122, 0.0
        %v1287 = vmax.f32 %v1211, 0.0
        %v1288 = vmax.f32 %v1125, 0.0
        %v1289 = vmax.f32 %v1214, 0.0
        %v1290 = vmax.f32 %v1127, 0.0
        %v1291 = vmax.f32 %v1216, 0.0
        %v1292 = vmax.f32 %v1130, 0.0
        %v1293 = vmax.f32 %v1219, 0.0
        %v1294 = vmax.f32 %v1132, 0.0
        %v1295 = vmax.f32 %v1221, 0.0
        %v1296 = vmax.f32 %v1135, 0.0
        %v1297 = vmax.f32 %v1224, 0.0
        %v1298 = vmax.f32 %v1137, 0.0
        %v1299 = vmax.f32 %v1226, 0.0
        %v1300 = vmax.f32 %v1140, 0.0
        %v1301 = vmax.f32 %v1229, 0.0
        %v1302 = vmax.f32 %v1142, 0.0
        %v1303 = vmax.f32 %v1231, 0.0
        %v1304 = vmax.f32 %v1145, 0.0
        %v1305 = vmax.f32 %v1234, 0.0
        %v1306 = vmax.f32 %v1147, 0.0
        %v1307 = vmax.f32 %v1236, 0.0
        %v1308 = vmax.f32 %v1150, 0.0
        %v1309 = vmax.f32 %v1239, 0.0
        %v1310 = vmax.f32 %v1152, 0.0
        %v1311 = vmax.f32 %v1241, 0.0
        %v1312 = vmax.f32 %v1155, 0.0
        %v1313 = vmax.f32 %v1244, 0.0
        %v1314 = vmax.f32 %v1157, 0.0
        %v1315 = vmax.f32 %v1246, 0.0
        %v1316 = vmax.f32 %v1160, 0.0
        %v1317 = vmax.f32 %v1249, 0.0
        %v1318 = vmax.f32 %v1162, 0.0
        %v1319 = vmax.f32 %v1251, 0.0
        %v1320 = vmax.f32 %v1165, 0.0
        %v1321 = vmax.f32 %v1254, 0.0
        %v1322 = vmax.f32 %v1167, 0.0
        %v1323 = vmax.f32 %v1256, 0.0
        %v1324 = vmax.f32 %v1170, 0.0
        %v1325 = vmax.f32 %v1259, 0.0
        %v1326 = vmax.f32 %v1172, 0.0
        %v1327 = vmax.f32 %v1261, 0.0
        %v1328 = vmax.f32 %v1175, 0.0
        %v1329 = vmax.f32 %v1264, 0.0
        %v1330 = vmax.f32 %v1177, 0.0
        %v1331 = vmax.f32 %v1266, 0.0
        %v1332 = vmul.f32 %v1268, %v1268
        %v1333 = vmul.f32 %v1269, %v1269
        %v1334 = vmul.f32 %v1270, %v1270
        %v1335 = vmul.f32 %v1271, %v1271
        %v1336 = vmul.f32 %v1272, %v1272
        %v1337 = vmul.f32 %v1273, %v1273
        %v1338 = vmul.f32 %v1274, %v1274
        %v1339 = vmul.f32 %v1275, %v1275
        %v1340 = vmul.f32 %v1276, %v1276
        %v1341 = vmul.f32 %v1277, %v1277
        %v1342 = vmul.f32 %v1278, %v1278
        %v1343 = vmul.f32 %v1279, %v1279
        %v1344 = vmul.f32 %v1280, %v1280
        %v1345 = vmul.f32 %v1281, %v1281
        %v1346 = vmul.f32 %v1282, %v1282
        %v1347 = vmul.f32 %v1283, %v1283
        %v1348 = vmul.f32 %v1284, %v1284
        %v1349 = vmul.f32 %v1285, %v1285
        %v1350 = vmul.f32 %v1286, %v1286
        %v1351 = vmul.f32 %v1287, %v1287
        %v1352 = vmul.f32 %v1288, %v1288
        %v1353 = vmul.f32 %v1289, %v1289
        %v1354 = vmul.f32 %v1290, %v1290
        %v1355 = vmul.f32 %v1291, %v1291
        %v1356 = vmul.f32 %v1292, %v1292
        %v1357 = vmul.f32 %v1293, %v1293
        %v1358 = vmul.f32 %v1294, %v1294
        %v1359 = vmul.f32 %v1295, %v1295
        %v1360 = vmul.f32 %v1296, %v1296
        %v1361 = vmul.f32 %v1297, %v1297
        %v1362 = vmul.f32 %v1298, %v1298
        %v1363 = vmul.f32 %v1299, %v1299
        %v1364 = vmul.f32 %v1300, %v1300
        %v1365 = vmul.f32 %v1301, %v1301
        %v1366 = vmul.f32 %v1302, %v1302
        %v1367 = vmul.f32 %v1303, %v1303
        %v1368 = vmul.f32 %v1304, %v1304
        %v1369 = vmul.f32 %v1305, %v1305
        %v1370 = vmul.f32 %v1306, %v1306
        %v1371 = vmul.f32 %v1307, %v1307
        %v1372 = vmul.f32 %v1308, %v1308
        %v1373 = vmul.f32 %v1309, %v1309
        %v1374 = vmul.f32 %v1310, %v1310
        %v1375 = vmul.f32 %v1311, %v1311
        %v1376 = vmul.f32 %v1312, %v1312
        %v1377 = vmul.f32 %v1313, %v1313
        %v1378 = vmul.f32 %v1314, %v1314
        %v1379 = vmul.f32 %v1315, %v1315
        %v1380 = vmul.f32 %v1316, %v1316
        %v1381 = vmul.f32 %v1317, %v1317
        %v1382 = vmul.f32 %v1318, %v1318
        %v1383 = vmul.f32 %v1319, %v1319
        %v1384 = vmul.f32 %v1320, %v1320
        %v1385 = vmul.f32 %v1321, %v1321
        %v1386 = vmul.f32 %v1322, %v1322
        %v1387 = vmul.f32 %v1323, %v1323
        %v1388 = vmul.f32 %v1324, %v1324
        %v1389 = vmul.f32 %v1325, %v1325
        %v1390 = vmul.f32 %v1326, %v1326
        %v1391 = vmul.f32 %v1327, %v1327
        %v1392 = vmul.f32 %v1328, %v1328
        %v1393 = vmul.f32 %v1329, %v1329
        %v1394 = vmul.f32 %v1330, %v1330
        %v1395 = vmul.f32 %v1331, %v1331
        %v1396 = vadd.f32 %v1332, %v1333
        %1397 = vadd.xlane.f32.xlu0 %v1396
        %v1398 = vpop.xlane.xlu0 %1397
        %v1399 = vadd.f32 %v1334, %v1335
        %1400 = vadd.xlane.f32.xlu0 %v1399
        %v1401 = vpop.xlane.xlu0 %1400
        %v1402 = vadd.f32 %v1336, %v1337
        %1403 = vadd.xlane.f32.xlu0 %v1402
        %v1404 = vpop.xlane.xlu0 %1403
        %v1405 = vadd.f32 %v1338, %v1339
        %1406 = vadd.xlane.f32.xlu0 %v1405
        %v1407 = vpop.xlane.xlu0 %1406
        %v1408 = vadd.f32 %v1340, %v1341
        %1409 = vadd.xlane.f32.xlu0 %v1408
        %v1410 = vpop.xlane.xlu0 %1409
        %v1411 = vadd.f32 %v1342, %v1343
        %1412 = vadd.xlane.f32.xlu0 %v1411
        %v1413 = vpop.xlane.xlu0 %1412
        %v1414 = vadd.f32 %v1344, %v1345
        %1415 = vadd.xlane.f32.xlu0 %v1414
        %v1416 = vpop.xlane.xlu0 %1415
        %v1417 = vadd.f32 %v1346, %v1347
        %1418 = vadd.xlane.f32.xlu0 %v1417
        %v1419 = vpop.xlane.xlu0 %1418
        %v1420 = vadd.f32 %v1348, %v1349
        %1421 = vadd.xlane.f32.xlu0 %v1420
        %v1422 = vpop.xlane.xlu0 %1421
        %v1423 = vadd.f32 %v1350, %v1351
        %1424 = vadd.xlane.f32.xlu0 %v1423
        %v1425 = vpop.xlane.xlu0 %1424
        %v1426 = vadd.f32 %v1352, %v1353
        %1427 = vadd.xlane.f32.xlu0 %v1426
        %v1428 = vpop.xlane.xlu0 %1427
        %v1429 = vadd.f32 %v1354, %v1355
        %1430 = vadd.xlane.f32.xlu0 %v1429
        %v1431 = vpop.xlane.xlu0 %1430
        %v1432 = vadd.f32 %v1356, %v1357
        %1433 = vadd.xlane.f32.xlu0 %v1432
        %v1434 = vpop.xlane.xlu0 %1433
        %v1435 = vadd.f32 %v1358, %v1359
        %1436 = vadd.xlane.f32.xlu0 %v1435
        %v1437 = vpop.xlane.xlu0 %1436
        %v1438 = vadd.f32 %v1360, %v1361
        %1439 = vadd.xlane.f32.xlu0 %v1438
        %v1440 = vpop.xlane.xlu0 %1439
        %v1441 = vadd.f32 %v1362, %v1363
        %1442 = vadd.xlane.f32.xlu0 %v1441
        %v1443 = vpop.xlane.xlu0 %1442
        %v1444 = vadd.f32 %v1364, %v1365
        %1445 = vadd.xlane.f32.xlu0 %v1444
        %v1446 = vpop.xlane.xlu0 %1445
        %v1447 = vadd.f32 %v1366, %v1367
        %1448 = vadd.xlane.f32.xlu0 %v1447
        %v1449 = vpop.xlane.xlu0 %1448
        %v1450 = vadd.f32 %v1368, %v1369
        %1451 = vadd.xlane.f32.xlu0 %v1450
        %v1452 = vpop.xlane.xlu0 %1451
        %v1453 = vadd.f32 %v1370, %v1371
        %1454 = vadd.xlane.f32.xlu0 %v1453
        %v1455 = vpop.xlane.xlu0 %1454
        %v1456 = vadd.f32 %v1372, %v1373
        %1457 = vadd.xlane.f32.xlu0 %v1456
        %v1458 = vpop.xlane.xlu0 %1457
        %v1459 = vadd.f32 %v1374, %v1375
        %1460 = vadd.xlane.f32.xlu0 %v1459
        %v1461 = vpop.xlane.xlu0 %1460
        %v1462 = vadd.f32 %v1376, %v1377
        %1463 = vadd.xlane.f32.xlu0 %v1462
        %v1464 = vpop.xlane.xlu0 %1463
        %v1465 = vadd.f32 %v1378, %v1379
        %1466 = vadd.xlane.f32.xlu0 %v1465
        %v1467 = vpop.xlane.xlu0 %1466
        %v1468 = vadd.f32 %v1380, %v1381
        %1469 = vadd.xlane.f32.xlu0 %v1468
        %v1470 = vpop.xlane.xlu0 %1469
        %v1471 = vadd.f32 %v1382, %v1383
        %1472 = vadd.xlane.f32.xlu0 %v1471
        %v1473 = vpop.xlane.xlu0 %1472
        %v1474 = vadd.f32 %v1384, %v1385
        %1475 = vadd.xlane.f32.xlu0 %v1474
        %v1476 = vpop.xlane.xlu0 %1475
        %v1477 = vadd.f32 %v1386, %v1387
        %1478 = vadd.xlane.f32.xlu0 %v1477
        %v1479 = vpop.xlane.xlu0 %1478
        %v1480 = vadd.f32 %v1388, %v1389
        %1481 = vadd.xlane.f32.xlu0 %v1480
        %v1482 = vpop.xlane.xlu0 %1481
        %v1483 = vadd.f32 %v1390, %v1391
        %1484 = vadd.xlane.f32.xlu0 %v1483
        %v1485 = vpop.xlane.xlu0 %1484
        %v1486 = vadd.f32 %v1392, %v1393
        %1487 = vadd.xlane.f32.xlu0 %v1486
        %v1488 = vpop.xlane.xlu0 %1487
        %v1489 = vadd.f32 %v1394, %v1395
        %1490 = vadd.xlane.f32.xlu0 %v1489
        %v1491 = vpop.xlane.xlu0 %1490
        %v1492 = vrsqrt.pop %v1398
        %v1493 = vmul.f32 %v1492, %v1398
        %v1494 = vmul.f32 %v1493, %v1492
        %v1495 = vmul.f32 0.5, %v1494
        %v1496 = vsub.f32 1.5, %v1495
        %v1497 = vmul.f32 %v1492, %v1496
        %v1498 = vmul.f32 %v1398, %v1497
        %vm1499 = vcmp.eq.f32.partialorder %v1398, inf
        %v1500 = vsel %vm1499, %v1398, %v1498
        %vm1501 = vcmp.eq.f32.partialorder %v1398, 0.0
        %v1502 = vand.u32 %v1398, 2147483648
        %v1503 = vsel %vm1501, %v1502, %v1500
        %v1504 = vrsqrt.pop %v1401
        %v1505 = vmul.f32 %v1504, %v1401
        %v1506 = vmul.f32 %v1505, %v1504
        %v1507 = vmul.f32 0.5, %v1506
        %v1508 = vsub.f32 1.5, %v1507
        %v1509 = vmul.f32 %v1504, %v1508
        %v1510 = vmul.f32 %v1401, %v1509
        %vm1511 = vcmp.eq.f32.partialorder %v1401, inf
        %v1512 = vsel %vm1511, %v1401, %v1510
        %vm1513 = vcmp.eq.f32.partialorder %v1401, 0.0
        %v1514 = vand.u32 %v1401, 2147483648
        %v1515 = vsel %vm1513, %v1514, %v1512
        %v1516 = vrsqrt.pop %v1404
        %v1517 = vmul.f32 %v1516, %v1404
        %v1518 = vmul.f32 %v1517, %v1516
        %v1519 = vmul.f32 0.5, %v1518
        %v1520 = vsub.f32 1.5, %v1519
        %v1521 = vmul.f32 %v1516, %v1520
        %v1522 = vmul.f32 %v1404, %v1521
        %vm1523 = vcmp.eq.f32.partialorder %v1404, inf
        %v1524 = vsel %vm1523, %v1404, %v1522
        %vm1525 = vcmp.eq.f32.partialorder %v1404, 0.0
        %v1526 = vand.u32 %v1404, 2147483648
        %v1527 = vsel %vm1525, %v1526, %v1524
        %v1528 = vrsqrt.pop %v1407
        %v1529 = vmul.f32 %v1528, %v1407
        %v1530 = vmul.f32 %v1529, %v1528
        %v1531 = vmul.f32 0.5, %v1530
        %v1532 = vsub.f32 1.5, %v1531
        %v1533 = vmul.f32 %v1528, %v1532
        %v1534 = vmul.f32 %v1407, %v1533
        %vm1535 = vcmp.eq.f32.partialorder %v1407, inf
        %v1536 = vsel %vm1535, %v1407, %v1534
        %vm1537 = vcmp.eq.f32.partialorder %v1407, 0.0
        %v1538 = vand.u32 %v1407, 2147483648
        %v1539 = vsel %vm1537, %v1538, %v1536
        %v1540 = vrsqrt.pop %v1410
        %v1541 = vmul.f32 %v1540, %v1410
        %v1542 = vmul.f32 %v1541, %v1540
        %v1543 = vmul.f32 0.5, %v1542
        %v1544 = vsub.f32 1.5, %v1543
        %v1545 = vmul.f32 %v1540, %v1544
        %v1546 = vmul.f32 %v1410, %v1545
        %vm1547 = vcmp.eq.f32.partialorder %v1410, inf
        %v1548 = vsel %vm1547, %v1410, %v1546
        %vm1549 = vcmp.eq.f32.partialorder %v1410, 0.0
        %v1550 = vand.u32 %v1410, 2147483648
        %v1551 = vsel %vm1549, %v1550, %v1548
        %v1552 = vrsqrt.pop %v1413
        %v1553 = vmul.f32 %v1552, %v1413
        %v1554 = vmul.f32 %v1553, %v1552
        %v1555 = vmul.f32 0.5, %v1554
        %v1556 = vsub.f32 1.5, %v1555
        %v1557 = vmul.f32 %v1552, %v1556
        %v1558 = vmul.f32 %v1413, %v1557
        %vm1559 = vcmp.eq.f32.partialorder %v1413, inf
        %v1560 = vsel %vm1559, %v1413, %v1558
        %vm1561 = vcmp.eq.f32.partialorder %v1413, 0.0
        %v1562 = vand.u32 %v1413, 2147483648
        %v1563 = vsel %vm1561, %v1562, %v1560
        %v1564 = vrsqrt.pop %v1416
        %v1565 = vmul.f32 %v1564, %v1416
        %v1566 = vmul.f32 %v1565, %v1564
        %v1567 = vmul.f32 0.5, %v1566
        %v1568 = vsub.f32 1.5, %v1567
        %v1569 = vmul.f32 %v1564, %v1568
        %v1570 = vmul.f32 %v1416, %v1569
        %vm1571 = vcmp.eq.f32.partialorder %v1416, inf
        %v1572 = vsel %vm1571, %v1416, %v1570
        %vm1573 = vcmp.eq.f32.partialorder %v1416, 0.0
        %v1574 = vand.u32 %v1416, 2147483648
        %v1575 = vsel %vm1573, %v1574, %v1572
        %v1576 = vrsqrt.pop %v1419
        %v1577 = vmul.f32 %v1576, %v1419
        %v1578 = vmul.f32 %v1577, %v1576
        %v1579 = vmul.f32 0.5, %v1578
        %v1580 = vsub.f32 1.5, %v1579
        %v1581 = vmul.f32 %v1576, %v1580
        %v1582 = vmul.f32 %v1419, %v1581
        %vm1583 = vcmp.eq.f32.partialorder %v1419, inf
        %v1584 = vsel %vm1583, %v1419, %v1582
        %vm1585 = vcmp.eq.f32.partialorder %v1419, 0.0
        %v1586 = vand.u32 %v1419, 2147483648
        %v1587 = vsel %vm1585, %v1586, %v1584
        %v1588 = vrsqrt.pop %v1422
        %v1589 = vmul.f32 %v1588, %v1422
        %v1590 = vmul.f32 %v1589, %v1588
        %v1591 = vmul.f32 0.5, %v1590
        %v1592 = vsub.f32 1.5, %v1591
        %v1593 = vmul.f32 %v1588, %v1592
        %v1594 = vmul.f32 %v1422, %v1593
        %vm1595 = vcmp.eq.f32.partialorder %v1422, inf
        %v1596 = vsel %vm1595, %v1422, %v1594
        %vm1597 = vcmp.eq.f32.partialorder %v1422, 0.0
        %v1598 = vand.u32 %v1422, 2147483648
        %v1599 = vsel %vm1597, %v1598, %v1596
        %v1600 = vrsqrt.pop %v1425
        %v1601 = vmul.f32 %v1600, %v1425
        %v1602 = vmul.f32 %v1601, %v1600
        %v1603 = vmul.f32 0.5, %v1602
        %v1604 = vsub.f32 1.5, %v1603
        %v1605 = vmul.f32 %v1600, %v1604
        %v1606 = vmul.f32 %v1425, %v1605
        %vm1607 = vcmp.eq.f32.partialorder %v1425, inf
        %v1608 = vsel %vm1607, %v1425, %v1606
        %vm1609 = vcmp.eq.f32.partialorder %v1425, 0.0
        %v1610 = vand.u32 %v1425, 2147483648
        %v1611 = vsel %vm1609, %v1610, %v1608
        %v1612 = vrsqrt.pop %v1428
        %v1613 = vmul.f32 %v1612, %v1428
        %v1614 = vmul.f32 %v1613, %v1612
        %v1615 = vmul.f32 0.5, %v1614
        %v1616 = vsub.f32 1.5, %v1615
        %v1617 = vmul.f32 %v1612, %v1616
        %v1618 = vmul.f32 %v1428, %v1617
        %vm1619 = vcmp.eq.f32.partialorder %v1428, inf
        %v1620 = vsel %vm1619, %v1428, %v1618
        %vm1621 = vcmp.eq.f32.partialorder %v1428, 0.0
        %v1622 = vand.u32 %v1428, 2147483648
        %v1623 = vsel %vm1621, %v1622, %v1620
        %v1624 = vrsqrt.pop %v1431
        %v1625 = vmul.f32 %v1624, %v1431
        %v1626 = vmul.f32 %v1625, %v1624
        %v1627 = vmul.f32 0.5, %v1626
        %v1628 = vsub.f32 1.5, %v1627
        %v1629 = vmul.f32 %v1624, %v1628
        %v1630 = vmul.f32 %v1431, %v1629
        %vm1631 = vcmp.eq.f32.partialorder %v1431, inf
        %v1632 = vsel %vm1631, %v1431, %v1630
        %vm1633 = vcmp.eq.f32.partialorder %v1431, 0.0
        %v1634 = vand.u32 %v1431, 2147483648
        %v1635 = vsel %vm1633, %v1634, %v1632
        %v1636 = vrsqrt.pop %v1434
        %v1637 = vmul.f32 %v1636, %v1434
        %v1638 = vmul.f32 %v1637, %v1636
        %v1639 = vmul.f32 0.5, %v1638
        %v1640 = vsub.f32 1.5, %v1639
        %v1641 = vmul.f32 %v1636, %v1640
        %v1642 = vmul.f32 %v1434, %v1641
        %vm1643 = vcmp.eq.f32.partialorder %v1434, inf
        %v1644 = vsel %vm1643, %v1434, %v1642
        %vm1645 = vcmp.eq.f32.partialorder %v1434, 0.0
        %v1646 = vand.u32 %v1434, 2147483648
        %v1647 = vsel %vm1645, %v1646, %v1644
        %v1648 = vrsqrt.pop %v1437
        %v1649 = vmul.f32 %v1648, %v1437
        %v1650 = vmul.f32 %v1649, %v1648
        %v1651 = vmul.f32 0.5, %v1650
        %v1652 = vsub.f32 1.5, %v1651
        %v1653 = vmul.f32 %v1648, %v1652
        %v1654 = vmul.f32 %v1437, %v1653
        %vm1655 = vcmp.eq.f32.partialorder %v1437, inf
        %v1656 = vsel %vm1655, %v1437, %v1654
        %vm1657 = vcmp.eq.f32.partialorder %v1437, 0.0
        %v1658 = vand.u32 %v1437, 2147483648
        %v1659 = vsel %vm1657, %v1658, %v1656
        %v1660 = vrsqrt.pop %v1440
        %v1661 = vmul.f32 %v1660, %v1440
        %v1662 = vmul.f32 %v1661, %v1660
        %v1663 = vmul.f32 0.5, %v1662
        %v1664 = vsub.f32 1.5, %v1663
        %v1665 = vmul.f32 %v1660, %v1664
        %v1666 = vmul.f32 %v1440, %v1665
        %vm1667 = vcmp.eq.f32.partialorder %v1440, inf
        %v1668 = vsel %vm1667, %v1440, %v1666
        %vm1669 = vcmp.eq.f32.partialorder %v1440, 0.0
        %v1670 = vand.u32 %v1440, 2147483648
        %v1671 = vsel %vm1669, %v1670, %v1668
        %v1672 = vrsqrt.pop %v1443
        %v1673 = vmul.f32 %v1672, %v1443
        %v1674 = vmul.f32 %v1673, %v1672
        %v1675 = vmul.f32 0.5, %v1674
        %v1676 = vsub.f32 1.5, %v1675
        %v1677 = vmul.f32 %v1672, %v1676
        %v1678 = vmul.f32 %v1443, %v1677
        %vm1679 = vcmp.eq.f32.partialorder %v1443, inf
        %v1680 = vsel %vm1679, %v1443, %v1678
        %vm1681 = vcmp.eq.f32.partialorder %v1443, 0.0
        %v1682 = vand.u32 %v1443, 2147483648
        %v1683 = vsel %vm1681, %v1682, %v1680
        %v1684 = vrsqrt.pop %v1446
        %v1685 = vmul.f32 %v1684, %v1446
        %v1686 = vmul.f32 %v1685, %v1684
        %v1687 = vmul.f32 0.5, %v1686
        %v1688 = vsub.f32 1.5, %v1687
        %v1689 = vmul.f32 %v1684, %v1688
        %v1690 = vmul.f32 %v1446, %v1689
        %vm1691 = vcmp.eq.f32.partialorder %v1446, inf
        %v1692 = vsel %vm1691, %v1446, %v1690
        %vm1693 = vcmp.eq.f32.partialorder %v1446, 0.0
        %v1694 = vand.u32 %v1446, 2147483648
        %v1695 = vsel %vm1693, %v1694, %v1692
        %v1696 = vrsqrt.pop %v1449
        %v1697 = vmul.f32 %v1696, %v1449
        %v1698 = vmul.f32 %v1697, %v1696
        %v1699 = vmul.f32 0.5, %v1698
        %v1700 = vsub.f32 1.5, %v1699
        %v1701 = vmul.f32 %v1696, %v1700
        %v1702 = vmul.f32 %v1449, %v1701
        %vm1703 = vcmp.eq.f32.partialorder %v1449, inf
        %v1704 = vsel %vm1703, %v1449, %v1702
        %vm1705 = vcmp.eq.f32.partialorder %v1449, 0.0
        %v1706 = vand.u32 %v1449, 2147483648
        %v1707 = vsel %vm1705, %v1706, %v1704
        %v1708 = vrsqrt.pop %v1452
        %v1709 = vmul.f32 %v1708, %v1452
        %v1710 = vmul.f32 %v1709, %v1708
        %v1711 = vmul.f32 0.5, %v1710
        %v1712 = vsub.f32 1.5, %v1711
        %v1713 = vmul.f32 %v1708, %v1712
        %v1714 = vmul.f32 %v1452, %v1713
        %vm1715 = vcmp.eq.f32.partialorder %v1452, inf
        %v1716 = vsel %vm1715, %v1452, %v1714
        %vm1717 = vcmp.eq.f32.partialorder %v1452, 0.0
        %v1718 = vand.u32 %v1452, 2147483648
        %v1719 = vsel %vm1717, %v1718, %v1716
        %v1720 = vrsqrt.pop %v1455
        %v1721 = vmul.f32 %v1720, %v1455
        %v1722 = vmul.f32 %v1721, %v1720
        %v1723 = vmul.f32 0.5, %v1722
        %v1724 = vsub.f32 1.5, %v1723
        %v1725 = vmul.f32 %v1720, %v1724
        %v1726 = vmul.f32 %v1455, %v1725
        %vm1727 = vcmp.eq.f32.partialorder %v1455, inf
        %v1728 = vsel %vm1727, %v1455, %v1726
        %vm1729 = vcmp.eq.f32.partialorder %v1455, 0.0
        %v1730 = vand.u32 %v1455, 2147483648
        %v1731 = vsel %vm1729, %v1730, %v1728
        %v1732 = vrsqrt.pop %v1458
        %v1733 = vmul.f32 %v1732, %v1458
        %v1734 = vmul.f32 %v1733, %v1732
        %v1735 = vmul.f32 0.5, %v1734
        %v1736 = vsub.f32 1.5, %v1735
        %v1737 = vmul.f32 %v1732, %v1736
        %v1738 = vmul.f32 %v1458, %v1737
        %vm1739 = vcmp.eq.f32.partialorder %v1458, inf
        %v1740 = vsel %vm1739, %v1458, %v1738
        %vm1741 = vcmp.eq.f32.partialorder %v1458, 0.0
        %v1742 = vand.u32 %v1458, 2147483648
        %v1743 = vsel %vm1741, %v1742, %v1740
        %v1744 = vrsqrt.pop %v1461
        %v1745 = vmul.f32 %v1744, %v1461
        %v1746 = vmul.f32 %v1745, %v1744
        %v1747 = vmul.f32 0.5, %v1746
        %v1748 = vsub.f32 1.5, %v1747
        %v1749 = vmul.f32 %v1744, %v1748
        %v1750 = vmul.f32 %v1461, %v1749
        %vm1751 = vcmp.eq.f32.partialorder %v1461, inf
        %v1752 = vsel %vm1751, %v1461, %v1750
        %vm1753 = vcmp.eq.f32.partialorder %v1461, 0.0
        %v1754 = vand.u32 %v1461, 2147483648
        %v1755 = vsel %vm1753, %v1754, %v1752
        %v1756 = vrsqrt.pop %v1464
        %v1757 = vmul.f32 %v1756, %v1464
        %v1758 = vmul.f32 %v1757, %v1756
        %v1759 = vmul.f32 0.5, %v1758
        %v1760 = vsub.f32 1.5, %v1759
        %v1761 = vmul.f32 %v1756, %v1760
        %v1762 = vmul.f32 %v1464, %v1761
        %vm1763 = vcmp.eq.f32.partialorder %v1464, inf
        %v1764 = vsel %vm1763, %v1464, %v1762
        %vm1765 = vcmp.eq.f32.partialorder %v1464, 0.0
        %v1766 = vand.u32 %v1464, 2147483648
        %v1767 = vsel %vm1765, %v1766, %v1764
        %v1768 = vrsqrt.pop %v1467
        %v1769 = vmul.f32 %v1768, %v1467
        %v1770 = vmul.f32 %v1769, %v1768
        %v1771 = vmul.f32 0.5, %v1770
        %v1772 = vsub.f32 1.5, %v1771
        %v1773 = vmul.f32 %v1768, %v1772
        %v1774 = vmul.f32 %v1467, %v1773
        %vm1775 = vcmp.eq.f32.partialorder %v1467, inf
        %v1776 = vsel %vm1775, %v1467, %v1774
        %vm1777 = vcmp.eq.f32.partialorder %v1467, 0.0
        %v1778 = vand.u32 %v1467, 2147483648
        %v1779 = vsel %vm1777, %v1778, %v1776
        %v1780 = vrsqrt.pop %v1470
        %v1781 = vmul.f32 %v1780, %v1470
        %v1782 = vmul.f32 %v1781, %v1780
        %v1783 = vmul.f32 0.5, %v1782
        %v1784 = vsub.f32 1.5, %v1783
        %v1785 = vmul.f32 %v1780, %v1784
        %v1786 = vmul.f32 %v1470, %v1785
        %vm1787 = vcmp.eq.f32.partialorder %v1470, inf
        %v1788 = vsel %vm1787, %v1470, %v1786
        %vm1789 = vcmp.eq.f32.partialorder %v1470, 0.0
        %v1790 = vand.u32 %v1470, 2147483648
        %v1791 = vsel %vm1789, %v1790, %v1788
        %v1792 = vrsqrt.pop %v1473
        %v1793 = vmul.f32 %v1792, %v1473
        %v1794 = vmul.f32 %v1793, %v1792
        %v1795 = vmul.f32 0.5, %v1794
        %v1796 = vsub.f32 1.5, %v1795
        %v1797 = vmul.f32 %v1792, %v1796
        %v1798 = vmul.f32 %v1473, %v1797
        %vm1799 = vcmp.eq.f32.partialorder %v1473, inf
        %v1800 = vsel %vm1799, %v1473, %v1798
        %vm1801 = vcmp.eq.f32.partialorder %v1473, 0.0
        %v1802 = vand.u32 %v1473, 2147483648
        %v1803 = vsel %vm1801, %v1802, %v1800
        %v1804 = vrsqrt.pop %v1476
        %v1805 = vmul.f32 %v1804, %v1476
        %v1806 = vmul.f32 %v1805, %v1804
        %v1807 = vmul.f32 0.5, %v1806
        %v1808 = vsub.f32 1.5, %v1807
        %v1809 = vmul.f32 %v1804, %v1808
        %v1810 = vmul.f32 %v1476, %v1809
        %vm1811 = vcmp.eq.f32.partialorder %v1476, inf
        %v1812 = vsel %vm1811, %v1476, %v1810
        %vm1813 = vcmp.eq.f32.partialorder %v1476, 0.0
        %v1814 = vand.u32 %v1476, 2147483648
        %v1815 = vsel %vm1813, %v1814, %v1812
        %v1816 = vrsqrt.pop %v1479
        %v1817 = vmul.f32 %v1816, %v1479
        %v1818 = vmul.f32 %v1817, %v1816
        %v1819 = vmul.f32 0.5, %v1818
        %v1820 = vsub.f32 1.5, %v1819
        %v1821 = vmul.f32 %v1816, %v1820
        %v1822 = vmul.f32 %v1479, %v1821
        %vm1823 = vcmp.eq.f32.partialorder %v1479, inf
        %v1824 = vsel %vm1823, %v1479, %v1822
        %vm1825 = vcmp.eq.f32.partialorder %v1479, 0.0
        %v1826 = vand.u32 %v1479, 2147483648
        %v1827 = vsel %vm1825, %v1826, %v1824
        %v1828 = vrsqrt.pop %v1482
        %v1829 = vmul.f32 %v1828, %v1482
        %v1830 = vmul.f32 %v1829, %v1828
        %v1831 = vmul.f32 0.5, %v1830
        %v1832 = vsub.f32 1.5, %v1831
        %v1833 = vmul.f32 %v1828, %v1832
        %v1834 = vmul.f32 %v1482, %v1833
        %vm1835 = vcmp.eq.f32.partialorder %v1482, inf
        %v1836 = vsel %vm1835, %v1482, %v1834
        %vm1837 = vcmp.eq.f32.partialorder %v1482, 0.0
        %v1838 = vand.u32 %v1482, 2147483648
        %v1839 = vsel %vm1837, %v1838, %v1836
        %v1840 = vrsqrt.pop %v1485
        %v1841 = vmul.f32 %v1840, %v1485
        %v1842 = vmul.f32 %v1841, %v1840
        %v1843 = vmul.f32 0.5, %v1842
        %v1844 = vsub.f32 1.5, %v1843
        %v1845 = vmul.f32 %v1840, %v1844
        %v1846 = vmul.f32 %v1485, %v1845
        %vm1847 = vcmp.eq.f32.partialorder %v1485, inf
        %v1848 = vsel %vm1847, %v1485, %v1846
        %vm1849 = vcmp.eq.f32.partialorder %v1485, 0.0
        %v1850 = vand.u32 %v1485, 2147483648
        %v1851 = vsel %vm1849, %v1850, %v1848
        %v1852 = vrsqrt.pop %v1488
        %v1853 = vmul.f32 %v1852, %v1488
        %v1854 = vmul.f32 %v1853, %v1852
        %v1855 = vmul.f32 0.5, %v1854
        %v1856 = vsub.f32 1.5, %v1855
        %v1857 = vmul.f32 %v1852, %v1856
        %v1858 = vmul.f32 %v1488, %v1857
        %vm1859 = vcmp.eq.f32.partialorder %v1488, inf
        %v1860 = vsel %vm1859, %v1488, %v1858
        %vm1861 = vcmp.eq.f32.partialorder %v1488, 0.0
        %v1862 = vand.u32 %v1488, 2147483648
        %v1863 = vsel %vm1861, %v1862, %v1860
        %v1864 = vrsqrt.pop %v1491
        %v1865 = vmul.f32 %v1864, %v1491
        %v1866 = vmul.f32 %v1865, %v1864
        %v1867 = vmul.f32 0.5, %v1866
        %v1868 = vsub.f32 1.5, %v1867
        %v1869 = vmul.f32 %v1864, %v1868
        %v1870 = vmul.f32 %v1491, %v1869
        %vm1871 = vcmp.eq.f32.partialorder %v1491, inf
        %v1872 = vsel %vm1871, %v1491, %v1870
        %vm1873 = vcmp.eq.f32.partialorder %v1491, 0.0
        %v1874 = vand.u32 %v1491, 2147483648
        %v1875 = vsel %vm1873, %v1874, %v1872
        %v1876 = vmax.f32 %v1503, 1e-12
        %v1877 = vmax.f32 %v1515, 1e-12
        %v1878 = vmax.f32 %v1527, 1e-12
        %v1879 = vmax.f32 %v1539, 1e-12
        %v1880 = vmax.f32 %v1551, 1e-12
        %v1881 = vmax.f32 %v1563, 1e-12
        %v1882 = vmax.f32 %v1575, 1e-12
        %v1883 = vmax.f32 %v1587, 1e-12
        %v1884 = vmax.f32 %v1599, 1e-12
        %v1885 = vmax.f32 %v1611, 1e-12
        %v1886 = vmax.f32 %v1623, 1e-12
        %v1887 = vmax.f32 %v1635, 1e-12
        %v1888 = vmax.f32 %v1647, 1e-12
        %v1889 = vmax.f32 %v1659, 1e-12
        %v1890 = vmax.f32 %v1671, 1e-12
        %v1891 = vmax.f32 %v1683, 1e-12
        %v1892 = vmax.f32 %v1695, 1e-12
        %v1893 = vmax.f32 %v1707, 1e-12
        %v1894 = vmax.f32 %v1719, 1e-12
        %v1895 = vmax.f32 %v1731, 1e-12
        %v1896 = vmax.f32 %v1743, 1e-12
        %v1897 = vmax.f32 %v1755, 1e-12
        %v1898 = vmax.f32 %v1767, 1e-12
        %v1899 = vmax.f32 %v1779, 1e-12
        %v1900 = vmax.f32 %v1791, 1e-12
        %v1901 = vmax.f32 %v1803, 1e-12
        %v1902 = vmax.f32 %v1815, 1e-12
        %v1903 = vmax.f32 %v1827, 1e-12
        %v1904 = vmax.f32 %v1839, 1e-12
        %v1905 = vmax.f32 %v1851, 1e-12
        %v1906 = vmax.f32 %v1863, 1e-12
        %v1907 = vmax.f32 %v1875, 1e-12
        %v1908 = vrcp.pop %v1876
        %v1909 = vrcp.pop %v1877
        %v1910 = vrcp.pop %v1878
        %v1911 = vrcp.pop %v1879
        %v1912 = vrcp.pop %v1880
        %v1913 = vrcp.pop %v1881
        %v1914 = vrcp.pop %v1882
        %v1915 = vrcp.pop %v1883
        %v1916 = vrcp.pop %v1884
        %v1917 = vrcp.pop %v1885
        %v1918 = vrcp.pop %v1886
        %v1919 = vrcp.pop %v1887
        %v1920 = vrcp.pop %v1888
        %v1921 = vrcp.pop %v1889
        %v1922 = vrcp.pop %v1890
        %v1923 = vrcp.pop %v1891
        %v1924 = vrcp.pop %v1892
        %v1925 = vrcp.pop %v1893
        %v1926 = vrcp.pop %v1894
        %v1927 = vrcp.pop %v1895
        %v1928 = vrcp.pop %v1896
        %v1929 = vrcp.pop %v1897
        %v1930 = vrcp.pop %v1898
        %v1931 = vrcp.pop %v1899
        %v1932 = vrcp.pop %v1900
        %v1933 = vrcp.pop %v1901
        %v1934 = vrcp.pop %v1902
        %v1935 = vrcp.pop %v1903
        %v1936 = vrcp.pop %v1904
        %v1937 = vrcp.pop %v1905
        %v1938 = vrcp.pop %v1906
        %v1939 = vrcp.pop %v1907
        %v1940 = vmul.f32 %v1268, %v1908
        %v1941 = vmul.f32 %v1269, %v1908
        %v1942 = vmul.f32 %v1270, %v1909
        %v1943 = vmul.f32 %v1271, %v1909
        %v1944 = vmul.f32 %v1272, %v1910
        %v1945 = vmul.f32 %v1273, %v1910
        %v1946 = vmul.f32 %v1274, %v1911
        %v1947 = vmul.f32 %v1275, %v1911
        %v1948 = vmul.f32 %v1276, %v1912
        %v1949 = vmul.f32 %v1277, %v1912
        %v1950 = vmul.f32 %v1278, %v1913
        %v1951 = vmul.f32 %v1279, %v1913
        %v1952 = vmul.f32 %v1280, %v1914
        %v1953 = vmul.f32 %v1281, %v1914
        %v1954 = vmul.f32 %v1282, %v1915
        %v1955 = vmul.f32 %v1283, %v1915
        %v1956 = vmul.f32 %v1284, %v1916
        %v1957 = vmul.f32 %v1285, %v1916
        %v1958 = vmul.f32 %v1286, %v1917
        %v1959 = vmul.f32 %v1287, %v1917
        %v1960 = vmul.f32 %v1288, %v1918
        %v1961 = vmul.f32 %v1289, %v1918
        %v1962 = vmul.f32 %v1290, %v1919
        %v1963 = vmul.f32 %v1291, %v1919
        %v1964 = vmul.f32 %v1292, %v1920
        %v1965 = vmul.f32 %v1293, %v1920
        %v1966 = vmul.f32 %v1294, %v1921
        %v1967 = vmul.f32 %v1295, %v1921
        %v1968 = vmul.f32 %v1296, %v1922
        %v1969 = vmul.f32 %v1297, %v1922
        %v1970 = vmul.f32 %v1298, %v1923
        %v1971 = vmul.f32 %v1299, %v1923
        %v1972 = vmul.f32 %v1300, %v1924
        %v1973 = vmul.f32 %v1301, %v1924
        %v1974 = vmul.f32 %v1302, %v1925
        %v1975 = vmul.f32 %v1303, %v1925
        %v1976 = vmul.f32 %v1304, %v1926
        %v1977 = vmul.f32 %v1305, %v1926
        %v1978 = vmul.f32 %v1306, %v1927
        %v1979 = vmul.f32 %v1307, %v1927
        %v1980 = vmul.f32 %v1308, %v1928
        %v1981 = vmul.f32 %v1309, %v1928
        %v1982 = vmul.f32 %v1310, %v1929
        %v1983 = vmul.f32 %v1311, %v1929
        %v1984 = vmul.f32 %v1312, %v1930
        %v1985 = vmul.f32 %v1313, %v1930
        %v1986 = vmul.f32 %v1314, %v1931
        %v1987 = vmul.f32 %v1315, %v1931
        %v1988 = vmul.f32 %v1316, %v1932
        %v1989 = vmul.f32 %v1317, %v1932
        %v1990 = vmul.f32 %v1318, %v1933
        %v1991 = vmul.f32 %v1319, %v1933
        %v1992 = vmul.f32 %v1320, %v1934
        %v1993 = vmul.f32 %v1321, %v1934
        %v1994 = vmul.f32 %v1322, %v1935
        %v1995 = vmul.f32 %v1323, %v1935
        %v1996 = vmul.f32 %v1324, %v1936
        %v1997 = vmul.f32 %v1325, %v1936
        %v1998 = vmul.f32 %v1326, %v1937
        %v1999 = vmul.f32 %v1327, %v1937
        %v2000 = vmul.f32 %v1328, %v1938
        %v2001 = vmul.f32 %v1329, %v1938
        %v2002 = vmul.f32 %v1330, %v1939
        %v2003 = vmul.f32 %v1331, %v1939
        %v2004 = vmul.f32 %v1940, %v1940
        %v2005 = vmul.f32 %v1941, %v1941
        %v2006 = vmul.f32 %v1942, %v1942
        %v2007 = vmul.f32 %v1943, %v1943
        %v2008 = vmul.f32 %v1944, %v1944
        %v2009 = vmul.f32 %v1945, %v1945
        %v2010 = vmul.f32 %v1946, %v1946
        %v2011 = vmul.f32 %v1947, %v1947
        %v2012 = vmul.f32 %v1948, %v1948
        %v2013 = vmul.f32 %v1949, %v1949
        %v2014 = vmul.f32 %v1950, %v1950
        %v2015 = vmul.f32 %v1951, %v1951
        %v2016 = vmul.f32 %v1952, %v1952
        %v2017 = vmul.f32 %v1953, %v1953
        %v2018 = vmul.f32 %v1954, %v1954
        %v2019 = vmul.f32 %v1955, %v1955
        %v2020 = vmul.f32 %v1956, %v1956
        %v2021 = vmul.f32 %v1957, %v1957
        %v2022 = vmul.f32 %v1958, %v1958
        %v2023 = vmul.f32 %v1959, %v1959
        %v2024 = vmul.f32 %v1960, %v1960
        %v2025 = vmul.f32 %v1961, %v1961
        %v2026 = vmul.f32 %v1962, %v1962
        %v2027 = vmul.f32 %v1963, %v1963
        %v2028 = vmul.f32 %v1964, %v1964
        %v2029 = vmul.f32 %v1965, %v1965
        %v2030 = vmul.f32 %v1966, %v1966
        %v2031 = vmul.f32 %v1967, %v1967
        %v2032 = vmul.f32 %v1968, %v1968
        %v2033 = vmul.f32 %v1969, %v1969
        %v2034 = vmul.f32 %v1970, %v1970
        %v2035 = vmul.f32 %v1971, %v1971
        %v2036 = vmul.f32 %v1972, %v1972
        %v2037 = vmul.f32 %v1973, %v1973
        %v2038 = vmul.f32 %v1974, %v1974
        %v2039 = vmul.f32 %v1975, %v1975
        %v2040 = vmul.f32 %v1976, %v1976
        %v2041 = vmul.f32 %v1977, %v1977
        %v2042 = vmul.f32 %v1978, %v1978
        %v2043 = vmul.f32 %v1979, %v1979
        %v2044 = vmul.f32 %v1980, %v1980
        %v2045 = vmul.f32 %v1981, %v1981
        %v2046 = vmul.f32 %v1982, %v1982
        %v2047 = vmul.f32 %v1983, %v1983
        %v2048 = vmul.f32 %v1984, %v1984
        %v2049 = vmul.f32 %v1985, %v1985
        %v2050 = vmul.f32 %v1986, %v1986
        %v2051 = vmul.f32 %v1987, %v1987
        %v2052 = vmul.f32 %v1988, %v1988
        %v2053 = vmul.f32 %v1989, %v1989
        %v2054 = vmul.f32 %v1990, %v1990
        %v2055 = vmul.f32 %v1991, %v1991
        %v2056 = vmul.f32 %v1992, %v1992
        %v2057 = vmul.f32 %v1993, %v1993
        %v2058 = vmul.f32 %v1994, %v1994
        %v2059 = vmul.f32 %v1995, %v1995
        %v2060 = vmul.f32 %v1996, %v1996
        %v2061 = vmul.f32 %v1997, %v1997
        %v2062 = vmul.f32 %v1998, %v1998
        %v2063 = vmul.f32 %v1999, %v1999
        %v2064 = vmul.f32 %v2000, %v2000
        %v2065 = vmul.f32 %v2001, %v2001
        %v2066 = vmul.f32 %v2002, %v2002
        %v2067 = vmul.f32 %v2003, %v2003
        %v2068 = vadd.f32 %v2004, %v2006
        %v2069 = vadd.f32 %v2068, %v2008
        %v2070 = vadd.f32 %v2069, %v2010
        %v2071 = vadd.f32 %v2070, %v2012
        %v2072 = vadd.f32 %v2071, %v2014
        %v2073 = vadd.f32 %v2072, %v2016
        %v2074 = vadd.f32 %v2073, %v2018
        %v2075 = vadd.f32 %v2074, %v2020
        %v2076 = vadd.f32 %v2075, %v2022
        %v2077 = vadd.f32 %v2076, %v2024
        %v2078 = vadd.f32 %v2077, %v2026
        %v2079 = vadd.f32 %v2078, %v2028
        %v2080 = vadd.f32 %v2079, %v2030
        %v2081 = vadd.f32 %v2080, %v2032
        %v2082 = vadd.f32 %v2081, %v2034
        %v2083 = vadd.f32 %v2082, %v2036
        %v2084 = vadd.f32 %v2083, %v2038
        %v2085 = vadd.f32 %v2084, %v2040
        %v2086 = vadd.f32 %v2085, %v2042
        %v2087 = vadd.f32 %v2086, %v2044
        %v2088 = vadd.f32 %v2087, %v2046
        %v2089 = vadd.f32 %v2088, %v2048
        %v2090 = vadd.f32 %v2089, %v2050
        %v2091 = vadd.f32 %v2090, %v2052
        %v2092 = vadd.f32 %v2091, %v2054
        %v2093 = vadd.f32 %v2092, %v2056
        %v2094 = vadd.f32 %v2093, %v2058
        %v2095 = vadd.f32 %v2094, %v2060
        %v2096 = vadd.f32 %v2095, %v2062
        %v2097 = vadd.f32 %v2096, %v2064
        %v2098 = vadd.f32 %v2097, %v2066
        %v2099 = vrot.slane %v2098, 4
        %v2100 = vadd.f32 %v2098, %v2099
        %v2101 = vrot.slane %v2100, 2
        %v2102 = vadd.f32 %v2100, %v2101
        %v2103 = vrot.slane %v2102, 1
        %v2104 = vadd.f32 %v2102, %v2103
        %v2105 = vadd.f32 %v2005, %v2007
        %v2106 = vadd.f32 %v2105, %v2009
        %v2107 = vadd.f32 %v2106, %v2011
        %v2108 = vadd.f32 %v2107, %v2013
        %v2109 = vadd.f32 %v2108, %v2015
        %v2110 = vadd.f32 %v2109, %v2017
        %v2111 = vadd.f32 %v2110, %v2019
        %v2112 = vadd.f32 %v2111, %v2021
        %v2113 = vadd.f32 %v2112, %v2023
        %v2114 = vadd.f32 %v2113, %v2025
        %v2115 = vadd.f32 %v2114, %v2027
        %v2116 = vadd.f32 %v2115, %v2029
        %v2117 = vadd.f32 %v2116, %v2031
        %v2118 = vadd.f32 %v2117, %v2033
        %v2119 = vadd.f32 %v2118, %v2035
        %v2120 = vadd.f32 %v2119, %v2037
        %v2121 = vadd.f32 %v2120, %v2039
        %v2122 = vadd.f32 %v2121, %v2041
        %v2123 = vadd.f32 %v2122, %v2043
        %v2124 = vadd.f32 %v2123, %v2045
        %v2125 = vadd.f32 %v2124, %v2047
        %v2126 = vadd.f32 %v2125, %v2049
        %v2127 = vadd.f32 %v2126, %v2051
        %v2128 = vadd.f32 %v2127, %v2053
        %v2129 = vadd.f32 %v2128, %v2055
        %v2130 = vadd.f32 %v2129, %v2057
        %v2131 = vadd.f32 %v2130, %v2059
        %v2132 = vadd.f32 %v2131, %v2061
        %v2133 = vadd.f32 %v2132, %v2063
        %v2134 = vadd.f32 %v2133, %v2065
        %v2135 = vadd.f32 %v2134, %v2067
        %v2136 = vrot.slane %v2135, 4
        %v2137 = vadd.f32 %v2135, %v2136
        %v2138 = vrot.slane %v2137, 2
        %v2139 = vadd.f32 %v2137, %v2138
        %v2140 = vrot.slane %v2139, 1
        %v2141 = vadd.f32 %v2139, %v2140
        %v2142 = vrsqrt.pop %v2104
        %v2143 = vmul.f32 %v2142, %v2104
        %v2144 = vmul.f32 %v2143, %v2142
        %v2145 = vmul.f32 0.5, %v2144
        %v2146 = vsub.f32 1.5, %v2145
        %v2147 = vmul.f32 %v2142, %v2146
        %v2148 = vmul.f32 %v2104, %v2147
        %vm2149 = vcmp.eq.f32.partialorder %v2104, inf
        %v2150 = vsel %vm2149, %v2104, %v2148
        %vm2151 = vcmp.eq.f32.partialorder %v2104, 0.0
        %v2152 = vand.u32 %v2104, 2147483648
        %v2153 = vsel %vm2151, %v2152, %v2150
        %v2154 = vrsqrt.pop %v2141
        %v2155 = vmul.f32 %v2154, %v2141
        %v2156 = vmul.f32 %v2155, %v2154
        %v2157 = vmul.f32 0.5, %v2156
        %v2158 = vsub.f32 1.5, %v2157
        %v2159 = vmul.f32 %v2154, %v2158
        %v2160 = vmul.f32 %v2141, %v2159
        %vm2161 = vcmp.eq.f32.partialorder %v2141, inf
        %v2162 = vsel %vm2161, %v2141, %v2160
        %vm2163 = vcmp.eq.f32.partialorder %v2141, 0.0
        %v2164 = vand.u32 %v2141, 2147483648
        %v2165 = vsel %vm2163, %v2164, %v2162
        %v2166 = vmax.f32 %v2153, 1e-12
        %v2167 = vmax.f32 %v2165, 1e-12
        %v2168 = vrcp.pop %v2166
        %v2169 = vrcp.pop %v2167
        %v2170 = vmul.f32 %v1940, %v2168
        %v2171 = vmul.f32 %v1941, %v2169
        %v2172 = vmul.f32 %v1942, %v2168
        %v2173 = vmul.f32 %v1943, %v2169
        %v2174 = vmul.f32 %v1944, %v2168
        %v2175 = vmul.f32 %v1945, %v2169
        %v2176 = vmul.f32 %v1946, %v2168
        %v2177 = vmul.f32 %v1947, %v2169
        %v2178 = vmul.f32 %v1948, %v2168
        %v2179 = vmul.f32 %v1949, %v2169
        %v2180 = vmul.f32 %v1950, %v2168
        %v2181 = vmul.f32 %v1951, %v2169
        %v2182 = vmul.f32 %v1952, %v2168
        %v2183 = vmul.f32 %v1953, %v2169
        %v2184 = vmul.f32 %v1954, %v2168
        %v2185 = vmul.f32 %v1955, %v2169
        %v2186 = vmul.f32 %v1956, %v2168
        %v2187 = vmul.f32 %v1957, %v2169
        %v2188 = vmul.f32 %v1958, %v2168
        %v2189 = vmul.f32 %v1959, %v2169
        %v2190 = vmul.f32 %v1960, %v2168
        %v2191 = vmul.f32 %v1961, %v2169
        %v2192 = vmul.f32 %v1962, %v2168
        %v2193 = vmul.f32 %v1963, %v2169
        %v2194 = vmul.f32 %v1964, %v2168
        %v2195 = vmul.f32 %v1965, %v2169
        %v2196 = vmul.f32 %v1966, %v2168
        %v2197 = vmul.f32 %v1967, %v2169
        %v2198 = vmul.f32 %v1968, %v2168
        %v2199 = vmul.f32 %v1969, %v2169
        %v2200 = vmul.f32 %v1970, %v2168
        %v2201 = vmul.f32 %v1971, %v2169
        %v2202 = vmul.f32 %v1972, %v2168
        %v2203 = vmul.f32 %v1973, %v2169
        %v2204 = vmul.f32 %v1974, %v2168
        %v2205 = vmul.f32 %v1975, %v2169
        %v2206 = vmul.f32 %v1976, %v2168
        %v2207 = vmul.f32 %v1977, %v2169
        %v2208 = vmul.f32 %v1978, %v2168
        %v2209 = vmul.f32 %v1979, %v2169
        %v2210 = vmul.f32 %v1980, %v2168
        %v2211 = vmul.f32 %v1981, %v2169
        %v2212 = vmul.f32 %v1982, %v2168
        %v2213 = vmul.f32 %v1983, %v2169
        %v2214 = vmul.f32 %v1984, %v2168
        %v2215 = vmul.f32 %v1985, %v2169
        %v2216 = vmul.f32 %v1986, %v2168
        %v2217 = vmul.f32 %v1987, %v2169
        %v2218 = vmul.f32 %v1988, %v2168
        %v2219 = vmul.f32 %v1989, %v2169
        %v2220 = vmul.f32 %v1990, %v2168
        %v2221 = vmul.f32 %v1991, %v2169
        %v2222 = vmul.f32 %v1992, %v2168
        %v2223 = vmul.f32 %v1993, %v2169
        %v2224 = vmul.f32 %v1994, %v2168
        %v2225 = vmul.f32 %v1995, %v2169
        %v2226 = vmul.f32 %v1996, %v2168
        %v2227 = vmul.f32 %v1997, %v2169
        %v2228 = vmul.f32 %v1998, %v2168
        %v2229 = vmul.f32 %v1999, %v2169
        %v2230 = vmul.f32 %v2000, %v2168
        %v2231 = vmul.f32 %v2001, %v2169
        %v2232 = vmul.f32 %v2002, %v2168
        %v2233 = vmul.f32 %v2003, %v2169
        %v2234 = vld [vmem:[%s304] sm:$0xff]
        %v2235 = vld [vmem:[%s304 + $0x8] sm:$0xff]
        %v2236 = vld [vmem:[%s304 + $0x10] sm:$0xff]
        %v2237 = vld [vmem:[%s304 + $0x18] sm:$0xff]
        %v2238 = vld [vmem:[%s304 + $0x20] sm:$0xff]
        %v2239 = vld [vmem:[%s304 + $0x28] sm:$0xff]
        %v2240 = vld [vmem:[%s304 + $0x30] sm:$0xff]
        %v2241 = vld [vmem:[%s304 + $0x38] sm:$0xff]
        %v2242 = vld [vmem:[%s304 + $0x40] sm:$0xff]
        %v2243 = vld [vmem:[%s304 + $0x48] sm:$0xff]
        %v2244 = vld [vmem:[%s304 + $0x50] sm:$0xff]
        %v2245 = vld [vmem:[%s304 + $0x58] sm:$0xff]
        %v2246 = vld [vmem:[%s304 + $0x60] sm:$0xff]
        %v2247 = vld [vmem:[%s304 + $0x68] sm:$0xff]
        %v2248 = vld [vmem:[%s304 + $0x70] sm:$0xff]
        %v2249 = vld [vmem:[%s304 + $0x78] sm:$0xff]
        %v2250 = vld [vmem:[%s304 + $0x80] sm:$0xff]
        %v2251 = vld [vmem:[%s304 + $0x88] sm:$0xff]
        %v2252 = vld [vmem:[%s304 + $0x90] sm:$0xff]
        %v2253 = vld [vmem:[%s304 + $0x98] sm:$0xff]
        %v2254 = vld [vmem:[%s304 + $0xa0] sm:$0xff]
        %v2255 = vld [vmem:[%s304 + $0xa8] sm:$0xff]
        %v2256 = vld [vmem:[%s304 + $0xb0] sm:$0xff]
        %v2257 = vld [vmem:[%s304 + $0xb8] sm:$0xff]
        %v2258 = vld [vmem:[%s304 + $0xc0] sm:$0xff]
        %v2259 = vld [vmem:[%s304 + $0xc8] sm:$0xff]
        %v2260 = vld [vmem:[%s304 + $0xd0] sm:$0xff]
        %v2261 = vld [vmem:[%s304 + $0xd8] sm:$0xff]
        %v2262 = vld [vmem:[%s304 + $0xe0] sm:$0xff]
        %v2263 = vld [vmem:[%s304 + $0xe8] sm:$0xff]
        %v2264 = vld [vmem:[%s304 + $0xf0] sm:$0xff]
        %v2265 = vld [vmem:[%s304 + $0xf8] sm:$0xff]
        %v2266 = vld [vmem:[%s4] sm:$0x3]
        %2268 = vset.pattern.permute.xlu0 0
        %2269 = vperm.xlu0 %2268, %v2234
        %v2270 = vpop.permute.xlu0 %2269
        %2273 = vset.pattern.permute.xlu0 0
        %2274 = vperm.xlu0 %2273, %v2235
        %v2275 = vpop.permute.xlu0 %2274
        %2278 = vset.pattern.permute.xlu0 0
        %2279 = vperm.xlu0 %2278, %v2236
        %v2280 = vpop.permute.xlu0 %2279
        %2283 = vset.pattern.permute.xlu0 0
        %2284 = vperm.xlu0 %2283, %v2237
        %v2285 = vpop.permute.xlu0 %2284
        %2288 = vset.pattern.permute.xlu0 0
        %2289 = vperm.xlu0 %2288, %v2238
        %v2290 = vpop.permute.xlu0 %2289
        %2293 = vset.pattern.permute.xlu0 0
        %2294 = vperm.xlu0 %2293, %v2239
        %v2295 = vpop.permute.xlu0 %2294
        %2298 = vset.pattern.permute.xlu0 0
        %2299 = vperm.xlu0 %2298, %v2240
        %v2300 = vpop.permute.xlu0 %2299
        %2303 = vset.pattern.permute.xlu0 0
        %2304 = vperm.xlu0 %2303, %v2241
        %v2305 = vpop.permute.xlu0 %2304
        %2308 = vset.pattern.permute.xlu0 0
        %2309 = vperm.xlu0 %2308, %v2242
        %v2310 = vpop.permute.xlu0 %2309
        %2313 = vset.pattern.permute.xlu0 0
        %2314 = vperm.xlu0 %2313, %v2243
        %v2315 = vpop.permute.xlu0 %2314
        %2318 = vset.pattern.permute.xlu0 0
        %2319 = vperm.xlu0 %2318, %v2244
        %v2320 = vpop.permute.xlu0 %2319
        %2323 = vset.pattern.permute.xlu0 0
        %2324 = vperm.xlu0 %2323, %v2245
        %v2325 = vpop.permute.xlu0 %2324
        %2328 = vset.pattern.permute.xlu0 0
        %2329 = vperm.xlu0 %2328, %v2246
        %v2330 = vpop.permute.xlu0 %2329
        %2333 = vset.pattern.permute.xlu0 0
        %2334 = vperm.xlu0 %2333, %v2247
        %v2335 = vpop.permute.xlu0 %2334
        %2338 = vset.pattern.permute.xlu0 0
        %2339 = vperm.xlu0 %2338, %v2248
        %v2340 = vpop.permute.xlu0 %2339
        %2343 = vset.pattern.permute.xlu0 0
        %2344 = vperm.xlu0 %2343, %v2249
        %v2345 = vpop.permute.xlu0 %2344
        %2348 = vset.pattern.permute.xlu0 0
        %2349 = vperm.xlu0 %2348, %v2250
        %v2350 = vpop.permute.xlu0 %2349
        %2353 = vset.pattern.permute.xlu0 0
        %2354 = vperm.xlu0 %2353, %v2251
        %v2355 = vpop.permute.xlu0 %2354
        %2358 = vset.pattern.permute.xlu0 0
        %2359 = vperm.xlu0 %2358, %v2252
        %v2360 = vpop.permute.xlu0 %2359
        %2363 = vset.pattern.permute.xlu0 0
        %2364 = vperm.xlu0 %2363, %v2253
        %v2365 = vpop.permute.xlu0 %2364
        %2368 = vset.pattern.permute.xlu0 0
        %2369 = vperm.xlu0 %2368, %v2254
        %v2370 = vpop.permute.xlu0 %2369
        %2373 = vset.pattern.permute.xlu0 0
        %2374 = vperm.xlu0 %2373, %v2255
        %v2375 = vpop.permute.xlu0 %2374
        %2378 = vset.pattern.permute.xlu0 0
        %2379 = vperm.xlu0 %2378, %v2256
        %v2380 = vpop.permute.xlu0 %2379
        %2383 = vset.pattern.permute.xlu0 0
        %2384 = vperm.xlu0 %2383, %v2257
        %v2385 = vpop.permute.xlu0 %2384
        %2388 = vset.pattern.permute.xlu0 0
        %2389 = vperm.xlu0 %2388, %v2258
        %v2390 = vpop.permute.xlu0 %2389
        %2393 = vset.pattern.permute.xlu0 0
        %2394 = vperm.xlu0 %2393, %v2259
        %v2395 = vpop.permute.xlu0 %2394
        %2398 = vset.pattern.permute.xlu0 0
        %2399 = vperm.xlu0 %2398, %v2260
        %v2400 = vpop.permute.xlu0 %2399
        %2403 = vset.pattern.permute.xlu0 0
        %2404 = vperm.xlu0 %2403, %v2261
        %v2405 = vpop.permute.xlu0 %2404
        %2408 = vset.pattern.permute.xlu0 0
        %2409 = vperm.xlu0 %2408, %v2262
        %v2410 = vpop.permute.xlu0 %2409
        %2413 = vset.pattern.permute.xlu0 0
        %2414 = vperm.xlu0 %2413, %v2263
        %v2415 = vpop.permute.xlu0 %2414
        %2418 = vset.pattern.permute.xlu0 0
        %2419 = vperm.xlu0 %2418, %v2264
        %v2420 = vpop.permute.xlu0 %2419
        %2423 = vset.pattern.permute.xlu0 0
        %2424 = vperm.xlu0 %2423, %v2265
        %v2425 = vpop.permute.xlu0 %2424
        %v2428 = vperm.slane %v2266, 0
        %v2429 = vperm.slane %v2266, 1
        %v2432 = vsub.f32 %v2270, %v2428
        %v2433 = vsub.f32 %v2270, %v2429
        %v2434 = vsub.f32 %v2275, %v2428
        %v2435 = vsub.f32 %v2275, %v2429
        %v2436 = vsub.f32 %v2280, %v2428
        %v2437 = vsub.f32 %v2280, %v2429
        %v2438 = vsub.f32 %v2285, %v2428
        %v2439 = vsub.f32 %v2285, %v2429
        %v2440 = vsub.f32 %v2290, %v2428
        %v2441 = vsub.f32 %v2290, %v2429
        %v2442 = vsub.f32 %v2295, %v2428
        %v2443 = vsub.f32 %v2295, %v2429
        %v2444 = vsub.f32 %v2300, %v2428
        %v2445 = vsub.f32 %v2300, %v2429
        %v2446 = vsub.f32 %v2305, %v2428
        %v2447 = vsub.f32 %v2305, %v2429
        %v2448 = vsub.f32 %v2310, %v2428
        %v2449 = vsub.f32 %v2310, %v2429
        %v2450 = vsub.f32 %v2315, %v2428
        %v2451 = vsub.f32 %v2315, %v2429
        %v2452 = vsub.f32 %v2320, %v2428
        %v2453 = vsub.f32 %v2320, %v2429
        %v2454 = vsub.f32 %v2325, %v2428
        %v2455 = vsub.f32 %v2325, %v2429
        %v2456 = vsub.f32 %v2330, %v2428
        %v2457 = vsub.f32 %v2330, %v2429
        %v2458 = vsub.f32 %v2335, %v2428
        %v2459 = vsub.f32 %v2335, %v2429
        %v2460 = vsub.f32 %v2340, %v2428
        %v2461 = vsub.f32 %v2340, %v2429
        %v2462 = vsub.f32 %v2345, %v2428
        %v2463 = vsub.f32 %v2345, %v2429
        %v2464 = vsub.f32 %v2350, %v2428
        %v2465 = vsub.f32 %v2350, %v2429
        %v2466 = vsub.f32 %v2355, %v2428
        %v2467 = vsub.f32 %v2355, %v2429
        %v2468 = vsub.f32 %v2360, %v2428
        %v2469 = vsub.f32 %v2360, %v2429
        %v2470 = vsub.f32 %v2365, %v2428
        %v2471 = vsub.f32 %v2365, %v2429
        %v2472 = vsub.f32 %v2370, %v2428
        %v2473 = vsub.f32 %v2370, %v2429
        %v2474 = vsub.f32 %v2375, %v2428
        %v2475 = vsub.f32 %v2375, %v2429
        %v2476 = vsub.f32 %v2380, %v2428
        %v2477 = vsub.f32 %v2380, %v2429
        %v2478 = vsub.f32 %v2385, %v2428
        %v2479 = vsub.f32 %v2385, %v2429
        %v2480 = vsub.f32 %v2390, %v2428
        %v2481 = vsub.f32 %v2390, %v2429
        %v2482 = vsub.f32 %v2395, %v2428
        %v2483 = vsub.f32 %v2395, %v2429
        %v2484 = vsub.f32 %v2400, %v2428
        %v2485 = vsub.f32 %v2400, %v2429
        %v2486 = vsub.f32 %v2405, %v2428
        %v2487 = vsub.f32 %v2405, %v2429
        %v2488 = vsub.f32 %v2410, %v2428
        %v2489 = vsub.f32 %v2410, %v2429
        %v2490 = vsub.f32 %v2415, %v2428
        %v2491 = vsub.f32 %v2415, %v2429
        %v2492 = vsub.f32 %v2420, %v2428
        %v2493 = vsub.f32 %v2420, %v2429
        %v2494 = vsub.f32 %v2425, %v2428
        %v2495 = vsub.f32 %v2425, %v2429
        %v2496 = vld [vmem:[%s309] sm:$0xff]
        %v2497 = vld [vmem:[%s309 + $0x8] sm:$0xff]
        %v2498 = vld [vmem:[%s309 + $0x10] sm:$0xff]
        %v2499 = vld [vmem:[%s309 + $0x18] sm:$0xff]
        %v2500 = vld [vmem:[%s309 + $0x20] sm:$0xff]
        %v2501 = vld [vmem:[%s309 + $0x28] sm:$0xff]
        %v2502 = vld [vmem:[%s309 + $0x30] sm:$0xff]
        %v2503 = vld [vmem:[%s309 + $0x38] sm:$0xff]
        %v2504 = vld [vmem:[%s309 + $0x40] sm:$0xff]
        %v2505 = vld [vmem:[%s309 + $0x48] sm:$0xff]
        %v2506 = vld [vmem:[%s309 + $0x50] sm:$0xff]
        %v2507 = vld [vmem:[%s309 + $0x58] sm:$0xff]
        %v2508 = vld [vmem:[%s309 + $0x60] sm:$0xff]
        %v2509 = vld [vmem:[%s309 + $0x68] sm:$0xff]
        %v2510 = vld [vmem:[%s309 + $0x70] sm:$0xff]
        %v2511 = vld [vmem:[%s309 + $0x78] sm:$0xff]
        %v2512 = vld [vmem:[%s309 + $0x80] sm:$0xff]
        %v2513 = vld [vmem:[%s309 + $0x88] sm:$0xff]
        %v2514 = vld [vmem:[%s309 + $0x90] sm:$0xff]
        %v2515 = vld [vmem:[%s309 + $0x98] sm:$0xff]
        %v2516 = vld [vmem:[%s309 + $0xa0] sm:$0xff]
        %v2517 = vld [vmem:[%s309 + $0xa8] sm:$0xff]
        %v2518 = vld [vmem:[%s309 + $0xb0] sm:$0xff]
        %v2519 = vld [vmem:[%s309 + $0xb8] sm:$0xff]
        %v2520 = vld [vmem:[%s309 + $0xc0] sm:$0xff]
        %v2521 = vld [vmem:[%s309 + $0xc8] sm:$0xff]
        %v2522 = vld [vmem:[%s309 + $0xd0] sm:$0xff]
        %v2523 = vld [vmem:[%s309 + $0xd8] sm:$0xff]
        %v2524 = vld [vmem:[%s309 + $0xe0] sm:$0xff]
        %v2525 = vld [vmem:[%s309 + $0xe8] sm:$0xff]
        %v2526 = vld [vmem:[%s309 + $0xf0] sm:$0xff]
        %v2527 = vld [vmem:[%s309 + $0xf8] sm:$0xff]
        %v2528 = vld [vmem:[%s5] sm:$0x3]
        %2530 = vset.pattern.permute.xlu0 0
        %2531 = vperm.xlu0 %2530, %v2496
        %v2532 = vpop.permute.xlu0 %2531
        %2535 = vset.pattern.permute.xlu0 0
        %2536 = vperm.xlu0 %2535, %v2497
        %v2537 = vpop.permute.xlu0 %2536
        %2540 = vset.pattern.permute.xlu0 0
        %2541 = vperm.xlu0 %2540, %v2498
        %v2542 = vpop.permute.xlu0 %2541
        %2545 = vset.pattern.permute.xlu0 0
        %2546 = vperm.xlu0 %2545, %v2499
        %v2547 = vpop.permute.xlu0 %2546
        %2550 = vset.pattern.permute.xlu0 0
        %2551 = vperm.xlu0 %2550, %v2500
        %v2552 = vpop.permute.xlu0 %2551
        %2555 = vset.pattern.permute.xlu0 0
        %2556 = vperm.xlu0 %2555, %v2501
        %v2557 = vpop.permute.xlu0 %2556
        %2560 = vset.pattern.permute.xlu0 0
        %2561 = vperm.xlu0 %2560, %v2502
        %v2562 = vpop.permute.xlu0 %2561
        %2565 = vset.pattern.permute.xlu0 0
        %2566 = vperm.xlu0 %2565, %v2503
        %v2567 = vpop.permute.xlu0 %2566
        %2570 = vset.pattern.permute.xlu0 0
        %2571 = vperm.xlu0 %2570, %v2504
        %v2572 = vpop.permute.xlu0 %2571
        %2575 = vset.pattern.permute.xlu0 0
        %2576 = vperm.xlu0 %2575, %v2505
        %v2577 = vpop.permute.xlu0 %2576
        %2580 = vset.pattern.permute.xlu0 0
        %2581 = vperm.xlu0 %2580, %v2506
        %v2582 = vpop.permute.xlu0 %2581
        %2585 = vset.pattern.permute.xlu0 0
        %2586 = vperm.xlu0 %2585, %v2507
        %v2587 = vpop.permute.xlu0 %2586
        %2590 = vset.pattern.permute.xlu0 0
        %2591 = vperm.xlu0 %2590, %v2508
        %v2592 = vpop.permute.xlu0 %2591
        %2595 = vset.pattern.permute.xlu0 0
        %2596 = vperm.xlu0 %2595, %v2509
        %v2597 = vpop.permute.xlu0 %2596
        %2600 = vset.pattern.permute.xlu0 0
        %2601 = vperm.xlu0 %2600, %v2510
        %v2602 = vpop.permute.xlu0 %2601
        %2605 = vset.pattern.permute.xlu0 0
        %2606 = vperm.xlu0 %2605, %v2511
        %v2607 = vpop.permute.xlu0 %2606
        %2610 = vset.pattern.permute.xlu0 0
        %2611 = vperm.xlu0 %2610, %v2512
        %v2612 = vpop.permute.xlu0 %2611
        %2615 = vset.pattern.permute.xlu0 0
        %2616 = vperm.xlu0 %2615, %v2513
        %v2617 = vpop.permute.xlu0 %2616
        %2620 = vset.pattern.permute.xlu0 0
        %2621 = vperm.xlu0 %2620, %v2514
        %v2622 = vpop.permute.xlu0 %2621
        %2625 = vset.pattern.permute.xlu0 0
        %2626 = vperm.xlu0 %2625, %v2515
        %v2627 = vpop.permute.xlu0 %2626
        %2630 = vset.pattern.permute.xlu0 0
        %2631 = vperm.xlu0 %2630, %v2516
        %v2632 = vpop.permute.xlu0 %2631
        %2635 = vset.pattern.permute.xlu0 0
        %2636 = vperm.xlu0 %2635, %v2517
        %v2637 = vpop.permute.xlu0 %2636
        %2640 = vset.pattern.permute.xlu0 0
        %2641 = vperm.xlu0 %2640, %v2518
        %v2642 = vpop.permute.xlu0 %2641
        %2645 = vset.pattern.permute.xlu0 0
        %2646 = vperm.xlu0 %2645, %v2519
        %v2647 = vpop.permute.xlu0 %2646
        %2650 = vset.pattern.permute.xlu0 0
        %2651 = vperm.xlu0 %2650, %v2520
        %v2652 = vpop.permute.xlu0 %2651
        %2655 = vset.pattern.permute.xlu0 0
        %2656 = vperm.xlu0 %2655, %v2521
        %v2657 = vpop.permute.xlu0 %2656
        %2660 = vset.pattern.permute.xlu0 0
        %2661 = vperm.xlu0 %2660, %v2522
        %v2662 = vpop.permute.xlu0 %2661
        %2665 = vset.pattern.permute.xlu0 0
        %2666 = vperm.xlu0 %2665, %v2523
        %v2667 = vpop.permute.xlu0 %2666
        %2670 = vset.pattern.permute.xlu0 0
        %2671 = vperm.xlu0 %2670, %v2524
        %v2672 = vpop.permute.xlu0 %2671
        %2675 = vset.pattern.permute.xlu0 0
        %2676 = vperm.xlu0 %2675, %v2525
        %v2677 = vpop.permute.xlu0 %2676
        %2680 = vset.pattern.permute.xlu0 0
        %2681 = vperm.xlu0 %2680, %v2526
        %v2682 = vpop.permute.xlu0 %2681
        %2685 = vset.pattern.permute.xlu0 0
        %2686 = vperm.xlu0 %2685, %v2527
        %v2687 = vpop.permute.xlu0 %2686
        %v2690 = vperm.slane %v2528, 0
        %v2691 = vperm.slane %v2528, 1
        %v2694 = vsub.f32 %v2532, %v2690
        %v2695 = vsub.f32 %v2532, %v2691
        %v2696 = vsub.f32 %v2537, %v2690
        %v2697 = vsub.f32 %v2537, %v2691
        %v2698 = vsub.f32 %v2542, %v2690
        %v2699 = vsub.f32 %v2542, %v2691
        %v2700 = vsub.f32 %v2547, %v2690
        %v2701 = vsub.f32 %v2547, %v2691
        %v2702 = vsub.f32 %v2552, %v2690
        %v2703 = vsub.f32 %v2552, %v2691
        %v2704 = vsub.f32 %v2557, %v2690
        %v2705 = vsub.f32 %v2557, %v2691
        %v2706 = vsub.f32 %v2562, %v2690
        %v2707 = vsub.f32 %v2562, %v2691
        %v2708 = vsub.f32 %v2567, %v2690
        %v2709 = vsub.f32 %v2567, %v2691
        %v2710 = vsub.f32 %v2572, %v2690
        %v2711 = vsub.f32 %v2572, %v2691
        %v2712 = vsub.f32 %v2577, %v2690
        %v2713 = vsub.f32 %v2577, %v2691
        %v2714 = vsub.f32 %v2582, %v2690
        %v2715 = vsub.f32 %v2582, %v2691
        %v2716 = vsub.f32 %v2587, %v2690
        %v2717 = vsub.f32 %v2587, %v2691
        %v2718 = vsub.f32 %v2592, %v2690
        %v2719 = vsub.f32 %v2592, %v2691
        %v2720 = vsub.f32 %v2597, %v2690
        %v2721 = vsub.f32 %v2597, %v2691
        %v2722 = vsub.f32 %v2602, %v2690
        %v2723 = vsub.f32 %v2602, %v2691
        %v2724 = vsub.f32 %v2607, %v2690
        %v2725 = vsub.f32 %v2607, %v2691
        %v2726 = vsub.f32 %v2612, %v2690
        %v2727 = vsub.f32 %v2612, %v2691
        %v2728 = vsub.f32 %v2617, %v2690
        %v2729 = vsub.f32 %v2617, %v2691
        %v2730 = vsub.f32 %v2622, %v2690
        %v2731 = vsub.f32 %v2622, %v2691
        %v2732 = vsub.f32 %v2627, %v2690
        %v2733 = vsub.f32 %v2627, %v2691
        %v2734 = vsub.f32 %v2632, %v2690
        %v2735 = vsub.f32 %v2632, %v2691
        %v2736 = vsub.f32 %v2637, %v2690
        %v2737 = vsub.f32 %v2637, %v2691
        %v2738 = vsub.f32 %v2642, %v2690
        %v2739 = vsub.f32 %v2642, %v2691
        %v2740 = vsub.f32 %v2647, %v2690
        %v2741 = vsub.f32 %v2647, %v2691
        %v2742 = vsub.f32 %v2652, %v2690
        %v2743 = vsub.f32 %v2652, %v2691
        %v2744 = vsub.f32 %v2657, %v2690
        %v2745 = vsub.f32 %v2657, %v2691
        %v2746 = vsub.f32 %v2662, %v2690
        %v2747 = vsub.f32 %v2662, %v2691
        %v2748 = vsub.f32 %v2667, %v2690
        %v2749 = vsub.f32 %v2667, %v2691
        %v2750 = vsub.f32 %v2672, %v2690
        %v2751 = vsub.f32 %v2672, %v2691
        %v2752 = vsub.f32 %v2677, %v2690
        %v2753 = vsub.f32 %v2677, %v2691
        %v2754 = vsub.f32 %v2682, %v2690
        %v2755 = vsub.f32 %v2682, %v2691
        %v2756 = vsub.f32 %v2687, %v2690
        %v2757 = vsub.f32 %v2687, %v2691
        %v2758 = vmul.f32 %v2432, %v2432
        %v2759 = vmul.f32 %v2433, %v2433
        %v2760 = vmul.f32 %v2434, %v2434
        %v2761 = vmul.f32 %v2435, %v2435
        %v2762 = vmul.f32 %v2436, %v2436
        %v2763 = vmul.f32 %v2437, %v2437
        %v2764 = vmul.f32 %v2438, %v2438
        %v2765 = vmul.f32 %v2439, %v2439
        %v2766 = vmul.f32 %v2440, %v2440
        %v2767 = vmul.f32 %v2441, %v2441
        %v2768 = vmul.f32 %v2442, %v2442
        %v2769 = vmul.f32 %v2443, %v2443
        %v2770 = vmul.f32 %v2444, %v2444
        %v2771 = vmul.f32 %v2445, %v2445
        %v2772 = vmul.f32 %v2446, %v2446
        %v2773 = vmul.f32 %v2447, %v2447
        %v2774 = vmul.f32 %v2448, %v2448
        %v2775 = vmul.f32 %v2449, %v2449
        %v2776 = vmul.f32 %v2450, %v2450
        %v2777 = vmul.f32 %v2451, %v2451
        %v2778 = vmul.f32 %v2452, %v2452
        %v2779 = vmul.f32 %v2453, %v2453
        %v2780 = vmul.f32 %v2454, %v2454
        %v2781 = vmul.f32 %v2455, %v2455
        %v2782 = vmul.f32 %v2456, %v2456
        %v2783 = vmul.f32 %v2457, %v2457
        %v2784 = vmul.f32 %v2458, %v2458
        %v2785 = vmul.f32 %v2459, %v2459
        %v2786 = vmul.f32 %v2460, %v2460
        %v2787 = vmul.f32 %v2461, %v2461
        %v2788 = vmul.f32 %v2462, %v2462
        %v2789 = vmul.f32 %v2463, %v2463
        %v2790 = vmul.f32 %v2464, %v2464
        %v2791 = vmul.f32 %v2465, %v2465
        %v2792 = vmul.f32 %v2466, %v2466
        %v2793 = vmul.f32 %v2467, %v2467
        %v2794 = vmul.f32 %v2468, %v2468
        %v2795 = vmul.f32 %v2469, %v2469
        %v2796 = vmul.f32 %v2470, %v2470
        %v2797 = vmul.f32 %v2471, %v2471
        %v2798 = vmul.f32 %v2472, %v2472
        %v2799 = vmul.f32 %v2473, %v2473
        %v2800 = vmul.f32 %v2474, %v2474
        %v2801 = vmul.f32 %v2475, %v2475
        %v2802 = vmul.f32 %v2476, %v2476
        %v2803 = vmul.f32 %v2477, %v2477
        %v2804 = vmul.f32 %v2478, %v2478
        %v2805 = vmul.f32 %v2479, %v2479
        %v2806 = vmul.f32 %v2480, %v2480
        %v2807 = vmul.f32 %v2481, %v2481
        %v2808 = vmul.f32 %v2482, %v2482
        %v2809 = vmul.f32 %v2483, %v2483
        %v2810 = vmul.f32 %v2484, %v2484
        %v2811 = vmul.f32 %v2485, %v2485
        %v2812 = vmul.f32 %v2486, %v2486
        %v2813 = vmul.f32 %v2487, %v2487
        %v2814 = vmul.f32 %v2488, %v2488
        %v2815 = vmul.f32 %v2489, %v2489
        %v2816 = vmul.f32 %v2490, %v2490
        %v2817 = vmul.f32 %v2491, %v2491
        %v2818 = vmul.f32 %v2492, %v2492
        %v2819 = vmul.f32 %v2493, %v2493
        %v2820 = vmul.f32 %v2494, %v2494
        %v2821 = vmul.f32 %v2495, %v2495
        %v2822 = vmul.f32 %v2694, %v2694
        %v2823 = vmul.f32 %v2695, %v2695
        %v2824 = vmul.f32 %v2696, %v2696
        %v2825 = vmul.f32 %v2697, %v2697
        %v2826 = vmul.f32 %v2698, %v2698
        %v2827 = vmul.f32 %v2699, %v2699
        %v2828 = vmul.f32 %v2700, %v2700
        %v2829 = vmul.f32 %v2701, %v2701
        %v2830 = vmul.f32 %v2702, %v2702
        %v2831 = vmul.f32 %v2703, %v2703
        %v2832 = vmul.f32 %v2704, %v2704
        %v2833 = vmul.f32 %v2705, %v2705
        %v2834 = vmul.f32 %v2706, %v2706
        %v2835 = vmul.f32 %v2707, %v2707
        %v2836 = vmul.f32 %v2708, %v2708
        %v2837 = vmul.f32 %v2709, %v2709
        %v2838 = vmul.f32 %v2710, %v2710
        %v2839 = vmul.f32 %v2711, %v2711
        %v2840 = vmul.f32 %v2712, %v2712
        %v2841 = vmul.f32 %v2713, %v2713
        %v2842 = vmul.f32 %v2714, %v2714
        %v2843 = vmul.f32 %v2715, %v2715
        %v2844 = vmul.f32 %v2716, %v2716
        %v2845 = vmul.f32 %v2717, %v2717
        %v2846 = vmul.f32 %v2718, %v2718
        %v2847 = vmul.f32 %v2719, %v2719
        %v2848 = vmul.f32 %v2720, %v2720
        %v2849 = vmul.f32 %v2721, %v2721
        %v2850 = vmul.f32 %v2722, %v2722
        %v2851 = vmul.f32 %v2723, %v2723
        %v2852 = vmul.f32 %v2724, %v2724
        %v2853 = vmul.f32 %v2725, %v2725
        %v2854 = vmul.f32 %v2726, %v2726
        %v2855 = vmul.f32 %v2727, %v2727
        %v2856 = vmul.f32 %v2728, %v2728
        %v2857 = vmul.f32 %v2729, %v2729
        %v2858 = vmul.f32 %v2730, %v2730
        %v2859 = vmul.f32 %v2731, %v2731
        %v2860 = vmul.f32 %v2732, %v2732
        %v2861 = vmul.f32 %v2733, %v2733
        %v2862 = vmul.f32 %v2734, %v2734
        %v2863 = vmul.f32 %v2735, %v2735
        %v2864 = vmul.f32 %v2736, %v2736
        %v2865 = vmul.f32 %v2737, %v2737
        %v2866 = vmul.f32 %v2738, %v2738
        %v2867 = vmul.f32 %v2739, %v2739
        %v2868 = vmul.f32 %v2740, %v2740
        %v2869 = vmul.f32 %v2741, %v2741
        %v2870 = vmul.f32 %v2742, %v2742
        %v2871 = vmul.f32 %v2743, %v2743
        %v2872 = vmul.f32 %v2744, %v2744
        %v2873 = vmul.f32 %v2745, %v2745
        %v2874 = vmul.f32 %v2746, %v2746
        %v2875 = vmul.f32 %v2747, %v2747
        %v2876 = vmul.f32 %v2748, %v2748
        %v2877 = vmul.f32 %v2749, %v2749
        %v2878 = vmul.f32 %v2750, %v2750
        %v2879 = vmul.f32 %v2751, %v2751
        %v2880 = vmul.f32 %v2752, %v2752
        %v2881 = vmul.f32 %v2753, %v2753
        %v2882 = vmul.f32 %v2754, %v2754
        %v2883 = vmul.f32 %v2755, %v2755
        %v2884 = vmul.f32 %v2756, %v2756
        %v2885 = vmul.f32 %v2757, %v2757
        %v2886 = vadd.f32 %v2758, %v2822
        %v2887 = vadd.f32 %v2759, %v2823
        %v2888 = vadd.f32 %v2760, %v2824
        %v2889 = vadd.f32 %v2761, %v2825
        %v2890 = vadd.f32 %v2762, %v2826
        %v2891 = vadd.f32 %v2763, %v2827
        %v2892 = vadd.f32 %v2764, %v2828
        %v2893 = vadd.f32 %v2765, %v2829
        %v2894 = vadd.f32 %v2766, %v2830
        %v2895 = vadd.f32 %v2767, %v2831
        %v2896 = vadd.f32 %v2768, %v2832
        %v2897 = vadd.f32 %v2769, %v2833
        %v2898 = vadd.f32 %v2770, %v2834
        %v2899 = vadd.f32 %v2771, %v2835
        %v2900 = vadd.f32 %v2772, %v2836
        %v2901 = vadd.f32 %v2773, %v2837
        %v2902 = vadd.f32 %v2774, %v2838
        %v2903 = vadd.f32 %v2775, %v2839
        %v2904 = vadd.f32 %v2776, %v2840
        %v2905 = vadd.f32 %v2777, %v2841
        %v2906 = vadd.f32 %v2778, %v2842
        %v2907 = vadd.f32 %v2779, %v2843
        %v2908 = vadd.f32 %v2780, %v2844
        %v2909 = vadd.f32 %v2781, %v2845
        %v2910 = vadd.f32 %v2782, %v2846
        %v2911 = vadd.f32 %v2783, %v2847
        %v2912 = vadd.f32 %v2784, %v2848
        %v2913 = vadd.f32 %v2785, %v2849
        %v2914 = vadd.f32 %v2786, %v2850
        %v2915 = vadd.f32 %v2787, %v2851
        %v2916 = vadd.f32 %v2788, %v2852
        %v2917 = vadd.f32 %v2789, %v2853
        %v2918 = vadd.f32 %v2790, %v2854
        %v2919 = vadd.f32 %v2791, %v2855
        %v2920 = vadd.f32 %v2792, %v2856
        %v2921 = vadd.f32 %v2793, %v2857
        %v2922 = vadd.f32 %v2794, %v2858
        %v2923 = vadd.f32 %v2795, %v2859
        %v2924 = vadd.f32 %v2796, %v2860
        %v2925 = vadd.f32 %v2797, %v2861
        %v2926 = vadd.f32 %v2798, %v2862
        %v2927 = vadd.f32 %v2799, %v2863
        %v2928 = vadd.f32 %v2800, %v2864
        %v2929 = vadd.f32 %v2801, %v2865
        %v2930 = vadd.f32 %v2802, %v2866
        %v2931 = vadd.f32 %v2803, %v2867
        %v2932 = vadd.f32 %v2804, %v2868
        %v2933 = vadd.f32 %v2805, %v2869
        %v2934 = vadd.f32 %v2806, %v2870
        %v2935 = vadd.f32 %v2807, %v2871
        %v2936 = vadd.f32 %v2808, %v2872
        %v2937 = vadd.f32 %v2809, %v2873
        %v2938 = vadd.f32 %v2810, %v2874
        %v2939 = vadd.f32 %v2811, %v2875
        %v2940 = vadd.f32 %v2812, %v2876
        %v2941 = vadd.f32 %v2813, %v2877
        %v2942 = vadd.f32 %v2814, %v2878
        %v2943 = vadd.f32 %v2815, %v2879
        %v2944 = vadd.f32 %v2816, %v2880
        %v2945 = vadd.f32 %v2817, %v2881
        %v2946 = vadd.f32 %v2818, %v2882
        %v2947 = vadd.f32 %v2819, %v2883
        %v2948 = vadd.f32 %v2820, %v2884
        %v2949 = vadd.f32 %v2821, %v2885
        %v2950 = vsub.f32 1.0, %v2170
        %v2951 = vsub.f32 1.0, %v2171
        %v2952 = vsub.f32 1.0, %v2172
        %v2953 = vsub.f32 1.0, %v2173
        %v2954 = vsub.f32 1.0, %v2174
        %v2955 = vsub.f32 1.0, %v2175
        %v2956 = vsub.f32 1.0, %v2176
        %v2957 = vsub.f32 1.0, %v2177
        %v2958 = vsub.f32 1.0, %v2178
        %v2959 = vsub.f32 1.0, %v2179
        %v2960 = vsub.f32 1.0, %v2180
        %v2961 = vsub.f32 1.0, %v2181
        %v2962 = vsub.f32 1.0, %v2182
        %v2963 = vsub.f32 1.0, %v2183
        %v2964 = vsub.f32 1.0, %v2184
        %v2965 = vsub.f32 1.0, %v2185
        %v2966 = vsub.f32 1.0, %v2186
        %v2967 = vsub.f32 1.0, %v2187
        %v2968 = vsub.f32 1.0, %v2188
        %v2969 = vsub.f32 1.0, %v2189
        %v2970 = vsub.f32 1.0, %v2190
        %v2971 = vsub.f32 1.0, %v2191
        %v2972 = vsub.f32 1.0, %v2192
        %v2973 = vsub.f32 1.0, %v2193
        %v2974 = vsub.f32 1.0, %v2194
        %v2975 = vsub.f32 1.0, %v2195
        %v2976 = vsub.f32 1.0, %v2196
        %v2977 = vsub.f32 1.0, %v2197
        %v2978 = vsub.f32 1.0, %v2198
        %v2979 = vsub.f32 1.0, %v2199
        %v2980 = vsub.f32 1.0, %v2200
        %v2981 = vsub.f32 1.0, %v2201
        %v2982 = vsub.f32 1.0, %v2202
        %v2983 = vsub.f32 1.0, %v2203
        %v2984 = vsub.f32 1.0, %v2204
        %v2985 = vsub.f32 1.0, %v2205
        %v2986 = vsub.f32 1.0, %v2206
        %v2987 = vsub.f32 1.0, %v2207
        %v2988 = vsub.f32 1.0, %v2208
        %v2989 = vsub.f32 1.0, %v2209
        %v2990 = vsub.f32 1.0, %v2210
        %v2991 = vsub.f32 1.0, %v2211
        %v2992 = vsub.f32 1.0, %v2212
        %v2993 = vsub.f32 1.0, %v2213
        %v2994 = vsub.f32 1.0, %v2214
        %v2995 = vsub.f32 1.0, %v2215
        %v2996 = vsub.f32 1.0, %v2216
        %v2997 = vsub.f32 1.0, %v2217
        %v2998 = vsub.f32 1.0, %v2218
        %v2999 = vsub.f32 1.0, %v2219
        %v3000 = vsub.f32 1.0, %v2220
        %v3001 = vsub.f32 1.0, %v2221
        %v3002 = vsub.f32 1.0, %v2222
        %v3003 = vsub.f32 1.0, %v2223
        %v3004 = vsub.f32 1.0, %v2224
        %v3005 = vsub.f32 1.0, %v2225
        %v3006 = vsub.f32 1.0, %v2226
        %v3007 = vsub.f32 1.0, %v2227
        %v3008 = vsub.f32 1.0, %v2228
        %v3009 = vsub.f32 1.0, %v2229
        %v3010 = vsub.f32 1.0, %v2230
        %v3011 = vsub.f32 1.0, %v2231
        %v3012 = vsub.f32 1.0, %v2232
        %v3013 = vsub.f32 1.0, %v2233
        %v3014 = vmax.f32 %v2950, 0.0
        %v3015 = vmax.f32 %v2951, 0.0
        %v3016 = vmax.f32 %v2952, 0.0
        %v3017 = vmax.f32 %v2953, 0.0
        %v3018 = vmax.f32 %v2954, 0.0
        %v3019 = vmax.f32 %v2955, 0.0
        %v3020 = vmax.f32 %v2956, 0.0
        %v3021 = vmax.f32 %v2957, 0.0
        %v3022 = vmax.f32 %v2958, 0.0
        %v3023 = vmax.f32 %v2959, 0.0
        %v3024 = vmax.f32 %v2960, 0.0
        %v3025 = vmax.f32 %v2961, 0.0
        %v3026 = vmax.f32 %v2962, 0.0
        %v3027 = vmax.f32 %v2963, 0.0
        %v3028 = vmax.f32 %v2964, 0.0
        %v3029 = vmax.f32 %v2965, 0.0
        %v3030 = vmax.f32 %v2966, 0.0
        %v3031 = vmax.f32 %v2967, 0.0
        %v3032 = vmax.f32 %v2968, 0.0
        %v3033 = vmax.f32 %v2969, 0.0
        %v3034 = vmax.f32 %v2970, 0.0
        %v3035 = vmax.f32 %v2971, 0.0
        %v3036 = vmax.f32 %v2972, 0.0
        %v3037 = vmax.f32 %v2973, 0.0
        %v3038 = vmax.f32 %v2974, 0.0
        %v3039 = vmax.f32 %v2975, 0.0
        %v3040 = vmax.f32 %v2976, 0.0
        %v3041 = vmax.f32 %v2977, 0.0
        %v3042 = vmax.f32 %v2978, 0.0
        %v3043 = vmax.f32 %v2979, 0.0
        %v3044 = vmax.f32 %v2980, 0.0
        %v3045 = vmax.f32 %v2981, 0.0
        %v3046 = vmax.f32 %v2982, 0.0
        %v3047 = vmax.f32 %v2983, 0.0
        %v3048 = vmax.f32 %v2984, 0.0
        %v3049 = vmax.f32 %v2985, 0.0
        %v3050 = vmax.f32 %v2986, 0.0
        %v3051 = vmax.f32 %v2987, 0.0
        %v3052 = vmax.f32 %v2988, 0.0
        %v3053 = vmax.f32 %v2989, 0.0
        %v3054 = vmax.f32 %v2990, 0.0
        %v3055 = vmax.f32 %v2991, 0.0
        %v3056 = vmax.f32 %v2992, 0.0
        %v3057 = vmax.f32 %v2993, 0.0
        %v3058 = vmax.f32 %v2994, 0.0
        %v3059 = vmax.f32 %v2995, 0.0
        %v3060 = vmax.f32 %v2996, 0.0
        %v3061 = vmax.f32 %v2997, 0.0
        %v3062 = vmax.f32 %v2998, 0.0
        %v3063 = vmax.f32 %v2999, 0.0
        %v3064 = vmax.f32 %v3000, 0.0
        %v3065 = vmax.f32 %v3001, 0.0
        %v3066 = vmax.f32 %v3002, 0.0
        %v3067 = vmax.f32 %v3003, 0.0
        %v3068 = vmax.f32 %v3004, 0.0
        %v3069 = vmax.f32 %v3005, 0.0
        %v3070 = vmax.f32 %v3006, 0.0
        %v3071 = vmax.f32 %v3007, 0.0
        %v3072 = vmax.f32 %v3008, 0.0
        %v3073 = vmax.f32 %v3009, 0.0
        %v3074 = vmax.f32 %v3010, 0.0
        %v3075 = vmax.f32 %v3011, 0.0
        %v3076 = vmax.f32 %v3012, 0.0
        %v3077 = vmax.f32 %v3013, 0.0
        %v3078 = vsub.f32 %v2170, 0.2
        %v3079 = vsub.f32 %v2171, 0.2
        %v3080 = vsub.f32 %v2172, 0.2
        %v3081 = vsub.f32 %v2173, 0.2
        %v3082 = vsub.f32 %v2174, 0.2
        %v3083 = vsub.f32 %v2175, 0.2
        %v3084 = vsub.f32 %v2176, 0.2
        %v3085 = vsub.f32 %v2177, 0.2
        %v3086 = vsub.f32 %v2178, 0.2
        %v3087 = vsub.f32 %v2179, 0.2
        %v3088 = vsub.f32 %v2180, 0.2
        %v3089 = vsub.f32 %v2181, 0.2
        %v3090 = vsub.f32 %v2182, 0.2
        %v3091 = vsub.f32 %v2183, 0.2
        %v3092 = vsub.f32 %v2184, 0.2
        %v3093 = vsub.f32 %v2185, 0.2
        %v3094 = vsub.f32 %v2186, 0.2
        %v3095 = vsub.f32 %v2187, 0.2
        %v3096 = vsub.f32 %v2188, 0.2
        %v3097 = vsub.f32 %v2189, 0.2
        %v3098 = vsub.f32 %v2190, 0.2
        %v3099 = vsub.f32 %v2191, 0.2
        %v3100 = vsub.f32 %v2192, 0.2
        %v3101 = vsub.f32 %v2193, 0.2
        %v3102 = vsub.f32 %v2194, 0.2
        %v3103 = vsub.f32 %v2195, 0.2
        %v3104 = vsub.f32 %v2196, 0.2
        %v3105 = vsub.f32 %v2197, 0.2
        %v3106 = vsub.f32 %v2198, 0.2
        %v3107 = vsub.f32 %v2199, 0.2
        %v3108 = vsub.f32 %v2200, 0.2
        %v3109 = vsub.f32 %v2201, 0.2
        %v3110 = vsub.f32 %v2202, 0.2
        %v3111 = vsub.f32 %v2203, 0.2
        %v3112 = vsub.f32 %v2204, 0.2
        %v3113 = vsub.f32 %v2205, 0.2
        %v3114 = vsub.f32 %v2206, 0.2
        %v3115 = vsub.f32 %v2207, 0.2
        %v3116 = vsub.f32 %v2208, 0.2
        %v3117 = vsub.f32 %v2209, 0.2
        %v3118 = vsub.f32 %v2210, 0.2
        %v3119 = vsub.f32 %v2211, 0.2
        %v3120 = vsub.f32 %v2212, 0.2
        %v3121 = vsub.f32 %v2213, 0.2
        %v3122 = vsub.f32 %v2214, 0.2
        %v3123 = vsub.f32 %v2215, 0.2
        %v3124 = vsub.f32 %v2216, 0.2
        %v3125 = vsub.f32 %v2217, 0.2
        %v3126 = vsub.f32 %v2218, 0.2
        %v3127 = vsub.f32 %v2219, 0.2
        %v3128 = vsub.f32 %v2220, 0.2
        %v3129 = vsub.f32 %v2221, 0.2
        %v3130 = vsub.f32 %v2222, 0.2
        %v3131 = vsub.f32 %v2223, 0.2
        %v3132 = vsub.f32 %v2224, 0.2
        %v3133 = vsub.f32 %v2225, 0.2
        %v3134 = vsub.f32 %v2226, 0.2
        %v3135 = vsub.f32 %v2227, 0.2
        %v3136 = vsub.f32 %v2228, 0.2
        %v3137 = vsub.f32 %v2229, 0.2
        %v3138 = vsub.f32 %v2230, 0.2
        %v3139 = vsub.f32 %v2231, 0.2
        %v3140 = vsub.f32 %v2232, 0.2
        %v3141 = vsub.f32 %v2233, 0.2
        %v3142 = vmax.f32 %v3078, 0.0
        %v3143 = vmax.f32 %v3079, 0.0
        %v3144 = vmax.f32 %v3080, 0.0
        %v3145 = vmax.f32 %v3081, 0.0
        %v3146 = vmax.f32 %v3082, 0.0
        %v3147 = vmax.f32 %v3083, 0.0
        %v3148 = vmax.f32 %v3084, 0.0
        %v3149 = vmax.f32 %v3085, 0.0
        %v3150 = vmax.f32 %v3086, 0.0
        %v3151 = vmax.f32 %v3087, 0.0
        %v3152 = vmax.f32 %v3088, 0.0
        %v3153 = vmax.f32 %v3089, 0.0
        %v3154 = vmax.f32 %v3090, 0.0
        %v3155 = vmax.f32 %v3091, 0.0
        %v3156 = vmax.f32 %v3092, 0.0
        %v3157 = vmax.f32 %v3093, 0.0
        %v3158 = vmax.f32 %v3094, 0.0
        %v3159 = vmax.f32 %v3095, 0.0
        %v3160 = vmax.f32 %v3096, 0.0
        %v3161 = vmax.f32 %v3097, 0.0
        %v3162 = vmax.f32 %v3098, 0.0
        %v3163 = vmax.f32 %v3099, 0.0
        %v3164 = vmax.f32 %v3100, 0.0
        %v3165 = vmax.f32 %v3101, 0.0
        %v3166 = vmax.f32 %v3102, 0.0
        %v3167 = vmax.f32 %v3103, 0.0
        %v3168 = vmax.f32 %v3104, 0.0
        %v3169 = vmax.f32 %v3105, 0.0
        %v3170 = vmax.f32 %v3106, 0.0
        %v3171 = vmax.f32 %v3107, 0.0
        %v3172 = vmax.f32 %v3108, 0.0
        %v3173 = vmax.f32 %v3109, 0.0
        %v3174 = vmax.f32 %v3110, 0.0
        %v3175 = vmax.f32 %v3111, 0.0
        %v3176 = vmax.f32 %v3112, 0.0
        %v3177 = vmax.f32 %v3113, 0.0
        %v3178 = vmax.f32 %v3114, 0.0
        %v3179 = vmax.f32 %v3115, 0.0
        %v3180 = vmax.f32 %v3116, 0.0
        %v3181 = vmax.f32 %v3117, 0.0
        %v3182 = vmax.f32 %v3118, 0.0
        %v3183 = vmax.f32 %v3119, 0.0
        %v3184 = vmax.f32 %v3120, 0.0
        %v3185 = vmax.f32 %v3121, 0.0
        %v3186 = vmax.f32 %v3122, 0.0
        %v3187 = vmax.f32 %v3123, 0.0
        %v3188 = vmax.f32 %v3124, 0.0
        %v3189 = vmax.f32 %v3125, 0.0
        %v3190 = vmax.f32 %v3126, 0.0
        %v3191 = vmax.f32 %v3127, 0.0
        %v3192 = vmax.f32 %v3128, 0.0
        %v3193 = vmax.f32 %v3129, 0.0
        %v3194 = vmax.f32 %v3130, 0.0
        %v3195 = vmax.f32 %v3131, 0.0
        %v3196 = vmax.f32 %v3132, 0.0
        %v3197 = vmax.f32 %v3133, 0.0
        %v3198 = vmax.f32 %v3134, 0.0
        %v3199 = vmax.f32 %v3135, 0.0
        %v3200 = vmax.f32 %v3136, 0.0
        %v3201 = vmax.f32 %v3137, 0.0
        %v3202 = vmax.f32 %v3138, 0.0
        %v3203 = vmax.f32 %v3139, 0.0
        %v3204 = vmax.f32 %v3140, 0.0
        %v3205 = vmax.f32 %v3141, 0.0
        %vm3206 = vcmp.le.f32.partialorder %v2886, 56.25
        %vm3207 = vcmp.le.f32.partialorder %v2887, 56.25
        %vm3208 = vcmp.le.f32.partialorder %v2888, 56.25
        %vm3209 = vcmp.le.f32.partialorder %v2889, 56.25
        %vm3210 = vcmp.le.f32.partialorder %v2890, 56.25
        %vm3211 = vcmp.le.f32.partialorder %v2891, 56.25
        %vm3212 = vcmp.le.f32.partialorder %v2892, 56.25
        %vm3213 = vcmp.le.f32.partialorder %v2893, 56.25
        %vm3214 = vcmp.le.f32.partialorder %v2894, 56.25
        %vm3215 = vcmp.le.f32.partialorder %v2895, 56.25
        %vm3216 = vcmp.le.f32.partialorder %v2896, 56.25
        %vm3217 = vcmp.le.f32.partialorder %v2897, 56.25
        %vm3218 = vcmp.le.f32.partialorder %v2898, 56.25
        %vm3219 = vcmp.le.f32.partialorder %v2899, 56.25
        %vm3220 = vcmp.le.f32.partialorder %v2900, 56.25
        %vm3221 = vcmp.le.f32.partialorder %v2901, 56.25
        %vm3222 = vcmp.le.f32.partialorder %v2902, 56.25
        %vm3223 = vcmp.le.f32.partialorder %v2903, 56.25
        %vm3224 = vcmp.le.f32.partialorder %v2904, 56.25
        %vm3225 = vcmp.le.f32.partialorder %v2905, 56.25
        %vm3226 = vcmp.le.f32.partialorder %v2906, 56.25
        %vm3227 = vcmp.le.f32.partialorder %v2907, 56.25
        %vm3228 = vcmp.le.f32.partialorder %v2908, 56.25
        %vm3229 = vcmp.le.f32.partialorder %v2909, 56.25
        %vm3230 = vcmp.le.f32.partialorder %v2910, 56.25
        %vm3231 = vcmp.le.f32.partialorder %v2911, 56.25
        %vm3232 = vcmp.le.f32.partialorder %v2912, 56.25
        %vm3233 = vcmp.le.f32.partialorder %v2913, 56.25
        %vm3234 = vcmp.le.f32.partialorder %v2914, 56.25
        %vm3235 = vcmp.le.f32.partialorder %v2915, 56.25
        %vm3236 = vcmp.le.f32.partialorder %v2916, 56.25
        %vm3237 = vcmp.le.f32.partialorder %v2917, 56.25
        %vm3238 = vcmp.le.f32.partialorder %v2918, 56.25
        %vm3239 = vcmp.le.f32.partialorder %v2919, 56.25
        %vm3240 = vcmp.le.f32.partialorder %v2920, 56.25
        %vm3241 = vcmp.le.f32.partialorder %v2921, 56.25
        %vm3242 = vcmp.le.f32.partialorder %v2922, 56.25
        %vm3243 = vcmp.le.f32.partialorder %v2923, 56.25
        %vm3244 = vcmp.le.f32.partialorder %v2924, 56.25
        %vm3245 = vcmp.le.f32.partialorder %v2925, 56.25
        %vm3246 = vcmp.le.f32.partialorder %v2926, 56.25
        %vm3247 = vcmp.le.f32.partialorder %v2927, 56.25
        %vm3248 = vcmp.le.f32.partialorder %v2928, 56.25
        %vm3249 = vcmp.le.f32.partialorder %v2929, 56.25
        %vm3250 = vcmp.le.f32.partialorder %v2930, 56.25
        %vm3251 = vcmp.le.f32.partialorder %v2931, 56.25
        %vm3252 = vcmp.le.f32.partialorder %v2932, 56.25
        %vm3253 = vcmp.le.f32.partialorder %v2933, 56.25
        %vm3254 = vcmp.le.f32.partialorder %v2934, 56.25
        %vm3255 = vcmp.le.f32.partialorder %v2935, 56.25
        %vm3256 = vcmp.le.f32.partialorder %v2936, 56.25
        %vm3257 = vcmp.le.f32.partialorder %v2937, 56.25
        %vm3258 = vcmp.le.f32.partialorder %v2938, 56.25
        %vm3259 = vcmp.le.f32.partialorder %v2939, 56.25
        %vm3260 = vcmp.le.f32.partialorder %v2940, 56.25
        %vm3261 = vcmp.le.f32.partialorder %v2941, 56.25
        %vm3262 = vcmp.le.f32.partialorder %v2942, 56.25
        %vm3263 = vcmp.le.f32.partialorder %v2943, 56.25
        %vm3264 = vcmp.le.f32.partialorder %v2944, 56.25
        %vm3265 = vcmp.le.f32.partialorder %v2945, 56.25
        %vm3266 = vcmp.le.f32.partialorder %v2946, 56.25
        %vm3267 = vcmp.le.f32.partialorder %v2947, 56.25
        %vm3268 = vcmp.le.f32.partialorder %v2948, 56.25
        %vm3269 = vcmp.le.f32.partialorder %v2949, 56.25
        %v3270 = vmul.f32 %v3014, 250.0
        %v3271 = vmul.f32 %v3015, 250.0
        %v3272 = vmul.f32 %v3016, 250.0
        %v3273 = vmul.f32 %v3017, 250.0
        %v3274 = vmul.f32 %v3018, 250.0
        %v3275 = vmul.f32 %v3019, 250.0
        %v3276 = vmul.f32 %v3020, 250.0
        %v3277 = vmul.f32 %v3021, 250.0
        %v3278 = vmul.f32 %v3022, 250.0
        %v3279 = vmul.f32 %v3023, 250.0
        %v3280 = vmul.f32 %v3024, 250.0
        %v3281 = vmul.f32 %v3025, 250.0
        %v3282 = vmul.f32 %v3026, 250.0
        %v3283 = vmul.f32 %v3027, 250.0
        %v3284 = vmul.f32 %v3028, 250.0
        %v3285 = vmul.f32 %v3029, 250.0
        %v3286 = vmul.f32 %v3030, 250.0
        %v3287 = vmul.f32 %v3031, 250.0
        %v3288 = vmul.f32 %v3032, 250.0
        %v3289 = vmul.f32 %v3033, 250.0
        %v3290 = vmul.f32 %v3034, 250.0
        %v3291 = vmul.f32 %v3035, 250.0
        %v3292 = vmul.f32 %v3036, 250.0
        %v3293 = vmul.f32 %v3037, 250.0
        %v3294 = vmul.f32 %v3038, 250.0
        %v3295 = vmul.f32 %v3039, 250.0
        %v3296 = vmul.f32 %v3040, 250.0
        %v3297 = vmul.f32 %v3041, 250.0
        %v3298 = vmul.f32 %v3042, 250.0
        %v3299 = vmul.f32 %v3043, 250.0
        %v3300 = vmul.f32 %v3044, 250.0
        %v3301 = vmul.f32 %v3045, 250.0
        %v3302 = vmul.f32 %v3046, 250.0
        %v3303 = vmul.f32 %v3047, 250.0
        %v3304 = vmul.f32 %v3048, 250.0
        %v3305 = vmul.f32 %v3049, 250.0
        %v3306 = vmul.f32 %v3050, 250.0
        %v3307 = vmul.f32 %v3051, 250.0
        %v3308 = vmul.f32 %v3052, 250.0
        %v3309 = vmul.f32 %v3053, 250.0
        %v3310 = vmul.f32 %v3054, 250.0
        %v3311 = vmul.f32 %v3055, 250.0
        %v3312 = vmul.f32 %v3056, 250.0
        %v3313 = vmul.f32 %v3057, 250.0
        %v3314 = vmul.f32 %v3058, 250.0
        %v3315 = vmul.f32 %v3059, 250.0
        %v3316 = vmul.f32 %v3060, 250.0
        %v3317 = vmul.f32 %v3061, 250.0
        %v3318 = vmul.f32 %v3062, 250.0
        %v3319 = vmul.f32 %v3063, 250.0
        %v3320 = vmul.f32 %v3064, 250.0
        %v3321 = vmul.f32 %v3065, 250.0
        %v3322 = vmul.f32 %v3066, 250.0
        %v3323 = vmul.f32 %v3067, 250.0
        %v3324 = vmul.f32 %v3068, 250.0
        %v3325 = vmul.f32 %v3069, 250.0
        %v3326 = vmul.f32 %v3070, 250.0
        %v3327 = vmul.f32 %v3071, 250.0
        %v3328 = vmul.f32 %v3072, 250.0
        %v3329 = vmul.f32 %v3073, 250.0
        %v3330 = vmul.f32 %v3074, 250.0
        %v3331 = vmul.f32 %v3075, 250.0
        %v3332 = vmul.f32 %v3076, 250.0
        %v3333 = vmul.f32 %v3077, 250.0
        %v3334 = vsel %vm3206, %v3270, %v3142
        %v3335 = vsel %vm3207, %v3271, %v3143
        %v3336 = vsel %vm3208, %v3272, %v3144
        %v3337 = vsel %vm3209, %v3273, %v3145
        %v3338 = vsel %vm3210, %v3274, %v3146
        %v3339 = vsel %vm3211, %v3275, %v3147
        %v3340 = vsel %vm3212, %v3276, %v3148
        %v3341 = vsel %vm3213, %v3277, %v3149
        %v3342 = vsel %vm3214, %v3278, %v3150
        %v3343 = vsel %vm3215, %v3279, %v3151
        %v3344 = vsel %vm3216, %v3280, %v3152
        %v3345 = vsel %vm3217, %v3281, %v3153
        %v3346 = vsel %vm3218, %v3282, %v3154
        %v3347 = vsel %vm3219, %v3283, %v3155
        %v3348 = vsel %vm3220, %v3284, %v3156
        %v3349 = vsel %vm3221, %v3285, %v3157
        %v3350 = vsel %vm3222, %v3286, %v3158
        %v3351 = vsel %vm3223, %v3287, %v3159
        %v3352 = vsel %vm3224, %v3288, %v3160
        %v3353 = vsel %vm3225, %v3289, %v3161
        %v3354 = vsel %vm3226, %v3290, %v3162
        %v3355 = vsel %vm3227, %v3291, %v3163
        %v3356 = vsel %vm3228, %v3292, %v3164
        %v3357 = vsel %vm3229, %v3293, %v3165
        %v3358 = vsel %vm3230, %v3294, %v3166
        %v3359 = vsel %vm3231, %v3295, %v3167
        %v3360 = vsel %vm3232, %v3296, %v3168
        %v3361 = vsel %vm3233, %v3297, %v3169
        %v3362 = vsel %vm3234, %v3298, %v3170
        %v3363 = vsel %vm3235, %v3299, %v3171
        %v3364 = vsel %vm3236, %v3300, %v3172
        %v3365 = vsel %vm3237, %v3301, %v3173
        %v3366 = vsel %vm3238, %v3302, %v3174
        %v3367 = vsel %vm3239, %v3303, %v3175
        %v3368 = vsel %vm3240, %v3304, %v3176
        %v3369 = vsel %vm3241, %v3305, %v3177
        %v3370 = vsel %vm3242, %v3306, %v3178
        %v3371 = vsel %vm3243, %v3307, %v3179
        %v3372 = vsel %vm3244, %v3308, %v3180
        %v3373 = vsel %vm3245, %v3309, %v3181
        %v3374 = vsel %vm3246, %v3310, %v3182
        %v3375 = vsel %vm3247, %v3311, %v3183
        %v3376 = vsel %vm3248, %v3312, %v3184
        %v3377 = vsel %vm3249, %v3313, %v3185
        %v3378 = vsel %vm3250, %v3314, %v3186
        %v3379 = vsel %vm3251, %v3315, %v3187
        %v3380 = vsel %vm3252, %v3316, %v3188
        %v3381 = vsel %vm3253, %v3317, %v3189
        %v3382 = vsel %vm3254, %v3318, %v3190
        %v3383 = vsel %vm3255, %v3319, %v3191
        %v3384 = vsel %vm3256, %v3320, %v3192
        %v3385 = vsel %vm3257, %v3321, %v3193
        %v3386 = vsel %vm3258, %v3322, %v3194
        %v3387 = vsel %vm3259, %v3323, %v3195
        %v3388 = vsel %vm3260, %v3324, %v3196
        %v3389 = vsel %vm3261, %v3325, %v3197
        %v3390 = vsel %vm3262, %v3326, %v3198
        %v3391 = vsel %vm3263, %v3327, %v3199
        %v3392 = vsel %vm3264, %v3328, %v3200
        %v3393 = vsel %vm3265, %v3329, %v3201
        %v3394 = vsel %vm3266, %v3330, %v3202
        %v3395 = vsel %vm3267, %v3331, %v3203
        %v3396 = vsel %vm3268, %v3332, %v3204
        %v3397 = vsel %vm3269, %v3333, %v3205
        %v3398 = vadd.f32 %v3334, %v3336
        %v3399 = vadd.f32 %v3398, %v3338
        %v3400 = vadd.f32 %v3399, %v3340
        %v3401 = vadd.f32 %v3400, %v3342
        %v3402 = vadd.f32 %v3401, %v3344
        %v3403 = vadd.f32 %v3402, %v3346
        %v3404 = vadd.f32 %v3403, %v3348
        %v3405 = vadd.f32 %v3404, %v3350
        %v3406 = vadd.f32 %v3405, %v3352
        %v3407 = vadd.f32 %v3406, %v3354
        %v3408 = vadd.f32 %v3407, %v3356
        %v3409 = vadd.f32 %v3408, %v3358
        %v3410 = vadd.f32 %v3409, %v3360
        %v3411 = vadd.f32 %v3410, %v3362
        %v3412 = vadd.f32 %v3411, %v3364
        %v3413 = vadd.f32 %v3412, %v3366
        %v3414 = vadd.f32 %v3413, %v3368
        %v3415 = vadd.f32 %v3414, %v3370
        %v3416 = vadd.f32 %v3415, %v3372
        %v3417 = vadd.f32 %v3416, %v3374
        %v3418 = vadd.f32 %v3417, %v3376
        %v3419 = vadd.f32 %v3418, %v3378
        %v3420 = vadd.f32 %v3419, %v3380
        %v3421 = vadd.f32 %v3420, %v3382
        %v3422 = vadd.f32 %v3421, %v3384
        %v3423 = vadd.f32 %v3422, %v3386
        %v3424 = vadd.f32 %v3423, %v3388
        %v3425 = vadd.f32 %v3424, %v3390
        %v3426 = vadd.f32 %v3425, %v3392
        %v3427 = vadd.f32 %v3426, %v3394
        %v3428 = vadd.f32 %v3427, %v3396
        %v3429 = vrot.slane %v3428, 4
        %v3430 = vadd.f32 %v3428, %v3429
        %v3431 = vrot.slane %v3430, 2
        %v3432 = vadd.f32 %v3430, %v3431
        %v3433 = vrot.slane %v3432, 1
        %v3434 = vadd.f32 %v3432, %v3433
        %v3435 = vadd.f32 %v3335, %v3337
        %v3436 = vadd.f32 %v3435, %v3339
        %v3437 = vadd.f32 %v3436, %v3341
        %v3438 = vadd.f32 %v3437, %v3343
        %v3439 = vadd.f32 %v3438, %v3345
        %v3440 = vadd.f32 %v3439, %v3347
        %v3441 = vadd.f32 %v3440, %v3349
        %v3442 = vadd.f32 %v3441, %v3351
        %v3443 = vadd.f32 %v3442, %v3353
        %v3444 = vadd.f32 %v3443, %v3355
        %v3445 = vadd.f32 %v3444, %v3357
        %v3446 = vadd.f32 %v3445, %v3359
        %v3447 = vadd.f32 %v3446, %v3361
        %v3448 = vadd.f32 %v3447, %v3363
        %v3449 = vadd.f32 %v3448, %v3365
        %v3450 = vadd.f32 %v3449, %v3367
        %v3451 = vadd.f32 %v3450, %v3369
        %v3452 = vadd.f32 %v3451, %v3371
        %v3453 = vadd.f32 %v3452, %v3373
        %v3454 = vadd.f32 %v3453, %v3375
        %v3455 = vadd.f32 %v3454, %v3377
        %v3456 = vadd.f32 %v3455, %v3379
        %v3457 = vadd.f32 %v3456, %v3381
        %v3458 = vadd.f32 %v3457, %v3383
        %v3459 = vadd.f32 %v3458, %v3385
        %v3460 = vadd.f32 %v3459, %v3387
        %v3461 = vadd.f32 %v3460, %v3389
        %v3462 = vadd.f32 %v3461, %v3391
        %v3463 = vadd.f32 %v3462, %v3393
        %v3464 = vadd.f32 %v3463, %v3395
        %v3465 = vadd.f32 %v3464, %v3397
        %v3466 = vrot.slane %v3465, 4
        %v3467 = vadd.f32 %v3465, %v3466
        %v3468 = vrot.slane %v3467, 2
        %v3469 = vadd.f32 %v3467, %v3468
        %v3470 = vrot.slane %v3469, 1
        %v3471 = vadd.f32 %v3469, %v3470
        %v3474 = vrot.slane %v3471, 7
        %vm3475 = vcmask 1040384
        %v3476 = vsel %vm3475, %v3434, %v3474
        %v3478 = vlaneseq
        %vm3479 = vcmp.ge.s32.totalorder %v3478, 0
        %vm3480 = vcmp.lt.s32.totalorder %v3478, 256
        %vm3481 = vmand %vm3479, %vm3480
        %3482 = vst.msk [vmem:[%s289] sm:$0x3] %vm3481, %v3476
        %s3483 = sand.u32 %s174, 1
        %s3484 = scalar_lea.sflag [#allocation3], %s3483
        %s3485 = sand.u32 %s174, 1
        %s3486 = smul.addr %s3485, 2
        %s3487 = scalar_lea.vmem [#allocation2], %s3486
        // Predicated region
        $region45: #{tpu_custom_call.1} parent=43 // pred_check
          %p3488 = pneg %p184
        $region46: #{tpu_custom_call.1} parent=43 // pred_check_branch
          %3490 = sbr.rel (%p3488) target = $region48
        $region47: #{tpu_custom_call.1} parent=43 // pred_region
          %3492 = vsyncadd %s3484, 0
          %s3493 = smul.addr %s20, 2
          %s3494 = scalar_lea.hbm %s6, %s3493
          %s3496 = sshll.u32 %s3487, 4
          %s3497 = int_to_ptr.vmem [resolvable:$true] %s3496
          %s3498 = sshll.u32 %s3494, 4
          %s3499 = int_to_ptr.hbm [resolvable:$true] %s3498
          %3501 = dma.vmem_to_hbm [thread:$0]  %s3497, 32, %s3499, %s3484
        $region48: #{tpu_custom_call.1} parent=43 // pred_fallthru
          _
      $region44: #{tpu_custom_call.1} parent=5 // pred_fallthru
        _
      %p3502 = scmp.le.s32.totalorder 2, %s15
      // Predicated region
      $region49: #{tpu_custom_call.1} parent=5 // pred_check
        %p3503 = pneg %p3502
      $region50: #{tpu_custom_call.1} parent=5 // pred_check_branch
        %3505 = sbr.rel (%p3503) target = $region52
      $region51: #{tpu_custom_call.1} parent=5 // pred_region
        %s3506 = ssub.s32 %s15, 2
        // Predicated region
        $region53: #{tpu_custom_call.1} parent=51 // pred_check
          %p3507 = pneg %p190
        $region54: #{tpu_custom_call.1} parent=51 // pred_check_branch
          %3509 = sbr.rel (%p3507) target = $region56
        $region55: #{tpu_custom_call.1} parent=51 // pred_region
          %s3510 = sand.u32 %s175, 1
          %s3511 = scalar_lea.sflag [#allocation3], %s3510
          %s3512 = sand.u32 %s175, 1
          %s3513 = smul.addr %s3512, 2
          %s3514 = scalar_lea.vmem [#allocation2], %s3513
          %3516 = dma.done %s3511, 32
        $region56: #{tpu_custom_call.1} parent=51 // pred_fallthru
          _
      $region52: #{tpu_custom_call.1} parent=5 // pred_fallthru
        _
    $region6: #{tpu_custom_call.1} parent=1 // loop_footer
      %s19 = sadd.s32 1, %s15
    $region7: #{tpu_custom_call.1} parent=1 // loop_footer_branch
      %14 = sbr.rel target = $region3
    $region8: #{tpu_custom_call.1} parent=1 // loop_exit
      _
    %3517 = vsyncpa [#allocation3], 1
    %s3518 = scalar_lea.sflag [#allocation3], 1
    %3519 = vsyncpa %s3518, 1

</llo_original>
